<compile_context>
chip_gen: v6e
topology: v6e:2x2x1
jax: 0.10.0
libtpu: 0.0.40
codegen_flags: <defaults>
</compile_context>

<pallas_src>
import functools

import jax
import jax.numpy as jnp
from jax.experimental import pallas as pl
from jax.experimental.pallas import tpu as pltpu


# --------------------------------------------------------------------------- #
# Kernel
# --------------------------------------------------------------------------- #
def _lstm_recurrence_kernel(x_ref, wih_ref, whh_ref, b_ref, y_ref,
                            h_scr, c_scr, *,
                            tb, nb, cin, hidden, reverse,
                            param_dtype, act_dtype):
    """One (batch-block, time-block) tile: fused input projection + TB steps.

    x_ref:   (TB, NB, C)    input tile
    wih_ref: (C, 4H)        input->gates weights (transposed vs. PyTorch), param_dtype
    whh_ref: (H, 4H)        hidden->gates weights (transposed), param_dtype
    b_ref:   (1, 4H)        b_ih + b_hh, f32
    y_ref:   (TB, NB, H)    output tile
    h_scr:   (NB, H)        persistent hidden state (VMEM scratch, f32)
    c_scr:   (NB, H)        persistent cell state   (VMEM scratch, f32)
    """
    t_blk = pl.program_id(1)

    @pl.when(t_blk == 0)
    def _init():
        h_scr[...] = jnp.zeros_like(h_scr)
        c_scr[...] = jnp.zeros_like(c_scr)

    # ---- Fused input projection for the whole time block (one MXU matmul). ----
    x_blk = x_ref[...].reshape(tb * nb, cin).astype(param_dtype)
    g_blk = jnp.dot(x_blk, wih_ref[...], preferred_element_type=jnp.float32)
    g_blk = (g_blk + b_ref[...]).astype(param_dtype)        # (TB*NB, 4H)

    # ---- Serial recurrence over the TB rows of this block. ----
    step_order = range(tb - 1, -1, -1) if reverse else range(tb)
    for row in step_order:                                   # static unroll
        h_prev = h_scr[...]                                  # (NB, H) f32
        c_prev = c_scr[...]                                  # (NB, H) f32

        gates = (g_blk[row * nb:(row + 1) * nb, :].astype(jnp.float32)
                 + jnp.dot(h_prev.astype(whh_ref.dtype), whh_ref[...],
                           preferred_element_type=jnp.float32))   # (NB, 4H) f32

        # Transcendentals in act_dtype (bf16 on v6e/v7x fast path); gate math f32.
        i_g = jax.nn.sigmoid(
            gates[:, 0 * hidden:1 * hidden].astype(act_dtype)).astype(jnp.float32)
        f_g = jax.nn.sigmoid(
            gates[:, 1 * hidden:2 * hidden].astype(act_dtype)).astype(jnp.float32)
        g_g = jnp.tanh(
            gates[:, 2 * hidden:3 * hidden].astype(act_dtype)).astype(jnp.float32)
        o_g = jax.nn.sigmoid(
            gates[:, 3 * hidden:4 * hidden].astype(act_dtype)).astype(jnp.float32)

        c_new = f_g * c_prev + i_g * g_g
        h_new = o_g * jnp.tanh(c_new.astype(act_dtype)).astype(jnp.float32)

        c_scr[...] = c_new
        h_scr[...] = h_new
        y_ref[row] = h_new.astype(y_ref.dtype)


# --------------------------------------------------------------------------- #
# Tiling / budgeting helpers
# --------------------------------------------------------------------------- #
def _pick_time_block(t, target):
    tb = max(1, min(t, target))
    while t % tb:
        tb -= 1
    return tb


def _pick_batch_block(n, target, min_blocks=1):
    """Largest sublane-aligned divisor of n <= target (>= min_blocks blocks)."""
    cap = n if min_blocks <= 1 else max(8, n // min_blocks)
    cap = min(cap, target, n)
    for nb in range(cap, 7, -1):
        if n % nb == 0 and nb % 8 == 0:
            return nb
    return n                      # fallback: one full-batch block (always legal)


def _device_kind():
    try:
        return jax.devices()[0].device_kind.lower()
    except Exception:
        return ""


def _vmem_capacity_bytes(kind):
    try:
        return int(pltpu.get_tpu_info().vmem_capacity_bytes)
    except Exception:
        pass
    if "v7" in kind or "7x" in kind:
        return 64 * 1024 * 1024       # v7x: 64 MiB per TensorCore
    return 128 * 1024 * 1024          # v5e / v6e


def _vmem_estimate(tb, nb, cin, hidden, x_bytes, y_bytes, p_bytes):
    h4 = 4 * hidden
    est = 0
    est += 2 * tb * nb * cin * x_bytes        # x blocks (double-buffered)
    est += 2 * tb * nb * hidden * y_bytes     # y blocks (double-buffered)
    est += 2 * cin * h4 * p_bytes             # W_ih^T (constant block, 2 bufs)
    est += 2 * hidden * h4 * p_bytes          # W_hh^T (constant block, 2 bufs)
    est += 2 * h4 * 4                         # bias
    est += 2 * nb * hidden * 4                # h / c scratch (f32)
    est += tb * nb * h4 * p_bytes             # in-kernel gate block value
    est += 6 * nb * h4 * 4                    # per-step gate temporaries (f32)
    est += 2 * (1 << 20)                      # Mosaic internal scratch headroom
    return est


# --------------------------------------------------------------------------- #
# Public wrapper
# --------------------------------------------------------------------------- #
@functools.partial(
    jax.jit,
    static_argnames=("reverse", "time_block", "batch_block", "param_dtype"))
def bonito_lstm(x, w_ih, w_hh, b_ih, b_hh, *, reverse=False,
                time_block=16, batch_block=256, param_dtype=jnp.bfloat16):
    """Forward pass of BonitoLSTM.

    x:    (T, N, C_in)
    w_ih: (4H, C_in)   PyTorch nn.LSTM layout
    w_hh: (4H, H)
    b_ih: (4H,)
    b_hh: (4H,)
    returns y: (T, N, H)   (dtype of x)
    """
    T, N, C = x.shape
    H = w_hh.shape[1]
    param_dtype = jnp.dtype(param_dtype)

    kind = _device_kind()
    is_v5 = "v5" in kind
    is_multi_core = ("v7" in kind) or ("7x" in kind)

    # bf16 transcendentals only on parts with a bf16 EUP and only in fast mode.
    act_dtype = (jnp.bfloat16
                 if (param_dtype == jnp.dtype(jnp.bfloat16) and not is_v5)
                 else jnp.float32)

    # Weights transposed for (row, K) x (K, 4H) matmuls; bias folded once.
    wih_t = jnp.transpose(w_ih).astype(param_dtype)               # (C, 4H)
    whh_t = jnp.transpose(w_hh).astype(param_dtype)               # (H, 4H)
    bias = (b_ih.astype(jnp.float32)
            + b_hh.astype(jnp.float32)).reshape(1, 4 * H)          # (1, 4H) f32

    # ---- Blocking: keep nb large (MXU rows); guarantee >=2 blocks on v7x. ----
    min_blocks = 2 if (is_multi_core and N >= 16) else 1
    nb = _pick_batch_block(N, batch_block, min_blocks)
    tb = _pick_time_block(T, time_block)

    # ---- Generation-aware VMEM budget: shrink tb (never nb) until it fits. ----
    xsize = jnp.dtype(x.dtype).itemsize
    psize = param_dtype.itemsize
    vmem_cap = _vmem_capacity_bytes(kind)
    budget = int(vmem_cap * 0.75)
    while tb > 1 and _vmem_estimate(tb, nb, C, H, xsize, xsize, psize) > budget:
        tb = _pick_time_block(T, tb - 1)
    est = _vmem_estimate(tb, nb, C, H, xsize, xsize, psize)
    vmem_limit = int(min(vmem_cap * 0.8, max(est * 1.25, 32 * 1024 * 1024)))

    n_tb = T // tb
    n_nb = N // nb

    # reverse handled purely via index maps (applied to BOTH x and y specs).
    if reverse:
        def io_map(bi, ti):
            return (n_tb - 1 - ti, bi, 0)
    else:
        def io_map(bi, ti):
            return (ti, bi, 0)

    kernel = functools.partial(
        _lstm_recurrence_kernel,
        tb=tb, nb=nb, cin=C, hidden=H, reverse=reverse,
        param_dtype=param_dtype, act_dtype=act_dtype)

    y = pl.pallas_call(
        kernel,
        out_shape=jax.ShapeDtypeStruct((T, N, H), x.dtype),
        grid_spec=pltpu.PrefetchScalarGridSpec(
            num_scalar_prefetch=0,
            grid=(n_nb, n_tb),
            in_specs=[
                pl.BlockSpec((tb, nb, C), io_map),
                pl.BlockSpec((C, 4 * H), lambda bi, ti: (0, 0)),
                pl.BlockSpec((H, 4 * H), lambda bi, ti: (0, 0)),
                pl.BlockSpec((1, 4 * H), lambda bi, ti: (0, 0)),
            ],
            out_specs=pl.BlockSpec((tb, nb, H), io_map),
            scratch_shapes=[
                pltpu.VMEM((nb, H), jnp.float32),   # h state (persists over time)
                pltpu.VMEM((nb, H), jnp.float32),   # c state
            ],
        ),
        compiler_params=pltpu.CompilerParams(
            # batch blocks are independent (v7x 2-TC sharding); time is serial
            # and must stay innermost (carried h/c scratch).
            dimension_semantics=("parallel", "arbitrary"),
            vmem_limit_bytes=vmem_limit,
        ),
    )(x, wih_t, whh_t, bias)

    return y


# --------------------------------------------------------------------------- #
# Pure-JAX reference (PyTorch nn.LSTM semantics)
# --------------------------------------------------------------------------- #
def _lstm_reference(x, w_ih, w_hh, b_ih, b_hh, reverse=False):
    if reverse:
        x = jnp.flip(x, axis=0)
    T, N, _ = x.shape
    H = w_hh.shape[1]

    def step(carry, x_t):
        h, c = carry
        gates = x_t @ w_ih.T + b_ih + h @ w_hh.T + b_hh
        i, f, g, o = jnp.split(gates, 4, axis=-1)
        i, f, o = jax.nn.sigmoid(i), jax.nn.sigmoid(f), jax.nn.sigmoid(o)
        g = jnp.tanh(g)
        c = f * c + i * g
        h = o * jnp.tanh(c)
        return (h, c), h

    init = (jnp.zeros((N, H), x.dtype), jnp.zeros((N, H), x.dtype))
    _, ys = jax.lax.scan(step, init, x)
    if reverse:
        ys = jnp.flip(ys, axis=0)
    return ys


if __name__ == "__main__":
    # Small deterministic example: seq_len=16, batch=16, in_channels=16,
    # hidden=128 (lane-aligned hidden so gate slices land on 128-lane boundaries).
    T, N, C, H = 16, 16, 16, 128
    key = jax.random.PRNGKey(0)
    kx, k1, k2, k3, k4 = jax.random.split(key, 5)

    x = jax.random.normal(kx, (T, N, C), dtype=jnp.float32)
    scale = 1.0 / (H ** 0.5)
    w_ih = jax.random.uniform(k1, (4 * H, C), jnp.float32, -scale, scale)
    w_hh = jax.random.uniform(k2, (4 * H, H), jnp.float32, -scale, scale)
    b_ih = jax.random.uniform(k3, (4 * H,), jnp.float32, -scale, scale)
    b_hh = jax.random.uniform(k4, (4 * H,), jnp.float32, -scale, scale)

    ok = True
    for reverse in (False, True):
        y_ref = _lstm_reference(x, w_ih, w_hh, b_ih, b_hh, reverse=reverse)

        # 1) Exact-semantics check: f32 params / f32 activations, tight tolerance.
        #    time_block=8 / batch_block=8 so the test exercises multiple time
        #    blocks (state carried across grid steps) and multiple batch blocks.
        y32 = bonito_lstm(x, w_ih, w_hh, b_ih, b_hh, reverse=reverse,
                          time_block=8, batch_block=8,
                          param_dtype=jnp.float32)
        y32 = jax.block_until_ready(y32)
        if not bool(jnp.allclose(y32, y_ref, atol=2e-3, rtol=2e-3)):
            ok = False
            print("f32 mismatch reverse=%s max_abs_err=%.3e"
                  % (reverse, float(jnp.max(jnp.abs(y32 - y_ref)))))

        # 2) Default fast path (bf16 params, bf16 activations on v6e/v7x):
        #    loose sanity band — LSTM outputs are tanh-bounded in (-1, 1), so
        #    0.15 absolute catches gross errors while tolerating bf16 rounding
        #    accumulated over T steps. Semantic correctness is proven by (1),
        #    which runs the identical kernel code path.
        ybf = bonito_lstm(x, w_ih, w_hh, b_ih, b_hh, reverse=reverse,
                          time_block=8, batch_block=8)
        ybf = jax.block_until_ready(ybf)
        if not bool(jnp.allclose(ybf, y_ref, atol=0.15)):
            ok = False
            print("bf16 sanity mismatch reverse=%s max_abs_err=%.3e"
                  % (reverse, float(jnp.max(jnp.abs(ybf - y_ref)))))

    if ok:
        print("KERNEL_OK")
</pallas_src>

<mosaic_0001>
module attributes {stable_mosaic.version = 11 : i64} {
  func.func @_lstm_recurrence_kernel(%arg0: i32, %arg1: i32, %arg2: memref<8x8x16xf32, #tpu.memory_space<vmem>>, %arg3: memref<16x512xf32, #tpu.memory_space<vmem>>, %arg4: memref<128x512xf32, #tpu.memory_space<vmem>>, %arg5: memref<1x512xf32, #tpu.memory_space<vmem>>, %arg6: memref<8x8x128xf32, #tpu.memory_space<vmem>>, %arg7: memref<8x128xf32, #tpu.memory_space<vmem>>, %arg8: memref<8x128xf32, #tpu.memory_space<vmem>>) attributes {dimension_semantics = [#tpu.dimension_semantics<parallel>, #tpu.dimension_semantics<arbitrary>], iteration_bounds = array<i64: 2, 2>, scalar_prefetch = 0 : i64, scratch_operands = 2 : i64, tpu.core_type = #tpu.core_type<tc>, window_params = [{transform_indices = @transform_0, window_bounds = array<i64: 8, 8, 16>}, {pipeline_mode = #tpu.pipeline_mode<synchronous>, transform_indices = @transform_1, window_bounds = array<i64: 16, 512>}, {pipeline_mode = #tpu.pipeline_mode<synchronous>, transform_indices = @transform_2, window_bounds = array<i64: 128, 512>}, {pipeline_mode = #tpu.pipeline_mode<synchronous>, transform_indices = @transform_3, window_bounds = array<i64: 1, 512>}, {transform_indices = @transform_4, window_bounds = array<i64: 8, 8, 128>}]} {
    %c0_i32 = arith.constant 0 : i32
    %0 = arith.cmpi eq, %arg1, %c0_i32 : i32
    %1 = arith.extui %0 : i1 to i32
    %c0_i32_0 = arith.constant 0 : i32
    %2 = arith.cmpi ne, %1, %c0_i32_0 : i32
    scf.if %2 {
      %cst_136 = arith.constant 0.000000e+00 : f32
      %298 = vector.broadcast %cst_136 : f32 to vector<8x128xf32>
      %c0_137 = arith.constant 0 : index
      %c0_138 = arith.constant 0 : index
      %299 = vector.load %arg7[%c0_137, %c0_138] : memref<8x128xf32, #tpu.memory_space<vmem>>, vector<8x128xf32>
      tpu.vector_store %arg7[%c0_137, %c0_138], %298 {strides = array<i32>} : memref<8x128xf32, #tpu.memory_space<vmem>>, vector<8x128xf32>,
      %cst_139 = arith.constant 0.000000e+00 : f32
      %300 = vector.broadcast %cst_139 : f32 to vector<8x128xf32>
      %c0_140 = arith.constant 0 : index
      %c0_141 = arith.constant 0 : index
      %301 = vector.load %arg8[%c0_140, %c0_141] : memref<8x128xf32, #tpu.memory_space<vmem>>, vector<8x128xf32>
      tpu.vector_store %arg8[%c0_140, %c0_141], %300 {strides = array<i32>} : memref<8x128xf32, #tpu.memory_space<vmem>>, vector<8x128xf32>,
    } else {
    }
    %c0 = arith.constant 0 : index
    %c0_1 = arith.constant 0 : index
    %c0_2 = arith.constant 0 : index
    %3 = vector.load %arg2[%c0, %c0_1, %c0_2] : memref<8x8x16xf32, #tpu.memory_space<vmem>>, vector<8x8x16xf32>
    %4 = vector.shape_cast %3 : vector<8x8x16xf32> to vector<64x16xf32>
    %c0_3 = arith.constant 0 : index
    %c0_4 = arith.constant 0 : index
    %5 = vector.load %arg3[%c0_3, %c0_4] : memref<16x512xf32, #tpu.memory_space<vmem>>, vector<16x512xf32>
    %cst = arith.constant dense<0.000000e+00> : vector<64x512xf32>
    %6 = tpu.matmul %4, %5, %cst {dimension_numbers = #tpu.dot_dimension_numbers<[1], [0], [0], [1], [0, 0, 1, 1], [], []>} : vector<64x16xf32>, vector<16x512xf32>, vector<64x512xf32> -> vector<64x512xf32>
    %c0_5 = arith.constant 0 : index
    %c0_6 = arith.constant 0 : index
    %7 = vector.load %arg5[%c0_5, %c0_6] : memref<1x512xf32, #tpu.memory_space<vmem>>, vector<1x512xf32>
    %8 = vector.broadcast %7 : vector<1x512xf32> to vector<64x512xf32>
    %9 = arith.addf %6, %8 : vector<64x512xf32>
    %c0_7 = arith.constant 0 : index
    %c0_8 = arith.constant 0 : index
    %10 = vector.load %arg7[%c0_7, %c0_8] : memref<8x128xf32, #tpu.memory_space<vmem>>, vector<8x128xf32>
    %c0_9 = arith.constant 0 : index
    %c0_10 = arith.constant 0 : index
    %11 = vector.load %arg8[%c0_9, %c0_10] : memref<8x128xf32, #tpu.memory_space<vmem>>, vector<8x128xf32>
    %12 = vector.extract_strided_slice %9 {offsets = [0, 0], sizes = [8, 512], strides = [1, 1]} : vector<64x512xf32> to vector<8x512xf32>
    %c0_11 = arith.constant 0 : index
    %c0_12 = arith.constant 0 : index
    %13 = vector.load %arg4[%c0_11, %c0_12] : memref<128x512xf32, #tpu.memory_space<vmem>>, vector<128x512xf32>
    %cst_13 = arith.constant dense<0.000000e+00> : vector<8x512xf32>
    %14 = tpu.matmul %10, %13, %cst_13 {dimension_numbers = #tpu.dot_dimension_numbers<[1], [0], [0], [1], [0, 0, 1, 1], [], []>} : vector<8x128xf32>, vector<128x512xf32>, vector<8x512xf32> -> vector<8x512xf32>
    %15 = arith.addf %12, %14 : vector<8x512xf32>
    %16 = vector.extract_strided_slice %15 {offsets = [0, 0], sizes = [8, 128], strides = [1, 1]} : vector<8x512xf32> to vector<8x128xf32>
    %17 = arith.negf %16 : vector<8x128xf32>
    %18 = math.exp %17 : vector<8x128xf32>
    %cst_14 = arith.constant 1.000000e+00 : f32
    %19 = vector.broadcast %cst_14 : f32 to vector<8x128xf32>
    %20 = arith.addf %19, %18 : vector<8x128xf32>
    %21 = arith.divf %19, %20 : vector<8x128xf32>
    %22 = vector.extract_strided_slice %15 {offsets = [0, 128], sizes = [8, 128], strides = [1, 1]} : vector<8x512xf32> to vector<8x128xf32>
    %23 = arith.negf %22 : vector<8x128xf32>
    %24 = math.exp %23 : vector<8x128xf32>
    %cst_15 = arith.constant 1.000000e+00 : f32
    %25 = vector.broadcast %cst_15 : f32 to vector<8x128xf32>
    %26 = arith.addf %25, %24 : vector<8x128xf32>
    %27 = arith.divf %25, %26 : vector<8x128xf32>
    %28 = vector.extract_strided_slice %15 {offsets = [0, 256], sizes = [8, 128], strides = [1, 1]} : vector<8x512xf32> to vector<8x128xf32>
    %29 = math.tanh %28 : vector<8x128xf32>
    %30 = vector.extract_strided_slice %15 {offsets = [0, 384], sizes = [8, 128], strides = [1, 1]} : vector<8x512xf32> to vector<8x128xf32>
    %31 = arith.negf %30 : vector<8x128xf32>
    %32 = math.exp %31 : vector<8x128xf32>
    %cst_16 = arith.constant 1.000000e+00 : f32
    %33 = vector.broadcast %cst_16 : f32 to vector<8x128xf32>
    %34 = arith.addf %33, %32 : vector<8x128xf32>
    %35 = arith.divf %33, %34 : vector<8x128xf32>
    %36 = arith.mulf %27, %11 : vector<8x128xf32>
    %37 = arith.mulf %21, %29 : vector<8x128xf32>
    %38 = arith.addf %36, %37 : vector<8x128xf32>
    %39 = math.tanh %38 : vector<8x128xf32>
    %40 = arith.mulf %35, %39 : vector<8x128xf32>
    %c0_17 = arith.constant 0 : index
    %c0_18 = arith.constant 0 : index
    %41 = vector.load %arg8[%c0_17, %c0_18] : memref<8x128xf32, #tpu.memory_space<vmem>>, vector<8x128xf32>
    tpu.vector_store %arg8[%c0_17, %c0_18], %38 {strides = array<i32>} : memref<8x128xf32, #tpu.memory_space<vmem>>, vector<8x128xf32>,
    %c0_19 = arith.constant 0 : index
    %c0_20 = arith.constant 0 : index
    %42 = vector.load %arg7[%c0_19, %c0_20] : memref<8x128xf32, #tpu.memory_space<vmem>>, vector<8x128xf32>
    tpu.vector_store %arg7[%c0_19, %c0_20], %40 {strides = array<i32>} : memref<8x128xf32, #tpu.memory_space<vmem>>, vector<8x128xf32>,
    %c0_21 = arith.constant 0 : index
    %c0_22 = arith.constant 0 : index
    %c0_23 = arith.constant 0 : index
    %43 = vector.load %arg6[%c0_21, %c0_22, %c0_23] : memref<8x8x128xf32, #tpu.memory_space<vmem>>, vector<1x8x128xf32>
    %44 = vector.shape_cast %43 : vector<1x8x128xf32> to vector<8x128xf32>
    %45 = vector.shape_cast %40 : vector<8x128xf32> to vector<1x8x128xf32>
    tpu.vector_store %arg6[%c0_21, %c0_22, %c0_23], %45 {strides = array<i32>} : memref<8x8x128xf32, #tpu.memory_space<vmem>>, vector<1x8x128xf32>,
    %c0_24 = arith.constant 0 : index
    %c0_25 = arith.constant 0 : index
    %46 = vector.load %arg7[%c0_24, %c0_25] : memref<8x128xf32, #tpu.memory_space<vmem>>, vector<8x128xf32>
    %c0_26 = arith.constant 0 : index
    %c0_27 = arith.constant 0 : index
    %47 = vector.load %arg8[%c0_26, %c0_27] : memref<8x128xf32, #tpu.memory_space<vmem>>, vector<8x128xf32>
    %48 = vector.extract_strided_slice %9 {offsets = [8, 0], sizes = [8, 512], strides = [1, 1]} : vector<64x512xf32> to vector<8x512xf32>
    %c0_28 = arith.constant 0 : index
    %c0_29 = arith.constant 0 : index
    %49 = vector.load %arg4[%c0_28, %c0_29] : memref<128x512xf32, #tpu.memory_space<vmem>>, vector<128x512xf32>
    %cst_30 = arith.constant dense<0.000000e+00> : vector<8x512xf32>
    %50 = tpu.matmul %46, %49, %cst_30 {dimension_numbers = #tpu.dot_dimension_numbers<[1], [0], [0], [1], [0, 0, 1, 1], [], []>} : vector<8x128xf32>, vector<128x512xf32>, vector<8x512xf32> -> vector<8x512xf32>
    %51 = arith.addf %48, %50 : vector<8x512xf32>
    %52 = vector.extract_strided_slice %51 {offsets = [0, 0], sizes = [8, 128], strides = [1, 1]} : vector<8x512xf32> to vector<8x128xf32>
    %53 = arith.negf %52 : vector<8x128xf32>
    %54 = math.exp %53 : vector<8x128xf32>
    %cst_31 = arith.constant 1.000000e+00 : f32
    %55 = vector.broadcast %cst_31 : f32 to vector<8x128xf32>
    %56 = arith.addf %55, %54 : vector<8x128xf32>
    %57 = arith.divf %55, %56 : vector<8x128xf32>
    %58 = vector.extract_strided_slice %51 {offsets = [0, 128], sizes = [8, 128], strides = [1, 1]} : vector<8x512xf32> to vector<8x128xf32>
    %59 = arith.negf %58 : vector<8x128xf32>
    %60 = math.exp %59 : vector<8x128xf32>
    %cst_32 = arith.constant 1.000000e+00 : f32
    %61 = vector.broadcast %cst_32 : f32 to vector<8x128xf32>
    %62 = arith.addf %61, %60 : vector<8x128xf32>
    %63 = arith.divf %61, %62 : vector<8x128xf32>
    %64 = vector.extract_strided_slice %51 {offsets = [0, 256], sizes = [8, 128], strides = [1, 1]} : vector<8x512xf32> to vector<8x128xf32>
    %65 = math.tanh %64 : vector<8x128xf32>
    %66 = vector.extract_strided_slice %51 {offsets = [0, 384], sizes = [8, 128], strides = [1, 1]} : vector<8x512xf32> to vector<8x128xf32>
    %67 = arith.negf %66 : vector<8x128xf32>
    %68 = math.exp %67 : vector<8x128xf32>
    %cst_33 = arith.constant 1.000000e+00 : f32
    %69 = vector.broadcast %cst_33 : f32 to vector<8x128xf32>
    %70 = arith.addf %69, %68 : vector<8x128xf32>
    %71 = arith.divf %69, %70 : vector<8x128xf32>
    %72 = arith.mulf %63, %47 : vector<8x128xf32>
    %73 = arith.mulf %57, %65 : vector<8x128xf32>
    %74 = arith.addf %72, %73 : vector<8x128xf32>
    %75 = math.tanh %74 : vector<8x128xf32>
    %76 = arith.mulf %71, %75 : vector<8x128xf32>
    %c0_34 = arith.constant 0 : index
    %c0_35 = arith.constant 0 : index
    %77 = vector.load %arg8[%c0_34, %c0_35] : memref<8x128xf32, #tpu.memory_space<vmem>>, vector<8x128xf32>
    tpu.vector_store %arg8[%c0_34, %c0_35], %74 {strides = array<i32>} : memref<8x128xf32, #tpu.memory_space<vmem>>, vector<8x128xf32>,
    %c0_36 = arith.constant 0 : index
    %c0_37 = arith.constant 0 : index
    %78 = vector.load %arg7[%c0_36, %c0_37] : memref<8x128xf32, #tpu.memory_space<vmem>>, vector<8x128xf32>
    tpu.vector_store %arg7[%c0_36, %c0_37], %76 {strides = array<i32>} : memref<8x128xf32, #tpu.memory_space<vmem>>, vector<8x128xf32>,
    %c1 = arith.constant 1 : index
    %c0_38 = arith.constant 0 : index
    %c0_39 = arith.constant 0 : index
    %79 = vector.load %arg6[%c1, %c0_38, %c0_39] : memref<8x8x128xf32, #tpu.memory_space<vmem>>, vector<1x8x128xf32>
    %80 = vector.shape_cast %79 : vector<1x8x128xf32> to vector<8x128xf32>
    %81 = vector.shape_cast %76 : vector<8x128xf32> to vector<1x8x128xf32>
    tpu.vector_store %arg6[%c1, %c0_38, %c0_39], %81 {strides = array<i32>} : memref<8x8x128xf32, #tpu.memory_space<vmem>>, vector<1x8x128xf32>,
    %c0_40 = arith.constant 0 : index
    %c0_41 = arith.constant 0 : index
    %82 = vector.load %arg7[%c0_40, %c0_41] : memref<8x128xf32, #tpu.memory_space<vmem>>, vector<8x128xf32>
    %c0_42 = arith.constant 0 : index
    %c0_43 = arith.constant 0 : index
    %83 = vector.load %arg8[%c0_42, %c0_43] : memref<8x128xf32, #tpu.memory_space<vmem>>, vector<8x128xf32>
    %84 = vector.extract_strided_slice %9 {offsets = [16, 0], sizes = [8, 512], strides = [1, 1]} : vector<64x512xf32> to vector<8x512xf32>
    %c0_44 = arith.constant 0 : index
    %c0_45 = arith.constant 0 : index
    %85 = vector.load %arg4[%c0_44, %c0_45] : memref<128x512xf32, #tpu.memory_space<vmem>>, vector<128x512xf32>
    %cst_46 = arith.constant dense<0.000000e+00> : vector<8x512xf32>
    %86 = tpu.matmul %82, %85, %cst_46 {dimension_numbers = #tpu.dot_dimension_numbers<[1], [0], [0], [1], [0, 0, 1, 1], [], []>} : vector<8x128xf32>, vector<128x512xf32>, vector<8x512xf32> -> vector<8x512xf32>
    %87 = arith.addf %84, %86 : vector<8x512xf32>
    %88 = vector.extract_strided_slice %87 {offsets = [0, 0], sizes = [8, 128], strides = [1, 1]} : vector<8x512xf32> to vector<8x128xf32>
    %89 = arith.negf %88 : vector<8x128xf32>
    %90 = math.exp %89 : vector<8x128xf32>
    %cst_47 = arith.constant 1.000000e+00 : f32
    %91 = vector.broadcast %cst_47 : f32 to vector<8x128xf32>
    %92 = arith.addf %91, %90 : vector<8x128xf32>
    %93 = arith.divf %91, %92 : vector<8x128xf32>
    %94 = vector.extract_strided_slice %87 {offsets = [0, 128], sizes = [8, 128], strides = [1, 1]} : vector<8x512xf32> to vector<8x128xf32>
    %95 = arith.negf %94 : vector<8x128xf32>
    %96 = math.exp %95 : vector<8x128xf32>
    %cst_48 = arith.constant 1.000000e+00 : f32
    %97 = vector.broadcast %cst_48 : f32 to vector<8x128xf32>
    %98 = arith.addf %97, %96 : vector<8x128xf32>
    %99 = arith.divf %97, %98 : vector<8x128xf32>
    %100 = vector.extract_strided_slice %87 {offsets = [0, 256], sizes = [8, 128], strides = [1, 1]} : vector<8x512xf32> to vector<8x128xf32>
    %101 = math.tanh %100 : vector<8x128xf32>
    %102 = vector.extract_strided_slice %87 {offsets = [0, 384], sizes = [8, 128], strides = [1, 1]} : vector<8x512xf32> to vector<8x128xf32>
    %103 = arith.negf %102 : vector<8x128xf32>
    %104 = math.exp %103 : vector<8x128xf32>
    %cst_49 = arith.constant 1.000000e+00 : f32
    %105 = vector.broadcast %cst_49 : f32 to vector<8x128xf32>
    %106 = arith.addf %105, %104 : vector<8x128xf32>
    %107 = arith.divf %105, %106 : vector<8x128xf32>
    %108 = arith.mulf %99, %83 : vector<8x128xf32>
    %109 = arith.mulf %93, %101 : vector<8x128xf32>
    %110 = arith.addf %108, %109 : vector<8x128xf32>
    %111 = math.tanh %110 : vector<8x128xf32>
    %112 = arith.mulf %107, %111 : vector<8x128xf32>
    %c0_50 = arith.constant 0 : index
    %c0_51 = arith.constant 0 : index
    %113 = vector.load %arg8[%c0_50, %c0_51] : memref<8x128xf32, #tpu.memory_space<vmem>>, vector<8x128xf32>
    tpu.vector_store %arg8[%c0_50, %c0_51], %110 {strides = array<i32>} : memref<8x128xf32, #tpu.memory_space<vmem>>, vector<8x128xf32>,
    %c0_52 = arith.constant 0 : index
    %c0_53 = arith.constant 0 : index
    %114 = vector.load %arg7[%c0_52, %c0_53] : memref<8x128xf32, #tpu.memory_space<vmem>>, vector<8x128xf32>
    tpu.vector_store %arg7[%c0_52, %c0_53], %112 {strides = array<i32>} : memref<8x128xf32, #tpu.memory_space<vmem>>, vector<8x128xf32>,
    %c2 = arith.constant 2 : index
    %c0_54 = arith.constant 0 : index
    %c0_55 = arith.constant 0 : index
    %115 = vector.load %arg6[%c2, %c0_54, %c0_55] : memref<8x8x128xf32, #tpu.memory_space<vmem>>, vector<1x8x128xf32>
    %116 = vector.shape_cast %115 : vector<1x8x128xf32> to vector<8x128xf32>
    %117 = vector.shape_cast %112 : vector<8x128xf32> to vector<1x8x128xf32>
    tpu.vector_store %arg6[%c2, %c0_54, %c0_55], %117 {strides = array<i32>} : memref<8x8x128xf32, #tpu.memory_space<vmem>>, vector<1x8x128xf32>,
    %c0_56 = arith.constant 0 : index
    %c0_57 = arith.constant 0 : index
    %118 = vector.load %arg7[%c0_56, %c0_57] : memref<8x128xf32, #tpu.memory_space<vmem>>, vector<8x128xf32>
    %c0_58 = arith.constant 0 : index
    %c0_59 = arith.constant 0 : index
    %119 = vector.load %arg8[%c0_58, %c0_59] : memref<8x128xf32, #tpu.memory_space<vmem>>, vector<8x128xf32>
    %120 = vector.extract_strided_slice %9 {offsets = [24, 0], sizes = [8, 512], strides = [1, 1]} : vector<64x512xf32> to vector<8x512xf32>
    %c0_60 = arith.constant 0 : index
    %c0_61 = arith.constant 0 : index
    %121 = vector.load %arg4[%c0_60, %c0_61] : memref<128x512xf32, #tpu.memory_space<vmem>>, vector<128x512xf32>
    %cst_62 = arith.constant dense<0.000000e+00> : vector<8x512xf32>
    %122 = tpu.matmul %118, %121, %cst_62 {dimension_numbers = #tpu.dot_dimension_numbers<[1], [0], [0], [1], [0, 0, 1, 1], [], []>} : vector<8x128xf32>, vector<128x512xf32>, vector<8x512xf32> -> vector<8x512xf32>
    %123 = arith.addf %120, %122 : vector<8x512xf32>
    %124 = vector.extract_strided_slice %123 {offsets = [0, 0], sizes = [8, 128], strides = [1, 1]} : vector<8x512xf32> to vector<8x128xf32>
    %125 = arith.negf %124 : vector<8x128xf32>
    %126 = math.exp %125 : vector<8x128xf32>
    %cst_63 = arith.constant 1.000000e+00 : f32
    %127 = vector.broadcast %cst_63 : f32 to vector<8x128xf32>
    %128 = arith.addf %127, %126 : vector<8x128xf32>
    %129 = arith.divf %127, %128 : vector<8x128xf32>
    %130 = vector.extract_strided_slice %123 {offsets = [0, 128], sizes = [8, 128], strides = [1, 1]} : vector<8x512xf32> to vector<8x128xf32>
    %131 = arith.negf %130 : vector<8x128xf32>
    %132 = math.exp %131 : vector<8x128xf32>
    %cst_64 = arith.constant 1.000000e+00 : f32
    %133 = vector.broadcast %cst_64 : f32 to vector<8x128xf32>
    %134 = arith.addf %133, %132 : vector<8x128xf32>
    %135 = arith.divf %133, %134 : vector<8x128xf32>
    %136 = vector.extract_strided_slice %123 {offsets = [0, 256], sizes = [8, 128], strides = [1, 1]} : vector<8x512xf32> to vector<8x128xf32>
    %137 = math.tanh %136 : vector<8x128xf32>
    %138 = vector.extract_strided_slice %123 {offsets = [0, 384], sizes = [8, 128], strides = [1, 1]} : vector<8x512xf32> to vector<8x128xf32>
    %139 = arith.negf %138 : vector<8x128xf32>
    %140 = math.exp %139 : vector<8x128xf32>
    %cst_65 = arith.constant 1.000000e+00 : f32
    %141 = vector.broadcast %cst_65 : f32 to vector<8x128xf32>
    %142 = arith.addf %141, %140 : vector<8x128xf32>
    %143 = arith.divf %141, %142 : vector<8x128xf32>
    %144 = arith.mulf %135, %119 : vector<8x128xf32>
    %145 = arith.mulf %129, %137 : vector<8x128xf32>
    %146 = arith.addf %144, %145 : vector<8x128xf32>
    %147 = math.tanh %146 : vector<8x128xf32>
    %148 = arith.mulf %143, %147 : vector<8x128xf32>
    %c0_66 = arith.constant 0 : index
    %c0_67 = arith.constant 0 : index
    %149 = vector.load %arg8[%c0_66, %c0_67] : memref<8x128xf32, #tpu.memory_space<vmem>>, vector<8x128xf32>
    tpu.vector_store %arg8[%c0_66, %c0_67], %146 {strides = array<i32>} : memref<8x128xf32, #tpu.memory_space<vmem>>, vector<8x128xf32>,
    %c0_68 = arith.constant 0 : index
    %c0_69 = arith.constant 0 : index
    %150 = vector.load %arg7[%c0_68, %c0_69] : memref<8x128xf32, #tpu.memory_space<vmem>>, vector<8x128xf32>
    tpu.vector_store %arg7[%c0_68, %c0_69], %148 {strides = array<i32>} : memref<8x128xf32, #tpu.memory_space<vmem>>, vector<8x128xf32>,
    %c3 = arith.constant 3 : index
    %c0_70 = arith.constant 0 : index
    %c0_71 = arith.constant 0 : index
    %151 = vector.load %arg6[%c3, %c0_70, %c0_71] : memref<8x8x128xf32, #tpu.memory_space<vmem>>, vector<1x8x128xf32>
    %152 = vector.shape_cast %151 : vector<1x8x128xf32> to vector<8x128xf32>
    %153 = vector.shape_cast %148 : vector<8x128xf32> to vector<1x8x128xf32>
    tpu.vector_store %arg6[%c3, %c0_70, %c0_71], %153 {strides = array<i32>} : memref<8x8x128xf32, #tpu.memory_space<vmem>>, vector<1x8x128xf32>,
    %c0_72 = arith.constant 0 : index
    %c0_73 = arith.constant 0 : index
    %154 = vector.load %arg7[%c0_72, %c0_73] : memref<8x128xf32, #tpu.memory_space<vmem>>, vector<8x128xf32>
    %c0_74 = arith.constant 0 : index
    %c0_75 = arith.constant 0 : index
    %155 = vector.load %arg8[%c0_74, %c0_75] : memref<8x128xf32, #tpu.memory_space<vmem>>, vector<8x128xf32>
    %156 = vector.extract_strided_slice %9 {offsets = [32, 0], sizes = [8, 512], strides = [1, 1]} : vector<64x512xf32> to vector<8x512xf32>
    %c0_76 = arith.constant 0 : index
    %c0_77 = arith.constant 0 : index
    %157 = vector.load %arg4[%c0_76, %c0_77] : memref<128x512xf32, #tpu.memory_space<vmem>>, vector<128x512xf32>
    %cst_78 = arith.constant dense<0.000000e+00> : vector<8x512xf32>
    %158 = tpu.matmul %154, %157, %cst_78 {dimension_numbers = #tpu.dot_dimension_numbers<[1], [0], [0], [1], [0, 0, 1, 1], [], []>} : vector<8x128xf32>, vector<128x512xf32>, vector<8x512xf32> -> vector<8x512xf32>
    %159 = arith.addf %156, %158 : vector<8x512xf32>
    %160 = vector.extract_strided_slice %159 {offsets = [0, 0], sizes = [8, 128], strides = [1, 1]} : vector<8x512xf32> to vector<8x128xf32>
    %161 = arith.negf %160 : vector<8x128xf32>
    %162 = math.exp %161 : vector<8x128xf32>
    %cst_79 = arith.constant 1.000000e+00 : f32
    %163 = vector.broadcast %cst_79 : f32 to vector<8x128xf32>
    %164 = arith.addf %163, %162 : vector<8x128xf32>
    %165 = arith.divf %163, %164 : vector<8x128xf32>
    %166 = vector.extract_strided_slice %159 {offsets = [0, 128], sizes = [8, 128], strides = [1, 1]} : vector<8x512xf32> to vector<8x128xf32>
    %167 = arith.negf %166 : vector<8x128xf32>
    %168 = math.exp %167 : vector<8x128xf32>
    %cst_80 = arith.constant 1.000000e+00 : f32
    %169 = vector.broadcast %cst_80 : f32 to vector<8x128xf32>
    %170 = arith.addf %169, %168 : vector<8x128xf32>
    %171 = arith.divf %169, %170 : vector<8x128xf32>
    %172 = vector.extract_strided_slice %159 {offsets = [0, 256], sizes = [8, 128], strides = [1, 1]} : vector<8x512xf32> to vector<8x128xf32>
    %173 = math.tanh %172 : vector<8x128xf32>
    %174 = vector.extract_strided_slice %159 {offsets = [0, 384], sizes = [8, 128], strides = [1, 1]} : vector<8x512xf32> to vector<8x128xf32>
    %175 = arith.negf %174 : vector<8x128xf32>
    %176 = math.exp %175 : vector<8x128xf32>
    %cst_81 = arith.constant 1.000000e+00 : f32
    %177 = vector.broadcast %cst_81 : f32 to vector<8x128xf32>
    %178 = arith.addf %177, %176 : vector<8x128xf32>
    %179 = arith.divf %177, %178 : vector<8x128xf32>
    %180 = arith.mulf %171, %155 : vector<8x128xf32>
    %181 = arith.mulf %165, %173 : vector<8x128xf32>
    %182 = arith.addf %180, %181 : vector<8x128xf32>
    %183 = math.tanh %182 : vector<8x128xf32>
    %184 = arith.mulf %179, %183 : vector<8x128xf32>
    %c0_82 = arith.constant 0 : index
    %c0_83 = arith.constant 0 : index
    %185 = vector.load %arg8[%c0_82, %c0_83] : memref<8x128xf32, #tpu.memory_space<vmem>>, vector<8x128xf32>
    tpu.vector_store %arg8[%c0_82, %c0_83], %182 {strides = array<i32>} : memref<8x128xf32, #tpu.memory_space<vmem>>, vector<8x128xf32>,
    %c0_84 = arith.constant 0 : index
    %c0_85 = arith.constant 0 : index
    %186 = vector.load %arg7[%c0_84, %c0_85] : memref<8x128xf32, #tpu.memory_space<vmem>>, vector<8x128xf32>
    tpu.vector_store %arg7[%c0_84, %c0_85], %184 {strides = array<i32>} : memref<8x128xf32, #tpu.memory_space<vmem>>, vector<8x128xf32>,
    %c4 = arith.constant 4 : index
    %c0_86 = arith.constant 0 : index
    %c0_87 = arith.constant 0 : index
    %187 = vector.load %arg6[%c4, %c0_86, %c0_87] : memref<8x8x128xf32, #tpu.memory_space<vmem>>, vector<1x8x128xf32>
    %188 = vector.shape_cast %187 : vector<1x8x128xf32> to vector<8x128xf32>
    %189 = vector.shape_cast %184 : vector<8x128xf32> to vector<1x8x128xf32>
    tpu.vector_store %arg6[%c4, %c0_86, %c0_87], %189 {strides = array<i32>} : memref<8x8x128xf32, #tpu.memory_space<vmem>>, vector<1x8x128xf32>,
    %c0_88 = arith.constant 0 : index
    %c0_89 = arith.constant 0 : index
    %190 = vector.load %arg7[%c0_88, %c0_89] : memref<8x128xf32, #tpu.memory_space<vmem>>, vector<8x128xf32>
    %c0_90 = arith.constant 0 : index
    %c0_91 = arith.constant 0 : index
    %191 = vector.load %arg8[%c0_90, %c0_91] : memref<8x128xf32, #tpu.memory_space<vmem>>, vector<8x128xf32>
    %192 = vector.extract_strided_slice %9 {offsets = [40, 0], sizes = [8, 512], strides = [1, 1]} : vector<64x512xf32> to vector<8x512xf32>
    %c0_92 = arith.constant 0 : index
    %c0_93 = arith.constant 0 : index
    %193 = vector.load %arg4[%c0_92, %c0_93] : memref<128x512xf32, #tpu.memory_space<vmem>>, vector<128x512xf32>
    %cst_94 = arith.constant dense<0.000000e+00> : vector<8x512xf32>
    %194 = tpu.matmul %190, %193, %cst_94 {dimension_numbers = #tpu.dot_dimension_numbers<[1], [0], [0], [1], [0, 0, 1, 1], [], []>} : vector<8x128xf32>, vector<128x512xf32>, vector<8x512xf32> -> vector<8x512xf32>
    %195 = arith.addf %192, %194 : vector<8x512xf32>
    %196 = vector.extract_strided_slice %195 {offsets = [0, 0], sizes = [8, 128], strides = [1, 1]} : vector<8x512xf32> to vector<8x128xf32>
    %197 = arith.negf %196 : vector<8x128xf32>
    %198 = math.exp %197 : vector<8x128xf32>
    %cst_95 = arith.constant 1.000000e+00 : f32
    %199 = vector.broadcast %cst_95 : f32 to vector<8x128xf32>
    %200 = arith.addf %199, %198 : vector<8x128xf32>
    %201 = arith.divf %199, %200 : vector<8x128xf32>
    %202 = vector.extract_strided_slice %195 {offsets = [0, 128], sizes = [8, 128], strides = [1, 1]} : vector<8x512xf32> to vector<8x128xf32>
    %203 = arith.negf %202 : vector<8x128xf32>
    %204 = math.exp %203 : vector<8x128xf32>
    %cst_96 = arith.constant 1.000000e+00 : f32
    %205 = vector.broadcast %cst_96 : f32 to vector<8x128xf32>
    %206 = arith.addf %205, %204 : vector<8x128xf32>
    %207 = arith.divf %205, %206 : vector<8x128xf32>
    %208 = vector.extract_strided_slice %195 {offsets = [0, 256], sizes = [8, 128], strides = [1, 1]} : vector<8x512xf32> to vector<8x128xf32>
    %209 = math.tanh %208 : vector<8x128xf32>
    %210 = vector.extract_strided_slice %195 {offsets = [0, 384], sizes = [8, 128], strides = [1, 1]} : vector<8x512xf32> to vector<8x128xf32>
    %211 = arith.negf %210 : vector<8x128xf32>
    %212 = math.exp %211 : vector<8x128xf32>
    %cst_97 = arith.constant 1.000000e+00 : f32
    %213 = vector.broadcast %cst_97 : f32 to vector<8x128xf32>
    %214 = arith.addf %213, %212 : vector<8x128xf32>
    %215 = arith.divf %213, %214 : vector<8x128xf32>
    %216 = arith.mulf %207, %191 : vector<8x128xf32>
    %217 = arith.mulf %201, %209 : vector<8x128xf32>
    %218 = arith.addf %216, %217 : vector<8x128xf32>
    %219 = math.tanh %218 : vector<8x128xf32>
    %220 = arith.mulf %215, %219 : vector<8x128xf32>
    %c0_98 = arith.constant 0 : index
    %c0_99 = arith.constant 0 : index
    %221 = vector.load %arg8[%c0_98, %c0_99] : memref<8x128xf32, #tpu.memory_space<vmem>>, vector<8x128xf32>
    tpu.vector_store %arg8[%c0_98, %c0_99], %218 {strides = array<i32>} : memref<8x128xf32, #tpu.memory_space<vmem>>, vector<8x128xf32>,
    %c0_100 = arith.constant 0 : index
    %c0_101 = arith.constant 0 : index
    %222 = vector.load %arg7[%c0_100, %c0_101] : memref<8x128xf32, #tpu.memory_space<vmem>>, vector<8x128xf32>
    tpu.vector_store %arg7[%c0_100, %c0_101], %220 {strides = array<i32>} : memref<8x128xf32, #tpu.memory_space<vmem>>, vector<8x128xf32>,
    %c5 = arith.constant 5 : index
    %c0_102 = arith.constant 0 : index
    %c0_103 = arith.constant 0 : index
    %223 = vector.load %arg6[%c5, %c0_102, %c0_103] : memref<8x8x128xf32, #tpu.memory_space<vmem>>, vector<1x8x128xf32>
    %224 = vector.shape_cast %223 : vector<1x8x128xf32> to vector<8x128xf32>
    %225 = vector.shape_cast %220 : vector<8x128xf32> to vector<1x8x128xf32>
    tpu.vector_store %arg6[%c5, %c0_102, %c0_103], %225 {strides = array<i32>} : memref<8x8x128xf32, #tpu.memory_space<vmem>>, vector<1x8x128xf32>,
    %c0_104 = arith.constant 0 : index
    %c0_105 = arith.constant 0 : index
    %226 = vector.load %arg7[%c0_104, %c0_105] : memref<8x128xf32, #tpu.memory_space<vmem>>, vector<8x128xf32>
    %c0_106 = arith.constant 0 : index
    %c0_107 = arith.constant 0 : index
    %227 = vector.load %arg8[%c0_106, %c0_107] : memref<8x128xf32, #tpu.memory_space<vmem>>, vector<8x128xf32>
    %228 = vector.extract_strided_slice %9 {offsets = [48, 0], sizes = [8, 512], strides = [1, 1]} : vector<64x512xf32> to vector<8x512xf32>
    %c0_108 = arith.constant 0 : index
    %c0_109 = arith.constant 0 : index
    %229 = vector.load %arg4[%c0_108, %c0_109] : memref<128x512xf32, #tpu.memory_space<vmem>>, vector<128x512xf32>
    %cst_110 = arith.constant dense<0.000000e+00> : vector<8x512xf32>
    %230 = tpu.matmul %226, %229, %cst_110 {dimension_numbers = #tpu.dot_dimension_numbers<[1], [0], [0], [1], [0, 0, 1, 1], [], []>} : vector<8x128xf32>, vector<128x512xf32>, vector<8x512xf32> -> vector<8x512xf32>
    %231 = arith.addf %228, %230 : vector<8x512xf32>
    %232 = vector.extract_strided_slice %231 {offsets = [0, 0], sizes = [8, 128], strides = [1, 1]} : vector<8x512xf32> to vector<8x128xf32>
    %233 = arith.negf %232 : vector<8x128xf32>
    %234 = math.exp %233 : vector<8x128xf32>
    %cst_111 = arith.constant 1.000000e+00 : f32
    %235 = vector.broadcast %cst_111 : f32 to vector<8x128xf32>
    %236 = arith.addf %235, %234 : vector<8x128xf32>
    %237 = arith.divf %235, %236 : vector<8x128xf32>
    %238 = vector.extract_strided_slice %231 {offsets = [0, 128], sizes = [8, 128], strides = [1, 1]} : vector<8x512xf32> to vector<8x128xf32>
    %239 = arith.negf %238 : vector<8x128xf32>
    %240 = math.exp %239 : vector<8x128xf32>
    %cst_112 = arith.constant 1.000000e+00 : f32
    %241 = vector.broadcast %cst_112 : f32 to vector<8x128xf32>
    %242 = arith.addf %241, %240 : vector<8x128xf32>
    %243 = arith.divf %241, %242 : vector<8x128xf32>
    %244 = vector.extract_strided_slice %231 {offsets = [0, 256], sizes = [8, 128], strides = [1, 1]} : vector<8x512xf32> to vector<8x128xf32>
    %245 = math.tanh %244 : vector<8x128xf32>
    %246 = vector.extract_strided_slice %231 {offsets = [0, 384], sizes = [8, 128], strides = [1, 1]} : vector<8x512xf32> to vector<8x128xf32>
    %247 = arith.negf %246 : vector<8x128xf32>
    %248 = math.exp %247 : vector<8x128xf32>
    %cst_113 = arith.constant 1.000000e+00 : f32
    %249 = vector.broadcast %cst_113 : f32 to vector<8x128xf32>
    %250 = arith.addf %249, %248 : vector<8x128xf32>
    %251 = arith.divf %249, %250 : vector<8x128xf32>
    %252 = arith.mulf %243, %227 : vector<8x128xf32>
    %253 = arith.mulf %237, %245 : vector<8x128xf32>
    %254 = arith.addf %252, %253 : vector<8x128xf32>
    %255 = math.tanh %254 : vector<8x128xf32>
    %256 = arith.mulf %251, %255 : vector<8x128xf32>
    %c0_114 = arith.constant 0 : index
    %c0_115 = arith.constant 0 : index
    %257 = vector.load %arg8[%c0_114, %c0_115] : memref<8x128xf32, #tpu.memory_space<vmem>>, vector<8x128xf32>
    tpu.vector_store %arg8[%c0_114, %c0_115], %254 {strides = array<i32>} : memref<8x128xf32, #tpu.memory_space<vmem>>, vector<8x128xf32>,
    %c0_116 = arith.constant 0 : index
    %c0_117 = arith.constant 0 : index
    %258 = vector.load %arg7[%c0_116, %c0_117] : memref<8x128xf32, #tpu.memory_space<vmem>>, vector<8x128xf32>
    tpu.vector_store %arg7[%c0_116, %c0_117], %256 {strides = array<i32>} : memref<8x128xf32, #tpu.memory_space<vmem>>, vector<8x128xf32>,
    %c6 = arith.constant 6 : index
    %c0_118 = arith.constant 0 : index
    %c0_119 = arith.constant 0 : index
    %259 = vector.load %arg6[%c6, %c0_118, %c0_119] : memref<8x8x128xf32, #tpu.memory_space<vmem>>, vector<1x8x128xf32>
    %260 = vector.shape_cast %259 : vector<1x8x128xf32> to vector<8x128xf32>
    %261 = vector.shape_cast %256 : vector<8x128xf32> to vector<1x8x128xf32>
    tpu.vector_store %arg6[%c6, %c0_118, %c0_119], %261 {strides = array<i32>} : memref<8x8x128xf32, #tpu.memory_space<vmem>>, vector<1x8x128xf32>,
    %c0_120 = arith.constant 0 : index
    %c0_121 = arith.constant 0 : index
    %262 = vector.load %arg7[%c0_120, %c0_121] : memref<8x128xf32, #tpu.memory_space<vmem>>, vector<8x128xf32>
    %c0_122 = arith.constant 0 : index
    %c0_123 = arith.constant 0 : index
    %263 = vector.load %arg8[%c0_122, %c0_123] : memref<8x128xf32, #tpu.memory_space<vmem>>, vector<8x128xf32>
    %264 = vector.extract_strided_slice %9 {offsets = [56, 0], sizes = [8, 512], strides = [1, 1]} : vector<64x512xf32> to vector<8x512xf32>
    %c0_124 = arith.constant 0 : index
    %c0_125 = arith.constant 0 : index
    %265 = vector.load %arg4[%c0_124, %c0_125] : memref<128x512xf32, #tpu.memory_space<vmem>>, vector<128x512xf32>
    %cst_126 = arith.constant dense<0.000000e+00> : vector<8x512xf32>
    %266 = tpu.matmul %262, %265, %cst_126 {dimension_numbers = #tpu.dot_dimension_numbers<[1], [0], [0], [1], [0, 0, 1, 1], [], []>} : vector<8x128xf32>, vector<128x512xf32>, vector<8x512xf32> -> vector<8x512xf32>
    %267 = arith.addf %264, %266 : vector<8x512xf32>
    %268 = vector.extract_strided_slice %267 {offsets = [0, 0], sizes = [8, 128], strides = [1, 1]} : vector<8x512xf32> to vector<8x128xf32>
    %269 = arith.negf %268 : vector<8x128xf32>
    %270 = math.exp %269 : vector<8x128xf32>
    %cst_127 = arith.constant 1.000000e+00 : f32
    %271 = vector.broadcast %cst_127 : f32 to vector<8x128xf32>
    %272 = arith.addf %271, %270 : vector<8x128xf32>
    %273 = arith.divf %271, %272 : vector<8x128xf32>
    %274 = vector.extract_strided_slice %267 {offsets = [0, 128], sizes = [8, 128], strides = [1, 1]} : vector<8x512xf32> to vector<8x128xf32>
    %275 = arith.negf %274 : vector<8x128xf32>
    %276 = math.exp %275 : vector<8x128xf32>
    %cst_128 = arith.constant 1.000000e+00 : f32
    %277 = vector.broadcast %cst_128 : f32 to vector<8x128xf32>
    %278 = arith.addf %277, %276 : vector<8x128xf32>
    %279 = arith.divf %277, %278 : vector<8x128xf32>
    %280 = vector.extract_strided_slice %267 {offsets = [0, 256], sizes = [8, 128], strides = [1, 1]} : vector<8x512xf32> to vector<8x128xf32>
    %281 = math.tanh %280 : vector<8x128xf32>
    %282 = vector.extract_strided_slice %267 {offsets = [0, 384], sizes = [8, 128], strides = [1, 1]} : vector<8x512xf32> to vector<8x128xf32>
    %283 = arith.negf %282 : vector<8x128xf32>
    %284 = math.exp %283 : vector<8x128xf32>
    %cst_129 = arith.constant 1.000000e+00 : f32
    %285 = vector.broadcast %cst_129 : f32 to vector<8x128xf32>
    %286 = arith.addf %285, %284 : vector<8x128xf32>
    %287 = arith.divf %285, %286 : vector<8x128xf32>
    %288 = arith.mulf %279, %263 : vector<8x128xf32>
    %289 = arith.mulf %273, %281 : vector<8x128xf32>
    %290 = arith.addf %288, %289 : vector<8x128xf32>
    %291 = math.tanh %290 : vector<8x128xf32>
    %292 = arith.mulf %287, %291 : vector<8x128xf32>
    %c0_130 = arith.constant 0 : index
    %c0_131 = arith.constant 0 : index
    %293 = vector.load %arg8[%c0_130, %c0_131] : memref<8x128xf32, #tpu.memory_space<vmem>>, vector<8x128xf32>
    tpu.vector_store %arg8[%c0_130, %c0_131], %290 {strides = array<i32>} : memref<8x128xf32, #tpu.memory_space<vmem>>, vector<8x128xf32>,
    %c0_132 = arith.constant 0 : index
    %c0_133 = arith.constant 0 : index
    %294 = vector.load %arg7[%c0_132, %c0_133] : memref<8x128xf32, #tpu.memory_space<vmem>>, vector<8x128xf32>
    tpu.vector_store %arg7[%c0_132, %c0_133], %292 {strides = array<i32>} : memref<8x128xf32, #tpu.memory_space<vmem>>, vector<8x128xf32>,
    %c7 = arith.constant 7 : index
    %c0_134 = arith.constant 0 : index
    %c0_135 = arith.constant 0 : index
    %295 = vector.load %arg6[%c7, %c0_134, %c0_135] : memref<8x8x128xf32, #tpu.memory_space<vmem>>, vector<1x8x128xf32>
    %296 = vector.shape_cast %295 : vector<1x8x128xf32> to vector<8x128xf32>
    %297 = vector.shape_cast %292 : vector<8x128xf32> to vector<1x8x128xf32>
    tpu.vector_store %arg6[%c7, %c0_134, %c0_135], %297 {strides = array<i32>} : memref<8x8x128xf32, #tpu.memory_space<vmem>>, vector<1x8x128xf32>,
    return
  }
  func.func @transform_0(%arg0: i32, %arg1: i32) -> (i32, i32, i32) {
    %c0_i32 = arith.constant 0 : i32
    %c0_i32_0 = arith.constant 0 : i32
    return %arg1, %arg0, %c0_i32 : i32, i32, i32
  }
  func.func @transform_1(%arg0: i32, %arg1: i32) -> (i32, i32) {
    %c0_i32 = arith.constant 0 : i32
    %c0_i32_0 = arith.constant 0 : i32
    %c0_i32_1 = arith.constant 0 : i32
    return %c0_i32, %c0_i32_0 : i32, i32
  }
  func.func @transform_2(%arg0: i32, %arg1: i32) -> (i32, i32) {
    %c0_i32 = arith.constant 0 : i32
    %c0_i32_0 = arith.constant 0 : i32
    %c0_i32_1 = arith.constant 0 : i32
    return %c0_i32, %c0_i32_0 : i32, i32
  }
  func.func @transform_3(%arg0: i32, %arg1: i32) -> (i32, i32) {
    %c0_i32 = arith.constant 0 : i32
    %c0_i32_0 = arith.constant 0 : i32
    %c0_i32_1 = arith.constant 0 : i32
    return %c0_i32, %c0_i32_0 : i32, i32
  }
  func.func @transform_4(%arg0: i32, %arg1: i32) -> (i32, i32, i32) {
    %c0_i32 = arith.constant 0 : i32
    %c0_i32_0 = arith.constant 0 : i32
    return %arg1, %arg0, %c0_i32 : i32, i32, i32
  }
}

</mosaic_0001>

<llo_original>
// kernel: bonito_lstm.1
$region0: #{bonito_lstm.1}
  #allocation0 [shape = 'u32[]', space=smem, size = 0x4, offset = 0x4, fixed_abs, tag = 'smem constant byte address 0x4 - core index']
  #allocation1 [shape = 'u32[144,128]{1,0:T(1,128)}', space=vmem, size = 0x12000, scoped, tag = 'internal scratch']
  #allocation2 [shape = 'f32[8,128]{1,0:T(8,128)}', space=vmem, size = 0x1000, scoped, tag = 'scratch operand']
  #allocation3 [shape = 'f32[8,128]{1,0:T(8,128)}', space=vmem, size = 0x1000, scoped, tag = 'scratch operand']
  %s0 = inlined_call_operand.vmem [shape: f32[16,16,16], index: 0, kind: input, shape index: {}]
  %s1 = inlined_call_operand.vmem [shape: f32[16,512], index: 1, kind: input, shape index: {}]
  %s2 = inlined_call_operand.vmem [shape: f32[128,512], index: 2, kind: input, shape index: {}]
  %s3 = inlined_call_operand.vmem [shape: f32[1,512], index: 3, kind: input, shape index: {}]
  %s4 = inlined_call_operand.hbm [shape: f32[16,16,128], index: 4, kind: output, shape index: {}]
  %s5 = sld [smem:[#allocation0]]
  $region91: #{bonito_lstm.1} parent=0
    _
  %s7 = ssub.s32 1, %s5
  %s8 = scalar_select 0, %s7, %s5
  $region1: #{bonito_lstm.1} parent=0
    #allocation4 [shape = 'u8[65536]{0}', space=vmem, size = 0x10000, scoped, tag = 'input window, operand 0']
    #allocation5 [shape = 'u8[65536]{0}', space=vmem, size = 0x10000, scoped, tag = 'output window, operand 0']
    #allocation6 [shape = 's32[2]{0}', space=sflag, size = 0x8, scoped, tag = 'scoped memory for bonito_lstm.1']
    %9 = vsyncpa [#allocation6], 0
    %s10 = scalar_lea.sflag [#allocation6], 1
    %11 = vsyncpa %s10, 0
    loop: start=0, step=1, limit=6
    $region2: #{bonito_lstm.1} parent=1 // loop_pre_header
      _
    $region3: #{bonito_lstm.1} parent=1 // loop_header
      %s13 = sphi 0, %s17
      %p14 = scmp.ge.s32.totalorder %s13, 6
      %s20 = sphi 0, %s32
      %s21 = sphi 0, %s28
      %s22 = sphi 0, %s20
      %s23 = sphi 0, %s21
      %s24 = sphi 0, %s22
      %s25 = sphi 0, %s23
      %s37 = sphi 0, %s39
      %s40 = sphi 0, %s37
      %s41 = sphi 0, %s40
      %s57 = sphi 0, %s41
      %s61 = sphi 0, %s61
      %s63 = sphi 0, %s61
      %s64 = sphi 0, %s63
      %s78 = sphi 0, %s64
      %s82 = sphi 0, %s82
      %s84 = sphi 0, %s82
      %s85 = sphi 0, %s84
      %s99 = sphi 0, %s85
      %s103 = sphi 0, %s103
      %s105 = sphi 0, %s103
      %s106 = sphi 0, %s105
      %s120 = sphi 0, %s106
      %s128 = sphi 0, %s130
      %s131 = sphi 0, %s128
      %s132 = sphi 0, %s131
      %s148 = sphi 0, %s132
    $region4: #{bonito_lstm.1} parent=1 // loop_header_branch
      %16 = sbr.rel (%p14) target = $region8
    $region5: #{bonito_lstm.1} parent=1 // loop_body
      %s18 = ssub.s32 %s13, 1
      %s19 = ssub.s32 %s13, 2
      %s26 = sadd.s32 1, %s21
      %p27 = scmp.ge.s32.totalorder %s26, 2
      %s28 = scalar_select %p27, 0, %s26
      %s29 = sadd.s32 1, %s20
      %s30 = scalar_select %p27, %s29, %s20
      %p31 = scmp.ge.s32.totalorder %s30, 2
      %s32 = scalar_select %p31, 0, %s30
      %s33 = ssub.s32 %s21, %s28
      %s34 = ssub.s32 %s20, %s32
      %s35 = sor.u32 %s33, %s34
      %p36 = scmp.eq.s32.totalorder %s35, 0
      %s38 = sadd.s32 %s37, 1
      %s39 = scalar_select %p36, %s37, %s38
      %p42 = pneg %p36
      %p43 = scmp.eq.s32.totalorder %s13, 3
      %p44 = por %p42, %p43
      %p45 = scmp.ne.s32.totalorder %s37, %s40
      %p46 = scmp.eq.s32.totalorder %s13, 0
      %p47 = por %p45, %p46
      %p48 = scmp.ne.s32.totalorder %s37, %s40
      %p49 = scmp.eq.s32.totalorder %s18, 3
      %p50 = por %p48, %p49
      %p51 = scmp.ne.s32.totalorder %s40, %s41
      %p52 = scmp.eq.s32.totalorder %s18, 0
      %p53 = por %p51, %p52
      %p54 = scmp.ne.s32.totalorder %s40, %s41
      %p55 = scmp.eq.s32.totalorder %s19, 3
      %p56 = por %p54, %p55
      %p58 = scmp.ne.s32.totalorder %s41, %s57
      %p59 = scmp.eq.s32.totalorder %s19, 0
      %p60 = por %p58, %p59
      %s62 = sadd.s32 %s61, 1
      %p65 = scmp.eq.s32.totalorder %s13, 3
      %p66 = scmp.ne.s32.totalorder %s61, %s63
      %p67 = scmp.eq.s32.totalorder %s13, 0
      %p68 = por %p66, %p67
      %p69 = scmp.ne.s32.totalorder %s61, %s63
      %p70 = scmp.eq.s32.totalorder %s18, 3
      %p71 = por %p69, %p70
      %p72 = scmp.ne.s32.totalorder %s63, %s64
      %p73 = scmp.eq.s32.totalorder %s18, 0
      %p74 = por %p72, %p73
      %p75 = scmp.ne.s32.totalorder %s63, %s64
      %p76 = scmp.eq.s32.totalorder %s19, 3
      %p77 = por %p75, %p76
      %p79 = scmp.ne.s32.totalorder %s64, %s78
      %p80 = scmp.eq.s32.totalorder %s19, 0
      %p81 = por %p79, %p80
      %s83 = sadd.s32 %s82, 1
      %p86 = scmp.eq.s32.totalorder %s13, 3
      %p87 = scmp.ne.s32.totalorder %s82, %s84
      %p88 = scmp.eq.s32.totalorder %s13, 0
      %p89 = por %p87, %p88
      %p90 = scmp.ne.s32.totalorder %s82, %s84
      %p91 = scmp.eq.s32.totalorder %s18, 3
      %p92 = por %p90, %p91
      %p93 = scmp.ne.s32.totalorder %s84, %s85
      %p94 = scmp.eq.s32.totalorder %s18, 0
      %p95 = por %p93, %p94
      %p96 = scmp.ne.s32.totalorder %s84, %s85
      %p97 = scmp.eq.s32.totalorder %s19, 3
      %p98 = por %p96, %p97
      %p100 = scmp.ne.s32.totalorder %s85, %s99
      %p101 = scmp.eq.s32.totalorder %s19, 0
      %p102 = por %p100, %p101
      %s104 = sadd.s32 %s103, 1
      %p107 = scmp.eq.s32.totalorder %s13, 3
      %p108 = scmp.ne.s32.totalorder %s103, %s105
      %p109 = scmp.eq.s32.totalorder %s13, 0
      %p110 = por %p108, %p109
      %p111 = scmp.ne.s32.totalorder %s103, %s105
      %p112 = scmp.eq.s32.totalorder %s18, 3
      %p113 = por %p111, %p112
      %p114 = scmp.ne.s32.totalorder %s105, %s106
      %p115 = scmp.eq.s32.totalorder %s18, 0
      %p116 = por %p114, %p115
      %p117 = scmp.ne.s32.totalorder %s105, %s106
      %p118 = scmp.eq.s32.totalorder %s19, 3
      %p119 = por %p117, %p118
      %p121 = scmp.ne.s32.totalorder %s106, %s120
      %p122 = scmp.eq.s32.totalorder %s19, 0
      %p123 = por %p121, %p122
      %s124 = ssub.s32 %s21, %s28
      %s125 = ssub.s32 %s20, %s32
      %s126 = sor.u32 %s124, %s125
      %p127 = scmp.eq.s32.totalorder %s126, 0
      %s129 = sadd.s32 %s128, 1
      %s130 = scalar_select %p127, %s128, %s129
      %p133 = pneg %p127
      %p134 = scmp.eq.s32.totalorder %s13, 3
      %p135 = por %p133, %p134
      %p136 = scmp.ne.s32.totalorder %s128, %s131
      %p137 = scmp.eq.s32.totalorder %s13, 0
      %p138 = por %p136, %p137
      %p139 = scmp.ne.s32.totalorder %s128, %s131
      %p140 = scmp.eq.s32.totalorder %s18, 3
      %p141 = por %p139, %p140
      %p142 = scmp.ne.s32.totalorder %s131, %s132
      %p143 = scmp.eq.s32.totalorder %s18, 0
      %p144 = por %p142, %p143
      %p145 = scmp.ne.s32.totalorder %s131, %s132
      %p146 = scmp.eq.s32.totalorder %s19, 3
      %p147 = por %p145, %p146
      %p149 = scmp.ne.s32.totalorder %s132, %s148
      %p150 = scmp.eq.s32.totalorder %s19, 0
      %p151 = por %p149, %p150
      %p152 = scmp.le.s32.totalorder 1, %s13
      %p153 = scmp.lt.s32.totalorder %s13, 5
      %p154 = pnand %p152, %p153
      %p155 = pneg %p154
      // Predicated region
      $region9: #{bonito_lstm.1} parent=5 // pred_check
        _
      $region10: #{bonito_lstm.1} parent=5 // pred_check_branch
        %157 = sbr.rel (%p154) target = $region12
      $region11: #{bonito_lstm.1} parent=5 // pred_region
        %s158 = ssub.s32 %s13, 1
        // Predicated region
        $region13: #{bonito_lstm.1} parent=11 // pred_check
          %p159 = pneg %p74
        $region14: #{bonito_lstm.1} parent=11 // pred_check_branch
          %161 = sbr.rel (%p159) target = $region16
        $region15: #{bonito_lstm.1} parent=11 // pred_region
          _
        $region16: #{bonito_lstm.1} parent=11 // pred_fallthru
          _
        // Predicated region
        $region17: #{bonito_lstm.1} parent=11 // pred_check
          %p162 = pneg %p95
        $region18: #{bonito_lstm.1} parent=11 // pred_check_branch
          %164 = sbr.rel (%p162) target = $region20
        $region19: #{bonito_lstm.1} parent=11 // pred_region
          _
        $region20: #{bonito_lstm.1} parent=11 // pred_fallthru
          _
        // Predicated region
        $region21: #{bonito_lstm.1} parent=11 // pred_check
          %p165 = pneg %p116
        $region22: #{bonito_lstm.1} parent=11 // pred_check_branch
          %167 = sbr.rel (%p165) target = $region24
        $region23: #{bonito_lstm.1} parent=11 // pred_region
          _
        $region24: #{bonito_lstm.1} parent=11 // pred_fallthru
          _
      $region12: #{bonito_lstm.1} parent=5 // pred_fallthru
        _
      %p168 = scmp.lt.s32.totalorder %s13, 4
      // Predicated region
      $region25: #{bonito_lstm.1} parent=5 // pred_check
        %p169 = pneg %p168
      $region26: #{bonito_lstm.1} parent=5 // pred_check_branch
        %171 = sbr.rel (%p169) target = $region28
      $region27: #{bonito_lstm.1} parent=5 // pred_region
        // Predicated region
        $region29: #{bonito_lstm.1} parent=27 // pred_check
          %p172 = pneg %p47
        $region30: #{bonito_lstm.1} parent=27 // pred_check_branch
          %174 = sbr.rel (%p172) target = $region32
        $region31: #{bonito_lstm.1} parent=27 // pred_region
          %s175 = sand.u32 %s37, 1
          %s176 = sand.u32 %s37, 1
          %s177 = smul.addr %s176, 64
          %s178 = scalar_lea.vmem [#allocation4], %s177
          %s179 = smul.u32 8, %s21
          %s180 = smul.addr %s179, 2
          %s181 = sadd.s32 %s20, %s180
          %s182 = smul.addr %s181, 8
          %s183 = scalar_lea.vmem %s0, %s182
          // Predicated region
          $region33: #{bonito_lstm.1} parent=31 // pred_check
            _
          $region34: #{bonito_lstm.1} parent=31 // pred_check_branch
            %185 = sbr.rel (0) target = $region36
          $region35: #{bonito_lstm.1} parent=31 // pred_region
            // Predicated region
            $region37: #{bonito_lstm.1} parent=35 // pred_check
              _
            $region38: #{bonito_lstm.1} parent=35 // pred_check_branch
              %187 = sbr.rel (0) target = $region40
            $region39: #{bonito_lstm.1} parent=35 // pred_region
              // Predicated region
              $region52: #{bonito_lstm.1} parent=39 // pred_check
                _
              $region53: #{bonito_lstm.1} parent=39 // pred_check_branch
                %217 = sbr.rel (0) target = $region55
              $region54: #{bonito_lstm.1} parent=39 // pred_region
                loop: start=0, step=1, limit=1
                $region56: #{bonito_lstm.1} parent=54 // loop_pre_header
                  _
                $region57: #{bonito_lstm.1} parent=54 // loop_header
                  %s219 = sphi 0, %s223
                  %p220 = scmp.ge.s32.totalorder %s219, 1
                  %s224 = sphi %s183, %s183
                  %s225 = sphi %s178, %s178
                $region58: #{bonito_lstm.1} parent=54 // loop_header_branch
                  %222 = sbr.rel (%p220) target = $region62
                $region59: #{bonito_lstm.1} parent=54 // loop_body
                  %v226 = vld [vmem:[%s224] sm:$0xff]
                  %227 = vst [vmem:[%s225] sm:$0xff] %v226
                  %v228 = vld [vmem:[%s224 + $0x10] sm:$0xff]
                  %229 = vst [vmem:[%s225 + $0x8] sm:$0xff] %v228
                  %v230 = vld [vmem:[%s224 + $0x20] sm:$0xff]
                  %231 = vst [vmem:[%s225 + $0x10] sm:$0xff] %v230
                  %v232 = vld [vmem:[%s224 + $0x30] sm:$0xff]
                  %233 = vst [vmem:[%s225 + $0x18] sm:$0xff] %v232
                  %v234 = vld [vmem:[%s224 + $0x40] sm:$0xff]
                  %235 = vst [vmem:[%s225 + $0x20] sm:$0xff] %v234
                  %v236 = vld [vmem:[%s224 + $0x50] sm:$0xff]
                  %237 = vst [vmem:[%s225 + $0x28] sm:$0xff] %v236
                  %v238 = vld [vmem:[%s224 + $0x60] sm:$0xff]
                  %239 = vst [vmem:[%s225 + $0x30] sm:$0xff] %v238
                  %v240 = vld [vmem:[%s224 + $0x70] sm:$0xff]
                  %241 = vst [vmem:[%s225 + $0x38] sm:$0xff] %v240
                $region60: #{bonito_lstm.1} parent=54 // loop_footer
                  %s223 = sadd.s32 1, %s219
                $region61: #{bonito_lstm.1} parent=54 // loop_footer_branch
                  %218 = sbr.rel target = $region57
                $region62: #{bonito_lstm.1} parent=54 // loop_exit
                  _
              $region55: #{bonito_lstm.1} parent=39 // pred_fallthru
                _
              // Predicated region
              $region63: #{bonito_lstm.1} parent=39 // pred_check
                _
              $region64: #{bonito_lstm.1} parent=39 // pred_check_branch
                %243 = sbr.rel target = $region66
              $region65: #{bonito_lstm.1} parent=39 // pred_region
                _
              $region66: #{bonito_lstm.1} parent=39 // pred_fallthru
                _
            $region40: #{bonito_lstm.1} parent=35 // pred_fallthru
              _
            // Predicated region
            $region41: #{bonito_lstm.1} parent=35 // pred_check
              _
            $region42: #{bonito_lstm.1} parent=35 // pred_check_branch
              %189 = sbr.rel target = $region44
            $region43: #{bonito_lstm.1} parent=35 // pred_region
              %s191 = ssub.s32 256, 1
              loop: start=0, step=1, limit=1
              $region45: #{bonito_lstm.1} parent=43 // loop_pre_header
                _
              $region46: #{bonito_lstm.1} parent=43 // loop_header
                %s193 = sphi 0, %s197
                %p194 = scmp.ge.s32.totalorder %s193, 1
                %s198 = sphi %s183, %s183
                %s199 = sphi %s178, %s178
              $region47: #{bonito_lstm.1} parent=43 // loop_header_branch
                %196 = sbr.rel (%p194) target = $region51
              $region48: #{bonito_lstm.1} parent=43 // loop_body
                %v200 = vld [vmem:[%s198] sm:%s191]
                %201 = vst [vmem:[%s199] sm:%s191] %v200
                %v202 = vld [vmem:[%s198 + $0x10] sm:%s191]
                %203 = vst [vmem:[%s199 + $0x8] sm:%s191] %v202
                %v204 = vld [vmem:[%s198 + $0x20] sm:%s191]
                %205 = vst [vmem:[%s199 + $0x10] sm:%s191] %v204
                %v206 = vld [vmem:[%s198 + $0x30] sm:%s191]
                %207 = vst [vmem:[%s199 + $0x18] sm:%s191] %v206
                %v208 = vld [vmem:[%s198 + $0x40] sm:%s191]
                %209 = vst [vmem:[%s199 + $0x20] sm:%s191] %v208
                %v210 = vld [vmem:[%s198 + $0x50] sm:%s191]
                %211 = vst [vmem:[%s199 + $0x28] sm:%s191] %v210
                %v212 = vld [vmem:[%s198 + $0x60] sm:%s191]
                %213 = vst [vmem:[%s199 + $0x30] sm:%s191] %v212
                %v214 = vld [vmem:[%s198 + $0x70] sm:%s191]
                %215 = vst [vmem:[%s199 + $0x38] sm:%s191] %v214
              $region49: #{bonito_lstm.1} parent=43 // loop_footer
                %s197 = sadd.s32 1, %s193
              $region50: #{bonito_lstm.1} parent=43 // loop_footer_branch
                %192 = sbr.rel target = $region46
              $region51: #{bonito_lstm.1} parent=43 // loop_exit
                _
            $region44: #{bonito_lstm.1} parent=35 // pred_fallthru
              _
          $region36: #{bonito_lstm.1} parent=31 // pred_fallthru
            _
          %244 = vnop
        $region32: #{bonito_lstm.1} parent=27 // pred_fallthru
          _
      $region28: #{bonito_lstm.1} parent=5 // pred_fallthru
        _
      %p245 = scmp.le.s32.totalorder 1, %s13
      %p246 = scmp.lt.s32.totalorder %s13, 5
      %p247 = pnand %p245, %p246
      %p248 = pneg %p247
      // Predicated region
      $region67: #{bonito_lstm.1} parent=5 // pred_check
        _
      $region68: #{bonito_lstm.1} parent=5 // pred_check_branch
        %250 = sbr.rel (%p247) target = $region70
      $region69: #{bonito_lstm.1} parent=5 // pred_region
        %s251 = ssub.s32 %s13, 1
        %s252 = sand.u32 %s40, 1
        %s253 = sand.u32 %s40, 1
        %s254 = smul.addr %s253, 64
        %s255 = scalar_lea.vmem [#allocation4], %s254
        // Predicated region
        $region71: #{bonito_lstm.1} parent=69 // pred_check
          %p256 = pneg %p53
        $region72: #{bonito_lstm.1} parent=69 // pred_check_branch
          %258 = sbr.rel (%p256) target = $region74
        $region73: #{bonito_lstm.1} parent=69 // pred_region
          _
        $region74: #{bonito_lstm.1} parent=69 // pred_fallthru
          _
        %s259 = sand.u32 %s40, 1
        %s260 = sand.u32 %s40, 1
        %s261 = smul.addr %s260, 64
        %s262 = scalar_lea.vmem [#allocation4], %s261
        %p263 = pneg %p53
        %p264 = pneg %p50
        %p265 = pneg %p74
        %p266 = pneg %p71
        %p267 = pneg %p95
        %p268 = pneg %p92
        %p269 = pneg %p116
        %p270 = pneg %p113
        %p271 = pneg %p144
        %p272 = pneg %p141
        %s273 = sand.u32 %s131, 1
        %s274 = scalar_lea.sflag [#allocation6], %s273
        %s275 = sand.u32 %s131, 1
        %s276 = smul.addr %s275, 64
        %s277 = scalar_lea.vmem [#allocation5], %s276
        %s278 = smul.u32 8, %s23
        %s279 = smul.u32 8, %s23
        %p280 = scmp.eq.s32.totalorder %s23, 0
        // Predicated region
        $region75: #{bonito_lstm.1} parent=69 // pred_check
          %p281 = pneg %p280
        $region76: #{bonito_lstm.1} parent=69 // pred_check_branch
          %283 = sbr.rel (%p281) target = $region78
        $region77: #{bonito_lstm.1} parent=69 // pred_region
          %284 = vst [vmem:[#allocation2] sm:$0xff] 0.0
          %285 = vst [vmem:[#allocation3] sm:$0xff] 0.0
        $region78: #{bonito_lstm.1} parent=69 // pred_fallthru
          _
        %v286 = vld [vmem:[%s255] sm:$0xff]
        %v287 = vld [vmem:[%s255 + $0x8] sm:$0xff]
        %v288 = vld [vmem:[%s255 + $0x10] sm:$0xff]
        %v289 = vld [vmem:[%s255 + $0x18] sm:$0xff]
        %v290 = vld [vmem:[%s255 + $0x20] sm:$0xff]
        %v291 = vld [vmem:[%s255 + $0x28] sm:$0xff]
        %v292 = vld [vmem:[%s255 + $0x30] sm:$0xff]
        %v293 = vld [vmem:[%s255 + $0x38] sm:$0xff]
        %v294 = vld [vmem:[%s1] sm:$0xff]
        %v295 = vld [vmem:[%s1 + $0x8] sm:$0xff]
        %v296 = vld [vmem:[%s1 + $0x10] sm:$0xff]
        %v297 = vld [vmem:[%s1 + $0x18] sm:$0xff]
        %v298 = vld [vmem:[%s1 + $0x20] sm:$0xff]
        %v299 = vld [vmem:[%s1 + $0x28] sm:$0xff]
        %v300 = vld [vmem:[%s1 + $0x30] sm:$0xff]
        %v301 = vld [vmem:[%s1 + $0x38] sm:$0xff]
        %v302 = vld [vmem:[%s3] sm:$0xf]
        %v304 = vlaneseq
        %v305 = vshrl.u32 %v304, 7
        %v306 = vsub.s32 0, %v305
        %v307 = vrot.slane %v302, %v306
        %v308 = vlaneseq
        %v309 = vshrl.u32 %v308, 7
        %v310 = vsub.s32 1, %v309
        %v311 = vrot.slane %v302, %v310
        %v312 = vlaneseq
        %v313 = vshrl.u32 %v312, 7
        %v314 = vsub.s32 2, %v313
        %v315 = vrot.slane %v302, %v314
        %v316 = vlaneseq
        %v317 = vshrl.u32 %v316, 7
        %v318 = vsub.s32 3, %v317
        %v319 = vrot.slane %v302, %v318
        %vm324 = vcmask 130048
        %v326 = vsel %vm324, %v286, 0
        %v329 = vsel %vm324, %v287, 0
        %v332 = vsel %vm324, %v288, 0
        %v335 = vsel %vm324, %v289, 0
        %v338 = vsel %vm324, %v290, 0
        %v341 = vsel %vm324, %v291, 0
        %v344 = vsel %vm324, %v292, 0
        %v347 = vsel %vm324, %v293, 0
        %349 = vmatprep.subr.mxu0 0.0
        %350 = vmatpush1.msra.mxu0 0.0
        %351 = vmatprep.subr.mxu0 0.0
        %352 = vmatpush1.msra.mxu0 0.0
        %353 = vmatprep.subr.mxu0 0.0
        %354 = vmatpush1.msra.mxu0 0.0
        %355 = vmatprep.subr.mxu0 0.0
        %356 = vmatpush1.msra.mxu0 0.0
        %357 = vmatprep.subr.mxu0 0.0
        %358 = vmatpush1.msra.mxu0 0.0
        %359 = vmatprep.subr.mxu0 0.0
        %360 = vmatpush1.msra.mxu0 0.0
        %361 = vmatprep.subr.mxu0 0.0
        %362 = vmatpush1.msra.mxu0 0.0
        %363 = vmatprep.subr.mxu0 0.0
        %364 = vmatpush1.msra.mxu0 0.0
        %365 = vmatprep.subr.mxu0 0.0
        %366 = vmatpush1.msra.mxu0 0.0
        %367 = vmatprep.subr.mxu0 0.0
        %368 = vmatpush1.msra.mxu0 0.0
        %369 = vmatprep.subr.mxu0 0.0
        %370 = vmatpush1.msra.mxu0 0.0
        %371 = vmatprep.subr.mxu0 0.0
        %372 = vmatpush1.msra.mxu0 0.0
        %373 = vmatprep.subr.mxu0 0.0
        %374 = vmatpush1.msra.mxu0 0.0
        %375 = vmatprep.subr.mxu0 0.0
        %376 = vmatpush1.msra.mxu0 0.0
        %377 = vmatprep.subr.mxu0 %v299
        %378 = vmatpush1.msra.mxu0 %v298
        %379 = vmatprep.subr.mxu0 %v295
        %380 = vmatpush1.msra.mxu0 %v294
        %381 = vmatprep.subr.mxu0 0.0
        %382 = vmatpush2.msra.mxu0 0.0
        %383 = vmatprep.subr.mxu0 0.0
        %384 = vmatpush2.msra.mxu0 0.0
        %385 = vmatprep.subr.mxu0 0.0
        %386 = vmatpush2.msra.mxu0 0.0
        %387 = vmatprep.subr.mxu0 0.0
        %388 = vmatpush2.msra.mxu0 0.0
        %389 = vmatprep.subr.mxu0 0.0
        %390 = vmatpush2.msra.mxu0 0.0
        %391 = vmatprep.subr.mxu0 0.0
        %392 = vmatpush2.msra.mxu0 0.0
        %393 = vmatprep.subr.mxu0 0.0
        %394 = vmatpush2.msra.mxu0 0.0
        %395 = vmatprep.subr.mxu0 0.0
        %396 = vmatpush2.msra.mxu0 0.0
        %397 = vmatprep.subr.mxu0 0.0
        %398 = vmatpush2.msra.mxu0 0.0
        %399 = vmatprep.subr.mxu0 0.0
        %400 = vmatpush2.msra.mxu0 0.0
        %401 = vmatprep.subr.mxu0 0.0
        %402 = vmatpush2.msra.mxu0 0.0
        %403 = vmatprep.subr.mxu0 0.0
        %404 = vmatpush2.msra.mxu0 0.0
        %405 = vmatprep.subr.mxu0 0.0
        %406 = vmatpush2.msra.mxu0 0.0
        %407 = vmatprep.subr.mxu0 0.0
        %408 = vmatpush2.msra.mxu0 0.0
        %409 = vmatprep.subr.mxu0 0.0
        %410 = vmatpush2.msra.mxu0 0.0
        %411 = vmatprep.subr.mxu0 0.0
        %412 = vmatpush2.msra.mxu0 0.0
        %413 = vmatprep.mubr.f32.mxu0 0.0
        %414 = vmatmul.mubr.f32.gmra.mxu0 %v326
        %v415 = vpop.f32.mrf.mxu0
        %v416 = vadd.f32 %v307, %v415
        %v417 = vpop.f32.mrf.mxu0
        %v418 = vadd.f32 %v311, %v417
        %419 = vmatprep.mubr.f32.mxu0 0.0
        %420 = vmatmul.mubr.f32.gmra.mxu0 %v329
        %v421 = vpop.f32.mrf.mxu0
        %v422 = vadd.f32 %v307, %v421
        %v423 = vpop.f32.mrf.mxu0
        %v424 = vadd.f32 %v311, %v423
        %425 = vmatprep.mubr.f32.mxu0 0.0
        %426 = vmatmul.mubr.f32.gmra.mxu0 %v332
        %v427 = vpop.f32.mrf.mxu0
        %v428 = vadd.f32 %v307, %v427
        %v429 = vpop.f32.mrf.mxu0
        %v430 = vadd.f32 %v311, %v429
        %431 = vmatprep.mubr.f32.mxu0 0.0
        %432 = vmatmul.mubr.f32.gmra.mxu0 %v335
        %v433 = vpop.f32.mrf.mxu0
        %v434 = vadd.f32 %v307, %v433
        %v435 = vpop.f32.mrf.mxu0
        %v436 = vadd.f32 %v311, %v435
        %437 = vmatprep.mubr.f32.mxu0 0.0
        %438 = vmatmul.mubr.f32.gmra.mxu0 %v338
        %v439 = vpop.f32.mrf.mxu0
        %v440 = vadd.f32 %v307, %v439
        %v441 = vpop.f32.mrf.mxu0
        %v442 = vadd.f32 %v311, %v441
        %443 = vmatprep.mubr.f32.mxu0 0.0
        %444 = vmatmul.mubr.f32.gmra.mxu0 %v341
        %v445 = vpop.f32.mrf.mxu0
        %v446 = vadd.f32 %v307, %v445
        %v447 = vpop.f32.mrf.mxu0
        %v448 = vadd.f32 %v311, %v447
        %449 = vmatprep.mubr.f32.mxu0 0.0
        %450 = vmatmul.mubr.f32.gmra.mxu0 %v344
        %v451 = vpop.f32.mrf.mxu0
        %v452 = vadd.f32 %v307, %v451
        %v453 = vpop.f32.mrf.mxu0
        %v454 = vadd.f32 %v311, %v453
        %455 = vmatprep.mubr.f32.mxu0 0.0
        %456 = vmatmul.mubr.f32.gmra.mxu0 %v347
        %v457 = vpop.f32.mrf.mxu0
        %v458 = vadd.f32 %v307, %v457
        %v459 = vpop.f32.mrf.mxu0
        %v460 = vadd.f32 %v311, %v459
        %461 = vdwg.mxu0
        %462 = vmatprep.subr.mxu0 0.0
        %463 = vmatpush1.msra.mxu0 0.0
        %464 = vmatprep.subr.mxu0 0.0
        %465 = vmatpush1.msra.mxu0 0.0
        %466 = vmatprep.subr.mxu0 0.0
        %467 = vmatpush1.msra.mxu0 0.0
        %468 = vmatprep.subr.mxu0 0.0
        %469 = vmatpush1.msra.mxu0 0.0
        %470 = vmatprep.subr.mxu0 0.0
        %471 = vmatpush1.msra.mxu0 0.0
        %472 = vmatprep.subr.mxu0 0.0
        %473 = vmatpush1.msra.mxu0 0.0
        %474 = vmatprep.subr.mxu0 0.0
        %475 = vmatpush1.msra.mxu0 0.0
        %476 = vmatprep.subr.mxu0 0.0
        %477 = vmatpush1.msra.mxu0 0.0
        %478 = vmatprep.subr.mxu0 0.0
        %479 = vmatpush1.msra.mxu0 0.0
        %480 = vmatprep.subr.mxu0 0.0
        %481 = vmatpush1.msra.mxu0 0.0
        %482 = vmatprep.subr.mxu0 0.0
        %483 = vmatpush1.msra.mxu0 0.0
        %484 = vmatprep.subr.mxu0 0.0
        %485 = vmatpush1.msra.mxu0 0.0
        %486 = vmatprep.subr.mxu0 0.0
        %487 = vmatpush1.msra.mxu0 0.0
        %488 = vmatprep.subr.mxu0 0.0
        %489 = vmatpush1.msra.mxu0 0.0
        %490 = vmatprep.subr.mxu0 %v301
        %491 = vmatpush1.msra.mxu0 %v300
        %492 = vmatprep.subr.mxu0 %v297
        %493 = vmatpush1.msra.mxu0 %v296
        %494 = vmatprep.subr.mxu0 0.0
        %495 = vmatpush2.msra.mxu0 0.0
        %496 = vmatprep.subr.mxu0 0.0
        %497 = vmatpush2.msra.mxu0 0.0
        %498 = vmatprep.subr.mxu0 0.0
        %499 = vmatpush2.msra.mxu0 0.0
        %500 = vmatprep.subr.mxu0 0.0
        %501 = vmatpush2.msra.mxu0 0.0
        %502 = vmatprep.subr.mxu0 0.0
        %503 = vmatpush2.msra.mxu0 0.0
        %504 = vmatprep.subr.mxu0 0.0
        %505 = vmatpush2.msra.mxu0 0.0
        %506 = vmatprep.subr.mxu0 0.0
        %507 = vmatpush2.msra.mxu0 0.0
        %508 = vmatprep.subr.mxu0 0.0
        %509 = vmatpush2.msra.mxu0 0.0
        %510 = vmatprep.subr.mxu0 0.0
        %511 = vmatpush2.msra.mxu0 0.0
        %512 = vmatprep.subr.mxu0 0.0
        %513 = vmatpush2.msra.mxu0 0.0
        %514 = vmatprep.subr.mxu0 0.0
        %515 = vmatpush2.msra.mxu0 0.0
        %516 = vmatprep.subr.mxu0 0.0
        %517 = vmatpush2.msra.mxu0 0.0
        %518 = vmatprep.subr.mxu0 0.0
        %519 = vmatpush2.msra.mxu0 0.0
        %520 = vmatprep.subr.mxu0 0.0
        %521 = vmatpush2.msra.mxu0 0.0
        %522 = vmatprep.subr.mxu0 0.0
        %523 = vmatpush2.msra.mxu0 0.0
        %524 = vmatprep.subr.mxu0 0.0
        %525 = vmatpush2.msra.mxu0 0.0
        %526 = vmatprep.mubr.f32.mxu0 0.0
        %527 = vmatmul.mubr.f32.gmra.mxu0 %v326
        %v528 = vpop.f32.mrf.mxu0
        %v529 = vadd.f32 %v315, %v528
        %v530 = vpop.f32.mrf.mxu0
        %v531 = vadd.f32 %v319, %v530
        %532 = vmatprep.mubr.f32.mxu0 0.0
        %533 = vmatmul.mubr.f32.gmra.mxu0 %v329
        %v534 = vpop.f32.mrf.mxu0
        %v535 = vadd.f32 %v315, %v534
        %v536 = vpop.f32.mrf.mxu0
        %v537 = vadd.f32 %v319, %v536
        %538 = vmatprep.mubr.f32.mxu0 0.0
        %539 = vmatmul.mubr.f32.gmra.mxu0 %v332
        %v540 = vpop.f32.mrf.mxu0
        %v541 = vadd.f32 %v315, %v540
        %v542 = vpop.f32.mrf.mxu0
        %v543 = vadd.f32 %v319, %v542
        %544 = vmatprep.mubr.f32.mxu0 0.0
        %545 = vmatmul.mubr.f32.gmra.mxu0 %v335
        %v546 = vpop.f32.mrf.mxu0
        %v547 = vadd.f32 %v315, %v546
        %v548 = vpop.f32.mrf.mxu0
        %v549 = vadd.f32 %v319, %v548
        %550 = vmatprep.mubr.f32.mxu0 0.0
        %551 = vmatmul.mubr.f32.gmra.mxu0 %v338
        %v552 = vpop.f32.mrf.mxu0
        %v553 = vadd.f32 %v315, %v552
        %v554 = vpop.f32.mrf.mxu0
        %v555 = vadd.f32 %v319, %v554
        %556 = vmatprep.mubr.f32.mxu0 0.0
        %557 = vmatmul.mubr.f32.gmra.mxu0 %v341
        %v558 = vpop.f32.mrf.mxu0
        %v559 = vadd.f32 %v315, %v558
        %v560 = vpop.f32.mrf.mxu0
        %v561 = vadd.f32 %v319, %v560
        %562 = vmatprep.mubr.f32.mxu0 0.0
        %563 = vmatmul.mubr.f32.gmra.mxu0 %v344
        %v564 = vpop.f32.mrf.mxu0
        %v565 = vadd.f32 %v315, %v564
        %v566 = vpop.f32.mrf.mxu0
        %v567 = vadd.f32 %v319, %v566
        %568 = vmatprep.mubr.f32.mxu0 0.0
        %569 = vmatmul.mubr.f32.gmra.mxu0 %v347
        %v570 = vpop.f32.mrf.mxu0
        %v571 = vadd.f32 %v315, %v570
        %v572 = vpop.f32.mrf.mxu0
        %v573 = vadd.f32 %v319, %v572
        %574 = vdwg.mxu0
        %v575 = vld [vmem:[#allocation2] sm:$0xff]
        %v576 = vld [vmem:[#allocation3] sm:$0xff]
        %v577 = vld [vmem:[%s2] sm:$0xff]
        %v578 = vld [vmem:[%s2 + $0x8] sm:$0xff]
        %v579 = vld [vmem:[%s2 + $0x10] sm:$0xff]
        %v580 = vld [vmem:[%s2 + $0x18] sm:$0xff]
        %v581 = vld [vmem:[%s2 + $0x20] sm:$0xff]
        %v582 = vld [vmem:[%s2 + $0x28] sm:$0xff]
        %v583 = vld [vmem:[%s2 + $0x30] sm:$0xff]
        %v584 = vld [vmem:[%s2 + $0x38] sm:$0xff]
        %v585 = vld [vmem:[%s2 + $0x40] sm:$0xff]
        %v586 = vld [vmem:[%s2 + $0x48] sm:$0xff]
        %v587 = vld [vmem:[%s2 + $0x50] sm:$0xff]
        %v588 = vld [vmem:[%s2 + $0x58] sm:$0xff]
        %v589 = vld [vmem:[%s2 + $0x60] sm:$0xff]
        %v590 = vld [vmem:[%s2 + $0x68] sm:$0xff]
        %v591 = vld [vmem:[%s2 + $0x70] sm:$0xff]
        %v592 = vld [vmem:[%s2 + $0x78] sm:$0xff]
        %v593 = vld [vmem:[%s2 + $0x80] sm:$0xff]
        %v594 = vld [vmem:[%s2 + $0x88] sm:$0xff]
        %v595 = vld [vmem:[%s2 + $0x90] sm:$0xff]
        %v596 = vld [vmem:[%s2 + $0x98] sm:$0xff]
        %v597 = vld [vmem:[%s2 + $0xa0] sm:$0xff]
        %v598 = vld [vmem:[%s2 + $0xa8] sm:$0xff]
        %v599 = vld [vmem:[%s2 + $0xb0] sm:$0xff]
        %v600 = vld [vmem:[%s2 + $0xb8] sm:$0xff]
        %v601 = vld [vmem:[%s2 + $0xc0] sm:$0xff]
        %v602 = vld [vmem:[%s2 + $0xc8] sm:$0xff]
        %v603 = vld [vmem:[%s2 + $0xd0] sm:$0xff]
        %v604 = vld [vmem:[%s2 + $0xd8] sm:$0xff]
        %v605 = vld [vmem:[%s2 + $0xe0] sm:$0xff]
        %v606 = vld [vmem:[%s2 + $0xe8] sm:$0xff]
        %v607 = vld [vmem:[%s2 + $0xf0] sm:$0xff]
        %v608 = vld [vmem:[%s2 + $0xf8] sm:$0xff]
        %v609 = vld [vmem:[%s2 + $0x100] sm:$0xff]
        %v610 = vld [vmem:[%s2 + $0x108] sm:$0xff]
        %v611 = vld [vmem:[%s2 + $0x110] sm:$0xff]
        %v612 = vld [vmem:[%s2 + $0x118] sm:$0xff]
        %v613 = vld [vmem:[%s2 + $0x120] sm:$0xff]
        %v614 = vld [vmem:[%s2 + $0x128] sm:$0xff]
        %v615 = vld [vmem:[%s2 + $0x130] sm:$0xff]
        %v616 = vld [vmem:[%s2 + $0x138] sm:$0xff]
        %v617 = vld [vmem:[%s2 + $0x140] sm:$0xff]
        %v618 = vld [vmem:[%s2 + $0x148] sm:$0xff]
        %v619 = vld [vmem:[%s2 + $0x150] sm:$0xff]
        %v620 = vld [vmem:[%s2 + $0x158] sm:$0xff]
        %v621 = vld [vmem:[%s2 + $0x160] sm:$0xff]
        %v622 = vld [vmem:[%s2 + $0x168] sm:$0xff]
        %v623 = vld [vmem:[%s2 + $0x170] sm:$0xff]
        %v624 = vld [vmem:[%s2 + $0x178] sm:$0xff]
        %v625 = vld [vmem:[%s2 + $0x180] sm:$0xff]
        %v626 = vld [vmem:[%s2 + $0x188] sm:$0xff]
        %v627 = vld [vmem:[%s2 + $0x190] sm:$0xff]
        %v628 = vld [vmem:[%s2 + $0x198] sm:$0xff]
        %v629 = vld [vmem:[%s2 + $0x1a0] sm:$0xff]
        %v630 = vld [vmem:[%s2 + $0x1a8] sm:$0xff]
        %v631 = vld [vmem:[%s2 + $0x1b0] sm:$0xff]
        %v632 = vld [vmem:[%s2 + $0x1b8] sm:$0xff]
        %v633 = vld [vmem:[%s2 + $0x1c0] sm:$0xff]
        %v634 = vld [vmem:[%s2 + $0x1c8] sm:$0xff]
        %v635 = vld [vmem:[%s2 + $0x1d0] sm:$0xff]
        %v636 = vld [vmem:[%s2 + $0x1d8] sm:$0xff]
        %v637 = vld [vmem:[%s2 + $0x1e0] sm:$0xff]
        %v638 = vld [vmem:[%s2 + $0x1e8] sm:$0xff]
        %v639 = vld [vmem:[%s2 + $0x1f0] sm:$0xff]
        %v640 = vld [vmem:[%s2 + $0x1f8] sm:$0xff]
        %641 = vmatprep.subr.mxu0 %v638
        %642 = vmatpush1.msra.mxu0 %v637
        %643 = vmatprep.subr.mxu0 %v634
        %644 = vmatpush1.msra.mxu0 %v633
        %645 = vmatprep.subr.mxu0 %v630
        %646 = vmatpush1.msra.mxu0 %v629
        %647 = vmatprep.subr.mxu0 %v626
        %648 = vmatpush1.msra.mxu0 %v625
        %649 = vmatprep.subr.mxu0 %v622
        %650 = vmatpush1.msra.mxu0 %v621
        %651 = vmatprep.subr.mxu0 %v618
        %652 = vmatpush1.msra.mxu0 %v617
        %653 = vmatprep.subr.mxu0 %v614
        %654 = vmatpush1.msra.mxu0 %v613
        %655 = vmatprep.subr.mxu0 %v610
        %656 = vmatpush1.msra.mxu0 %v609
        %657 = vmatprep.subr.mxu0 %v606
        %658 = vmatpush1.msra.mxu0 %v605
        %659 = vmatprep.subr.mxu0 %v602
        %660 = vmatpush1.msra.mxu0 %v601
        %661 = vmatprep.subr.mxu0 %v598
        %662 = vmatpush1.msra.mxu0 %v597
        %663 = vmatprep.subr.mxu0 %v594
        %664 = vmatpush1.msra.mxu0 %v593
        %665 = vmatprep.subr.mxu0 %v590
        %666 = vmatpush1.msra.mxu0 %v589
        %667 = vmatprep.subr.mxu0 %v586
        %668 = vmatpush1.msra.mxu0 %v585
        %669 = vmatprep.subr.mxu0 %v582
        %670 = vmatpush1.msra.mxu0 %v581
        %671 = vmatprep.subr.mxu0 %v578
        %672 = vmatpush1.msra.mxu0 %v577
        %673 = vmatprep.subr.mxu0 0.0
        %674 = vmatpush2.msra.mxu0 0.0
        %675 = vmatprep.subr.mxu0 0.0
        %676 = vmatpush2.msra.mxu0 0.0
        %677 = vmatprep.subr.mxu0 0.0
        %678 = vmatpush2.msra.mxu0 0.0
        %679 = vmatprep.subr.mxu0 0.0
        %680 = vmatpush2.msra.mxu0 0.0
        %681 = vmatprep.subr.mxu0 0.0
        %682 = vmatpush2.msra.mxu0 0.0
        %683 = vmatprep.subr.mxu0 0.0
        %684 = vmatpush2.msra.mxu0 0.0
        %685 = vmatprep.subr.mxu0 0.0
        %686 = vmatpush2.msra.mxu0 0.0
        %687 = vmatprep.subr.mxu0 0.0
        %688 = vmatpush2.msra.mxu0 0.0
        %689 = vmatprep.subr.mxu0 0.0
        %690 = vmatpush2.msra.mxu0 0.0
        %691 = vmatprep.subr.mxu0 0.0
        %692 = vmatpush2.msra.mxu0 0.0
        %693 = vmatprep.subr.mxu0 0.0
        %694 = vmatpush2.msra.mxu0 0.0
        %695 = vmatprep.subr.mxu0 0.0
        %696 = vmatpush2.msra.mxu0 0.0
        %697 = vmatprep.subr.mxu0 0.0
        %698 = vmatpush2.msra.mxu0 0.0
        %699 = vmatprep.subr.mxu0 0.0
        %700 = vmatpush2.msra.mxu0 0.0
        %701 = vmatprep.subr.mxu0 0.0
        %702 = vmatpush2.msra.mxu0 0.0
        %703 = vmatprep.subr.mxu0 0.0
        %704 = vmatpush2.msra.mxu0 0.0
        %705 = vmatprep.mubr.f32.mxu0 0.0
        %706 = vmatmul.mubr.f32.gmra.mxu0 %v575
        %v707 = vpop.f32.mrf.mxu0
        %v708 = vadd.f32 0.0, %v707
        %v709 = vpop.f32.mrf.mxu0
        %v710 = vadd.f32 0.0, %v709
        %711 = vdwg.mxu0
        %712 = vmatprep.subr.mxu0 %v640
        %713 = vmatpush1.msra.mxu0 %v639
        %714 = vmatprep.subr.mxu0 %v636
        %715 = vmatpush1.msra.mxu0 %v635
        %716 = vmatprep.subr.mxu0 %v632
        %717 = vmatpush1.msra.mxu0 %v631
        %718 = vmatprep.subr.mxu0 %v628
        %719 = vmatpush1.msra.mxu0 %v627
        %720 = vmatprep.subr.mxu0 %v624
        %721 = vmatpush1.msra.mxu0 %v623
        %722 = vmatprep.subr.mxu0 %v620
        %723 = vmatpush1.msra.mxu0 %v619
        %724 = vmatprep.subr.mxu0 %v616
        %725 = vmatpush1.msra.mxu0 %v615
        %726 = vmatprep.subr.mxu0 %v612
        %727 = vmatpush1.msra.mxu0 %v611
        %728 = vmatprep.subr.mxu0 %v608
        %729 = vmatpush1.msra.mxu0 %v607
        %730 = vmatprep.subr.mxu0 %v604
        %731 = vmatpush1.msra.mxu0 %v603
        %732 = vmatprep.subr.mxu0 %v600
        %733 = vmatpush1.msra.mxu0 %v599
        %734 = vmatprep.subr.mxu0 %v596
        %735 = vmatpush1.msra.mxu0 %v595
        %736 = vmatprep.subr.mxu0 %v592
        %737 = vmatpush1.msra.mxu0 %v591
        %738 = vmatprep.subr.mxu0 %v588
        %739 = vmatpush1.msra.mxu0 %v587
        %740 = vmatprep.subr.mxu0 %v584
        %741 = vmatpush1.msra.mxu0 %v583
        %742 = vmatprep.subr.mxu0 %v580
        %743 = vmatpush1.msra.mxu0 %v579
        %744 = vmatprep.subr.mxu0 0.0
        %745 = vmatpush2.msra.mxu0 0.0
        %746 = vmatprep.subr.mxu0 0.0
        %747 = vmatpush2.msra.mxu0 0.0
        %748 = vmatprep.subr.mxu0 0.0
        %749 = vmatpush2.msra.mxu0 0.0
        %750 = vmatprep.subr.mxu0 0.0
        %751 = vmatpush2.msra.mxu0 0.0
        %752 = vmatprep.subr.mxu0 0.0
        %753 = vmatpush2.msra.mxu0 0.0
        %754 = vmatprep.subr.mxu0 0.0
        %755 = vmatpush2.msra.mxu0 0.0
        %756 = vmatprep.subr.mxu0 0.0
        %757 = vmatpush2.msra.mxu0 0.0
        %758 = vmatprep.subr.mxu0 0.0
        %759 = vmatpush2.msra.mxu0 0.0
        %760 = vmatprep.subr.mxu0 0.0
        %761 = vmatpush2.msra.mxu0 0.0
        %762 = vmatprep.subr.mxu0 0.0
        %763 = vmatpush2.msra.mxu0 0.0
        %764 = vmatprep.subr.mxu0 0.0
        %765 = vmatpush2.msra.mxu0 0.0
        %766 = vmatprep.subr.mxu0 0.0
        %767 = vmatpush2.msra.mxu0 0.0
        %768 = vmatprep.subr.mxu0 0.0
        %769 = vmatpush2.msra.mxu0 0.0
        %770 = vmatprep.subr.mxu0 0.0
        %771 = vmatpush2.msra.mxu0 0.0
        %772 = vmatprep.subr.mxu0 0.0
        %773 = vmatpush2.msra.mxu0 0.0
        %774 = vmatprep.subr.mxu0 0.0
        %775 = vmatpush2.msra.mxu0 0.0
        %776 = vmatprep.mubr.f32.mxu0 0.0
        %777 = vmatmul.mubr.f32.gmra.mxu0 %v575
        %v778 = vpop.f32.mrf.mxu0
        %v779 = vadd.f32 0.0, %v778
        %v780 = vpop.f32.mrf.mxu0
        %v781 = vadd.f32 0.0, %v780
        %782 = vdwg.mxu0
        %v783 = vadd.f32 %v416, %v708
        %v784 = vadd.f32 %v418, %v710
        %v785 = vadd.f32 %v529, %v779
        %v786 = vadd.f32 %v531, %v781
        %v787 = vxor.u32 %v783, 2147483648
        %v788 = vmul.f32 %v787, 1.442695
        %v789 = vpow.pop %v788
        %v790 = vadd.f32 %v789, 1.0
        %v791 = vrcp.pop %v790
        %v792 = vmul.f32 1.0, %v791
        %v793 = vxor.u32 %v784, 2147483648
        %v794 = vmul.f32 %v793, 1.442695
        %v795 = vpow.pop %v794
        %v796 = vadd.f32 %v795, 1.0
        %v797 = vrcp.pop %v796
        %v798 = vmul.f32 1.0, %v797
        %v799 = vtanh.pop %v785
        %v800 = vxor.u32 %v786, 2147483648
        %v801 = vmul.f32 %v800, 1.442695
        %v802 = vpow.pop %v801
        %v803 = vadd.f32 %v802, 1.0
        %v804 = vrcp.pop %v803
        %v805 = vmul.f32 1.0, %v804
        %v806 = vmul.f32 %v798, %v576
        %v807 = vmul.f32 %v792, %v799
        %v808 = vadd.f32 %v806, %v807
        %v809 = vtanh.pop %v808
        %v810 = vmul.f32 %v805, %v809
        %811 = vst [vmem:[#allocation3] sm:$0xff] %v808
        %812 = vst [vmem:[#allocation2] sm:$0xff] %v810
        %813 = vst [vmem:[%s277] sm:$0xff] %v810
        %v814 = vld [vmem:[#allocation2] sm:$0xff]
        %v815 = vld [vmem:[#allocation3] sm:$0xff]
        %v816 = vld [vmem:[%s2] sm:$0xff]
        %v817 = vld [vmem:[%s2 + $0x8] sm:$0xff]
        %v818 = vld [vmem:[%s2 + $0x10] sm:$0xff]
        %v819 = vld [vmem:[%s2 + $0x18] sm:$0xff]
        %v820 = vld [vmem:[%s2 + $0x20] sm:$0xff]
        %v821 = vld [vmem:[%s2 + $0x28] sm:$0xff]
        %v822 = vld [vmem:[%s2 + $0x30] sm:$0xff]
        %v823 = vld [vmem:[%s2 + $0x38] sm:$0xff]
        %v824 = vld [vmem:[%s2 + $0x40] sm:$0xff]
        %v825 = vld [vmem:[%s2 + $0x48] sm:$0xff]
        %v826 = vld [vmem:[%s2 + $0x50] sm:$0xff]
        %v827 = vld [vmem:[%s2 + $0x58] sm:$0xff]
        %v828 = vld [vmem:[%s2 + $0x60] sm:$0xff]
        %v829 = vld [vmem:[%s2 + $0x68] sm:$0xff]
        %v830 = vld [vmem:[%s2 + $0x70] sm:$0xff]
        %v831 = vld [vmem:[%s2 + $0x78] sm:$0xff]
        %v832 = vld [vmem:[%s2 + $0x80] sm:$0xff]
        %v833 = vld [vmem:[%s2 + $0x88] sm:$0xff]
        %v834 = vld [vmem:[%s2 + $0x90] sm:$0xff]
        %v835 = vld [vmem:[%s2 + $0x98] sm:$0xff]
        %v836 = vld [vmem:[%s2 + $0xa0] sm:$0xff]
        %v837 = vld [vmem:[%s2 + $0xa8] sm:$0xff]
        %v838 = vld [vmem:[%s2 + $0xb0] sm:$0xff]
        %v839 = vld [vmem:[%s2 + $0xb8] sm:$0xff]
        %v840 = vld [vmem:[%s2 + $0xc0] sm:$0xff]
        %v841 = vld [vmem:[%s2 + $0xc8] sm:$0xff]
        %v842 = vld [vmem:[%s2 + $0xd0] sm:$0xff]
        %v843 = vld [vmem:[%s2 + $0xd8] sm:$0xff]
        %v844 = vld [vmem:[%s2 + $0xe0] sm:$0xff]
        %v845 = vld [vmem:[%s2 + $0xe8] sm:$0xff]
        %v846 = vld [vmem:[%s2 + $0xf0] sm:$0xff]
        %v847 = vld [vmem:[%s2 + $0xf8] sm:$0xff]
        %v848 = vld [vmem:[%s2 + $0x100] sm:$0xff]
        %v849 = vld [vmem:[%s2 + $0x108] sm:$0xff]
        %v850 = vld [vmem:[%s2 + $0x110] sm:$0xff]
        %v851 = vld [vmem:[%s2 + $0x118] sm:$0xff]
        %v852 = vld [vmem:[%s2 + $0x120] sm:$0xff]
        %v853 = vld [vmem:[%s2 + $0x128] sm:$0xff]
        %v854 = vld [vmem:[%s2 + $0x130] sm:$0xff]
        %v855 = vld [vmem:[%s2 + $0x138] sm:$0xff]
        %v856 = vld [vmem:[%s2 + $0x140] sm:$0xff]
        %v857 = vld [vmem:[%s2 + $0x148] sm:$0xff]
        %v858 = vld [vmem:[%s2 + $0x150] sm:$0xff]
        %v859 = vld [vmem:[%s2 + $0x158] sm:$0xff]
        %v860 = vld [vmem:[%s2 + $0x160] sm:$0xff]
        %v861 = vld [vmem:[%s2 + $0x168] sm:$0xff]
        %v862 = vld [vmem:[%s2 + $0x170] sm:$0xff]
        %v863 = vld [vmem:[%s2 + $0x178] sm:$0xff]
        %v864 = vld [vmem:[%s2 + $0x180] sm:$0xff]
        %v865 = vld [vmem:[%s2 + $0x188] sm:$0xff]
        %v866 = vld [vmem:[%s2 + $0x190] sm:$0xff]
        %v867 = vld [vmem:[%s2 + $0x198] sm:$0xff]
        %v868 = vld [vmem:[%s2 + $0x1a0] sm:$0xff]
        %v869 = vld [vmem:[%s2 + $0x1a8] sm:$0xff]
        %v870 = vld [vmem:[%s2 + $0x1b0] sm:$0xff]
        %v871 = vld [vmem:[%s2 + $0x1b8] sm:$0xff]
        %v872 = vld [vmem:[%s2 + $0x1c0] sm:$0xff]
        %v873 = vld [vmem:[%s2 + $0x1c8] sm:$0xff]
        %v874 = vld [vmem:[%s2 + $0x1d0] sm:$0xff]
        %v875 = vld [vmem:[%s2 + $0x1d8] sm:$0xff]
        %v876 = vld [vmem:[%s2 + $0x1e0] sm:$0xff]
        %v877 = vld [vmem:[%s2 + $0x1e8] sm:$0xff]
        %v878 = vld [vmem:[%s2 + $0x1f0] sm:$0xff]
        %v879 = vld [vmem:[%s2 + $0x1f8] sm:$0xff]
        %880 = vmatprep.subr.mxu0 %v877
        %881 = vmatpush1.msra.mxu0 %v876
        %882 = vmatprep.subr.mxu0 %v873
        %883 = vmatpush1.msra.mxu0 %v872
        %884 = vmatprep.subr.mxu0 %v869
        %885 = vmatpush1.msra.mxu0 %v868
        %886 = vmatprep.subr.mxu0 %v865
        %887 = vmatpush1.msra.mxu0 %v864
        %888 = vmatprep.subr.mxu0 %v861
        %889 = vmatpush1.msra.mxu0 %v860
        %890 = vmatprep.subr.mxu0 %v857
        %891 = vmatpush1.msra.mxu0 %v856
        %892 = vmatprep.subr.mxu0 %v853
        %893 = vmatpush1.msra.mxu0 %v852
        %894 = vmatprep.subr.mxu0 %v849
        %895 = vmatpush1.msra.mxu0 %v848
        %896 = vmatprep.subr.mxu0 %v845
        %897 = vmatpush1.msra.mxu0 %v844
        %898 = vmatprep.subr.mxu0 %v841
        %899 = vmatpush1.msra.mxu0 %v840
        %900 = vmatprep.subr.mxu0 %v837
        %901 = vmatpush1.msra.mxu0 %v836
        %902 = vmatprep.subr.mxu0 %v833
        %903 = vmatpush1.msra.mxu0 %v832
        %904 = vmatprep.subr.mxu0 %v829
        %905 = vmatpush1.msra.mxu0 %v828
        %906 = vmatprep.subr.mxu0 %v825
        %907 = vmatpush1.msra.mxu0 %v824
        %908 = vmatprep.subr.mxu0 %v821
        %909 = vmatpush1.msra.mxu0 %v820
        %910 = vmatprep.subr.mxu0 %v817
        %911 = vmatpush1.msra.mxu0 %v816
        %912 = vmatprep.subr.mxu0 0.0
        %913 = vmatpush2.msra.mxu0 0.0
        %914 = vmatprep.subr.mxu0 0.0
        %915 = vmatpush2.msra.mxu0 0.0
        %916 = vmatprep.subr.mxu0 0.0
        %917 = vmatpush2.msra.mxu0 0.0
        %918 = vmatprep.subr.mxu0 0.0
        %919 = vmatpush2.msra.mxu0 0.0
        %920 = vmatprep.subr.mxu0 0.0
        %921 = vmatpush2.msra.mxu0 0.0
        %922 = vmatprep.subr.mxu0 0.0
        %923 = vmatpush2.msra.mxu0 0.0
        %924 = vmatprep.subr.mxu0 0.0
        %925 = vmatpush2.msra.mxu0 0.0
        %926 = vmatprep.subr.mxu0 0.0
        %927 = vmatpush2.msra.mxu0 0.0
        %928 = vmatprep.subr.mxu0 0.0
        %929 = vmatpush2.msra.mxu0 0.0
        %930 = vmatprep.subr.mxu0 0.0
        %931 = vmatpush2.msra.mxu0 0.0
        %932 = vmatprep.subr.mxu0 0.0
        %933 = vmatpush2.msra.mxu0 0.0
        %934 = vmatprep.subr.mxu0 0.0
        %935 = vmatpush2.msra.mxu0 0.0
        %936 = vmatprep.subr.mxu0 0.0
        %937 = vmatpush2.msra.mxu0 0.0
        %938 = vmatprep.subr.mxu0 0.0
        %939 = vmatpush2.msra.mxu0 0.0
        %940 = vmatprep.subr.mxu0 0.0
        %941 = vmatpush2.msra.mxu0 0.0
        %942 = vmatprep.subr.mxu0 0.0
        %943 = vmatpush2.msra.mxu0 0.0
        %944 = vmatprep.mubr.f32.mxu0 0.0
        %945 = vmatmul.mubr.f32.gmra.mxu0 %v814
        %v946 = vpop.f32.mrf.mxu0
        %v947 = vadd.f32 0.0, %v946
        %v948 = vpop.f32.mrf.mxu0
        %v949 = vadd.f32 0.0, %v948
        %950 = vdwg.mxu0
        %951 = vmatprep.subr.mxu0 %v879
        %952 = vmatpush1.msra.mxu0 %v878
        %953 = vmatprep.subr.mxu0 %v875
        %954 = vmatpush1.msra.mxu0 %v874
        %955 = vmatprep.subr.mxu0 %v871
        %956 = vmatpush1.msra.mxu0 %v870
        %957 = vmatprep.subr.mxu0 %v867
        %958 = vmatpush1.msra.mxu0 %v866
        %959 = vmatprep.subr.mxu0 %v863
        %960 = vmatpush1.msra.mxu0 %v862
        %961 = vmatprep.subr.mxu0 %v859
        %962 = vmatpush1.msra.mxu0 %v858
        %963 = vmatprep.subr.mxu0 %v855
        %964 = vmatpush1.msra.mxu0 %v854
        %965 = vmatprep.subr.mxu0 %v851
        %966 = vmatpush1.msra.mxu0 %v850
        %967 = vmatprep.subr.mxu0 %v847
        %968 = vmatpush1.msra.mxu0 %v846
        %969 = vmatprep.subr.mxu0 %v843
        %970 = vmatpush1.msra.mxu0 %v842
        %971 = vmatprep.subr.mxu0 %v839
        %972 = vmatpush1.msra.mxu0 %v838
        %973 = vmatprep.subr.mxu0 %v835
        %974 = vmatpush1.msra.mxu0 %v834
        %975 = vmatprep.subr.mxu0 %v831
        %976 = vmatpush1.msra.mxu0 %v830
        %977 = vmatprep.subr.mxu0 %v827
        %978 = vmatpush1.msra.mxu0 %v826
        %979 = vmatprep.subr.mxu0 %v823
        %980 = vmatpush1.msra.mxu0 %v822
        %981 = vmatprep.subr.mxu0 %v819
        %982 = vmatpush1.msra.mxu0 %v818
        %983 = vmatprep.subr.mxu0 0.0
        %984 = vmatpush2.msra.mxu0 0.0
        %985 = vmatprep.subr.mxu0 0.0
        %986 = vmatpush2.msra.mxu0 0.0
        %987 = vmatprep.subr.mxu0 0.0
        %988 = vmatpush2.msra.mxu0 0.0
        %989 = vmatprep.subr.mxu0 0.0
        %990 = vmatpush2.msra.mxu0 0.0
        %991 = vmatprep.subr.mxu0 0.0
        %992 = vmatpush2.msra.mxu0 0.0
        %993 = vmatprep.subr.mxu0 0.0
        %994 = vmatpush2.msra.mxu0 0.0
        %995 = vmatprep.subr.mxu0 0.0
        %996 = vmatpush2.msra.mxu0 0.0
        %997 = vmatprep.subr.mxu0 0.0
        %998 = vmatpush2.msra.mxu0 0.0
        %999 = vmatprep.subr.mxu0 0.0
        %1000 = vmatpush2.msra.mxu0 0.0
        %1001 = vmatprep.subr.mxu0 0.0
        %1002 = vmatpush2.msra.mxu0 0.0
        %1003 = vmatprep.subr.mxu0 0.0
        %1004 = vmatpush2.msra.mxu0 0.0
        %1005 = vmatprep.subr.mxu0 0.0
        %1006 = vmatpush2.msra.mxu0 0.0
        %1007 = vmatprep.subr.mxu0 0.0
        %1008 = vmatpush2.msra.mxu0 0.0
        %1009 = vmatprep.subr.mxu0 0.0
        %1010 = vmatpush2.msra.mxu0 0.0
        %1011 = vmatprep.subr.mxu0 0.0
        %1012 = vmatpush2.msra.mxu0 0.0
        %1013 = vmatprep.subr.mxu0 0.0
        %1014 = vmatpush2.msra.mxu0 0.0
        %1015 = vmatprep.mubr.f32.mxu0 0.0
        %1016 = vmatmul.mubr.f32.gmra.mxu0 %v814
        %v1017 = vpop.f32.mrf.mxu0
        %v1018 = vadd.f32 0.0, %v1017
        %v1019 = vpop.f32.mrf.mxu0
        %v1020 = vadd.f32 0.0, %v1019
        %1021 = vdwg.mxu0
        %v1022 = vadd.f32 %v422, %v947
        %v1023 = vadd.f32 %v424, %v949
        %v1024 = vadd.f32 %v535, %v1018
        %v1025 = vadd.f32 %v537, %v1020
        %v1026 = vxor.u32 %v1022, 2147483648
        %v1027 = vmul.f32 %v1026, 1.442695
        %v1028 = vpow.pop %v1027
        %v1029 = vadd.f32 %v1028, 1.0
        %v1030 = vrcp.pop %v1029
        %v1031 = vmul.f32 1.0, %v1030
        %v1032 = vxor.u32 %v1023, 2147483648
        %v1033 = vmul.f32 %v1032, 1.442695
        %v1034 = vpow.pop %v1033
        %v1035 = vadd.f32 %v1034, 1.0
        %v1036 = vrcp.pop %v1035
        %v1037 = vmul.f32 1.0, %v1036
        %v1038 = vtanh.pop %v1024
        %v1039 = vxor.u32 %v1025, 2147483648
        %v1040 = vmul.f32 %v1039, 1.442695
        %v1041 = vpow.pop %v1040
        %v1042 = vadd.f32 %v1041, 1.0
        %v1043 = vrcp.pop %v1042
        %v1044 = vmul.f32 1.0, %v1043
        %v1045 = vmul.f32 %v1037, %v815
        %v1046 = vmul.f32 %v1031, %v1038
        %v1047 = vadd.f32 %v1045, %v1046
        %v1048 = vtanh.pop %v1047
        %v1049 = vmul.f32 %v1044, %v1048
        %1050 = vst [vmem:[#allocation3] sm:$0xff] %v1047
        %1051 = vst [vmem:[#allocation2] sm:$0xff] %v1049
        %s1052 = scalar_lea.vmem %s277, 8 [#allocation5]
        %1053 = vst [vmem:[%s1052] sm:$0xff] %v1049
        %v1054 = vld [vmem:[#allocation2] sm:$0xff]
        %v1055 = vld [vmem:[#allocation3] sm:$0xff]
        %v1056 = vld [vmem:[%s2] sm:$0xff]
        %v1057 = vld [vmem:[%s2 + $0x8] sm:$0xff]
        %v1058 = vld [vmem:[%s2 + $0x10] sm:$0xff]
        %v1059 = vld [vmem:[%s2 + $0x18] sm:$0xff]
        %v1060 = vld [vmem:[%s2 + $0x20] sm:$0xff]
        %v1061 = vld [vmem:[%s2 + $0x28] sm:$0xff]
        %v1062 = vld [vmem:[%s2 + $0x30] sm:$0xff]
        %v1063 = vld [vmem:[%s2 + $0x38] sm:$0xff]
        %v1064 = vld [vmem:[%s2 + $0x40] sm:$0xff]
        %v1065 = vld [vmem:[%s2 + $0x48] sm:$0xff]
        %v1066 = vld [vmem:[%s2 + $0x50] sm:$0xff]
        %v1067 = vld [vmem:[%s2 + $0x58] sm:$0xff]
        %v1068 = vld [vmem:[%s2 + $0x60] sm:$0xff]
        %v1069 = vld [vmem:[%s2 + $0x68] sm:$0xff]
        %v1070 = vld [vmem:[%s2 + $0x70] sm:$0xff]
        %v1071 = vld [vmem:[%s2 + $0x78] sm:$0xff]
        %v1072 = vld [vmem:[%s2 + $0x80] sm:$0xff]
        %v1073 = vld [vmem:[%s2 + $0x88] sm:$0xff]
        %v1074 = vld [vmem:[%s2 + $0x90] sm:$0xff]
        %v1075 = vld [vmem:[%s2 + $0x98] sm:$0xff]
        %v1076 = vld [vmem:[%s2 + $0xa0] sm:$0xff]
        %v1077 = vld [vmem:[%s2 + $0xa8] sm:$0xff]
        %v1078 = vld [vmem:[%s2 + $0xb0] sm:$0xff]
        %v1079 = vld [vmem:[%s2 + $0xb8] sm:$0xff]
        %v1080 = vld [vmem:[%s2 + $0xc0] sm:$0xff]
        %v1081 = vld [vmem:[%s2 + $0xc8] sm:$0xff]
        %v1082 = vld [vmem:[%s2 + $0xd0] sm:$0xff]
        %v1083 = vld [vmem:[%s2 + $0xd8] sm:$0xff]
        %v1084 = vld [vmem:[%s2 + $0xe0] sm:$0xff]
        %v1085 = vld [vmem:[%s2 + $0xe8] sm:$0xff]
        %v1086 = vld [vmem:[%s2 + $0xf0] sm:$0xff]
        %v1087 = vld [vmem:[%s2 + $0xf8] sm:$0xff]
        %v1088 = vld [vmem:[%s2 + $0x100] sm:$0xff]
        %v1089 = vld [vmem:[%s2 + $0x108] sm:$0xff]
        %v1090 = vld [vmem:[%s2 + $0x110] sm:$0xff]
        %v1091 = vld [vmem:[%s2 + $0x118] sm:$0xff]
        %v1092 = vld [vmem:[%s2 + $0x120] sm:$0xff]
        %v1093 = vld [vmem:[%s2 + $0x128] sm:$0xff]
        %v1094 = vld [vmem:[%s2 + $0x130] sm:$0xff]
        %v1095 = vld [vmem:[%s2 + $0x138] sm:$0xff]
        %v1096 = vld [vmem:[%s2 + $0x140] sm:$0xff]
        %v1097 = vld [vmem:[%s2 + $0x148] sm:$0xff]
        %v1098 = vld [vmem:[%s2 + $0x150] sm:$0xff]
        %v1099 = vld [vmem:[%s2 + $0x158] sm:$0xff]
        %v1100 = vld [vmem:[%s2 + $0x160] sm:$0xff]
        %v1101 = vld [vmem:[%s2 + $0x168] sm:$0xff]
        %v1102 = vld [vmem:[%s2 + $0x170] sm:$0xff]
        %v1103 = vld [vmem:[%s2 + $0x178] sm:$0xff]
        %v1104 = vld [vmem:[%s2 + $0x180] sm:$0xff]
        %v1105 = vld [vmem:[%s2 + $0x188] sm:$0xff]
        %v1106 = vld [vmem:[%s2 + $0x190] sm:$0xff]
        %v1107 = vld [vmem:[%s2 + $0x198] sm:$0xff]
        %v1108 = vld [vmem:[%s2 + $0x1a0] sm:$0xff]
        %v1109 = vld [vmem:[%s2 + $0x1a8] sm:$0xff]
        %v1110 = vld [vmem:[%s2 + $0x1b0] sm:$0xff]
        %v1111 = vld [vmem:[%s2 + $0x1b8] sm:$0xff]
        %v1112 = vld [vmem:[%s2 + $0x1c0] sm:$0xff]
        %v1113 = vld [vmem:[%s2 + $0x1c8] sm:$0xff]
        %v1114 = vld [vmem:[%s2 + $0x1d0] sm:$0xff]
        %v1115 = vld [vmem:[%s2 + $0x1d8] sm:$0xff]
        %v1116 = vld [vmem:[%s2 + $0x1e0] sm:$0xff]
        %v1117 = vld [vmem:[%s2 + $0x1e8] sm:$0xff]
        %v1118 = vld [vmem:[%s2 + $0x1f0] sm:$0xff]
        %v1119 = vld [vmem:[%s2 + $0x1f8] sm:$0xff]
        %1120 = vmatprep.subr.mxu0 %v1117
        %1121 = vmatpush1.msra.mxu0 %v1116
        %1122 = vmatprep.subr.mxu0 %v1113
        %1123 = vmatpush1.msra.mxu0 %v1112
        %1124 = vmatprep.subr.mxu0 %v1109
        %1125 = vmatpush1.msra.mxu0 %v1108
        %1126 = vmatprep.subr.mxu0 %v1105
        %1127 = vmatpush1.msra.mxu0 %v1104
        %1128 = vmatprep.subr.mxu0 %v1101
        %1129 = vmatpush1.msra.mxu0 %v1100
        %1130 = vmatprep.subr.mxu0 %v1097
        %1131 = vmatpush1.msra.mxu0 %v1096
        %1132 = vmatprep.subr.mxu0 %v1093
        %1133 = vmatpush1.msra.mxu0 %v1092
        %1134 = vmatprep.subr.mxu0 %v1089
        %1135 = vmatpush1.msra.mxu0 %v1088
        %1136 = vmatprep.subr.mxu0 %v1085
        %1137 = vmatpush1.msra.mxu0 %v1084
        %1138 = vmatprep.subr.mxu0 %v1081
        %1139 = vmatpush1.msra.mxu0 %v1080
        %1140 = vmatprep.subr.mxu0 %v1077
        %1141 = vmatpush1.msra.mxu0 %v1076
        %1142 = vmatprep.subr.mxu0 %v1073
        %1143 = vmatpush1.msra.mxu0 %v1072
        %1144 = vmatprep.subr.mxu0 %v1069
        %1145 = vmatpush1.msra.mxu0 %v1068
        %1146 = vmatprep.subr.mxu0 %v1065
        %1147 = vmatpush1.msra.mxu0 %v1064
        %1148 = vmatprep.subr.mxu0 %v1061
        %1149 = vmatpush1.msra.mxu0 %v1060
        %1150 = vmatprep.subr.mxu0 %v1057
        %1151 = vmatpush1.msra.mxu0 %v1056
        %1152 = vmatprep.subr.mxu0 0.0
        %1153 = vmatpush2.msra.mxu0 0.0
        %1154 = vmatprep.subr.mxu0 0.0
        %1155 = vmatpush2.msra.mxu0 0.0
        %1156 = vmatprep.subr.mxu0 0.0
        %1157 = vmatpush2.msra.mxu0 0.0
        %1158 = vmatprep.subr.mxu0 0.0
        %1159 = vmatpush2.msra.mxu0 0.0
        %1160 = vmatprep.subr.mxu0 0.0
        %1161 = vmatpush2.msra.mxu0 0.0
        %1162 = vmatprep.subr.mxu0 0.0
        %1163 = vmatpush2.msra.mxu0 0.0
        %1164 = vmatprep.subr.mxu0 0.0
        %1165 = vmatpush2.msra.mxu0 0.0
        %1166 = vmatprep.subr.mxu0 0.0
        %1167 = vmatpush2.msra.mxu0 0.0
        %1168 = vmatprep.subr.mxu0 0.0
        %1169 = vmatpush2.msra.mxu0 0.0
        %1170 = vmatprep.subr.mxu0 0.0
        %1171 = vmatpush2.msra.mxu0 0.0
        %1172 = vmatprep.subr.mxu0 0.0
        %1173 = vmatpush2.msra.mxu0 0.0
        %1174 = vmatprep.subr.mxu0 0.0
        %1175 = vmatpush2.msra.mxu0 0.0
        %1176 = vmatprep.subr.mxu0 0.0
        %1177 = vmatpush2.msra.mxu0 0.0
        %1178 = vmatprep.subr.mxu0 0.0
        %1179 = vmatpush2.msra.mxu0 0.0
        %1180 = vmatprep.subr.mxu0 0.0
        %1181 = vmatpush2.msra.mxu0 0.0
        %1182 = vmatprep.subr.mxu0 0.0
        %1183 = vmatpush2.msra.mxu0 0.0
        %1184 = vmatprep.mubr.f32.mxu0 0.0
        %1185 = vmatmul.mubr.f32.gmra.mxu0 %v1054
        %v1186 = vpop.f32.mrf.mxu0
        %v1187 = vadd.f32 0.0, %v1186
        %v1188 = vpop.f32.mrf.mxu0
        %v1189 = vadd.f32 0.0, %v1188
        %1190 = vdwg.mxu0
        %1191 = vmatprep.subr.mxu0 %v1119
        %1192 = vmatpush1.msra.mxu0 %v1118
        %1193 = vmatprep.subr.mxu0 %v1115
        %1194 = vmatpush1.msra.mxu0 %v1114
        %1195 = vmatprep.subr.mxu0 %v1111
        %1196 = vmatpush1.msra.mxu0 %v1110
        %1197 = vmatprep.subr.mxu0 %v1107
        %1198 = vmatpush1.msra.mxu0 %v1106
        %1199 = vmatprep.subr.mxu0 %v1103
        %1200 = vmatpush1.msra.mxu0 %v1102
        %1201 = vmatprep.subr.mxu0 %v1099
        %1202 = vmatpush1.msra.mxu0 %v1098
        %1203 = vmatprep.subr.mxu0 %v1095
        %1204 = vmatpush1.msra.mxu0 %v1094
        %1205 = vmatprep.subr.mxu0 %v1091
        %1206 = vmatpush1.msra.mxu0 %v1090
        %1207 = vmatprep.subr.mxu0 %v1087
        %1208 = vmatpush1.msra.mxu0 %v1086
        %1209 = vmatprep.subr.mxu0 %v1083
        %1210 = vmatpush1.msra.mxu0 %v1082
        %1211 = vmatprep.subr.mxu0 %v1079
        %1212 = vmatpush1.msra.mxu0 %v1078
        %1213 = vmatprep.subr.mxu0 %v1075
        %1214 = vmatpush1.msra.mxu0 %v1074
        %1215 = vmatprep.subr.mxu0 %v1071
        %1216 = vmatpush1.msra.mxu0 %v1070
        %1217 = vmatprep.subr.mxu0 %v1067
        %1218 = vmatpush1.msra.mxu0 %v1066
        %1219 = vmatprep.subr.mxu0 %v1063
        %1220 = vmatpush1.msra.mxu0 %v1062
        %1221 = vmatprep.subr.mxu0 %v1059
        %1222 = vmatpush1.msra.mxu0 %v1058
        %1223 = vmatprep.subr.mxu0 0.0
        %1224 = vmatpush2.msra.mxu0 0.0
        %1225 = vmatprep.subr.mxu0 0.0
        %1226 = vmatpush2.msra.mxu0 0.0
        %1227 = vmatprep.subr.mxu0 0.0
        %1228 = vmatpush2.msra.mxu0 0.0
        %1229 = vmatprep.subr.mxu0 0.0
        %1230 = vmatpush2.msra.mxu0 0.0
        %1231 = vmatprep.subr.mxu0 0.0
        %1232 = vmatpush2.msra.mxu0 0.0
        %1233 = vmatprep.subr.mxu0 0.0
        %1234 = vmatpush2.msra.mxu0 0.0
        %1235 = vmatprep.subr.mxu0 0.0
        %1236 = vmatpush2.msra.mxu0 0.0
        %1237 = vmatprep.subr.mxu0 0.0
        %1238 = vmatpush2.msra.mxu0 0.0
        %1239 = vmatprep.subr.mxu0 0.0
        %1240 = vmatpush2.msra.mxu0 0.0
        %1241 = vmatprep.subr.mxu0 0.0
        %1242 = vmatpush2.msra.mxu0 0.0
        %1243 = vmatprep.subr.mxu0 0.0
        %1244 = vmatpush2.msra.mxu0 0.0
        %1245 = vmatprep.subr.mxu0 0.0
        %1246 = vmatpush2.msra.mxu0 0.0
        %1247 = vmatprep.subr.mxu0 0.0
        %1248 = vmatpush2.msra.mxu0 0.0
        %1249 = vmatprep.subr.mxu0 0.0
        %1250 = vmatpush2.msra.mxu0 0.0
        %1251 = vmatprep.subr.mxu0 0.0
        %1252 = vmatpush2.msra.mxu0 0.0
        %1253 = vmatprep.subr.mxu0 0.0
        %1254 = vmatpush2.msra.mxu0 0.0
        %1255 = vmatprep.mubr.f32.mxu0 0.0
        %1256 = vmatmul.mubr.f32.gmra.mxu0 %v1054
        %v1257 = vpop.f32.mrf.mxu0
        %v1258 = vadd.f32 0.0, %v1257
        %v1259 = vpop.f32.mrf.mxu0
        %v1260 = vadd.f32 0.0, %v1259
        %1261 = vdwg.mxu0
        %v1262 = vadd.f32 %v428, %v1187
        %v1263 = vadd.f32 %v430, %v1189
        %v1264 = vadd.f32 %v541, %v1258
        %v1265 = vadd.f32 %v543, %v1260
        %v1266 = vxor.u32 %v1262, 2147483648
        %v1267 = vmul.f32 %v1266, 1.442695
        %v1268 = vpow.pop %v1267
        %v1269 = vadd.f32 %v1268, 1.0
        %v1270 = vrcp.pop %v1269
        %v1271 = vmul.f32 1.0, %v1270
        %v1272 = vxor.u32 %v1263, 2147483648
        %v1273 = vmul.f32 %v1272, 1.442695
        %v1274 = vpow.pop %v1273
        %v1275 = vadd.f32 %v1274, 1.0
        %v1276 = vrcp.pop %v1275
        %v1277 = vmul.f32 1.0, %v1276
        %v1278 = vtanh.pop %v1264
        %v1279 = vxor.u32 %v1265, 2147483648
        %v1280 = vmul.f32 %v1279, 1.442695
        %v1281 = vpow.pop %v1280
        %v1282 = vadd.f32 %v1281, 1.0
        %v1283 = vrcp.pop %v1282
        %v1284 = vmul.f32 1.0, %v1283
        %v1285 = vmul.f32 %v1277, %v1055
        %v1286 = vmul.f32 %v1271, %v1278
        %v1287 = vadd.f32 %v1285, %v1286
        %v1288 = vtanh.pop %v1287
        %v1289 = vmul.f32 %v1284, %v1288
        %1290 = vst [vmem:[#allocation3] sm:$0xff] %v1287
        %1291 = vst [vmem:[#allocation2] sm:$0xff] %v1289
        %s1292 = scalar_lea.vmem %s277, 16 [#allocation5]
        %1293 = vst [vmem:[%s1292] sm:$0xff] %v1289
        %v1294 = vld [vmem:[#allocation2] sm:$0xff]
        %v1295 = vld [vmem:[#allocation3] sm:$0xff]
        %v1296 = vld [vmem:[%s2] sm:$0xff]
        %v1297 = vld [vmem:[%s2 + $0x8] sm:$0xff]
        %v1298 = vld [vmem:[%s2 + $0x10] sm:$0xff]
        %v1299 = vld [vmem:[%s2 + $0x18] sm:$0xff]
        %v1300 = vld [vmem:[%s2 + $0x20] sm:$0xff]
        %v1301 = vld [vmem:[%s2 + $0x28] sm:$0xff]
        %v1302 = vld [vmem:[%s2 + $0x30] sm:$0xff]
        %v1303 = vld [vmem:[%s2 + $0x38] sm:$0xff]
        %v1304 = vld [vmem:[%s2 + $0x40] sm:$0xff]
        %v1305 = vld [vmem:[%s2 + $0x48] sm:$0xff]
        %v1306 = vld [vmem:[%s2 + $0x50] sm:$0xff]
        %v1307 = vld [vmem:[%s2 + $0x58] sm:$0xff]
        %v1308 = vld [vmem:[%s2 + $0x60] sm:$0xff]
        %v1309 = vld [vmem:[%s2 + $0x68] sm:$0xff]
        %v1310 = vld [vmem:[%s2 + $0x70] sm:$0xff]
        %v1311 = vld [vmem:[%s2 + $0x78] sm:$0xff]
        %v1312 = vld [vmem:[%s2 + $0x80] sm:$0xff]
        %v1313 = vld [vmem:[%s2 + $0x88] sm:$0xff]
        %v1314 = vld [vmem:[%s2 + $0x90] sm:$0xff]
        %v1315 = vld [vmem:[%s2 + $0x98] sm:$0xff]
        %v1316 = vld [vmem:[%s2 + $0xa0] sm:$0xff]
        %v1317 = vld [vmem:[%s2 + $0xa8] sm:$0xff]
        %v1318 = vld [vmem:[%s2 + $0xb0] sm:$0xff]
        %v1319 = vld [vmem:[%s2 + $0xb8] sm:$0xff]
        %v1320 = vld [vmem:[%s2 + $0xc0] sm:$0xff]
        %v1321 = vld [vmem:[%s2 + $0xc8] sm:$0xff]
        %v1322 = vld [vmem:[%s2 + $0xd0] sm:$0xff]
        %v1323 = vld [vmem:[%s2 + $0xd8] sm:$0xff]
        %v1324 = vld [vmem:[%s2 + $0xe0] sm:$0xff]
        %v1325 = vld [vmem:[%s2 + $0xe8] sm:$0xff]
        %v1326 = vld [vmem:[%s2 + $0xf0] sm:$0xff]
        %v1327 = vld [vmem:[%s2 + $0xf8] sm:$0xff]
        %v1328 = vld [vmem:[%s2 + $0x100] sm:$0xff]
        %v1329 = vld [vmem:[%s2 + $0x108] sm:$0xff]
        %v1330 = vld [vmem:[%s2 + $0x110] sm:$0xff]
        %v1331 = vld [vmem:[%s2 + $0x118] sm:$0xff]
        %v1332 = vld [vmem:[%s2 + $0x120] sm:$0xff]
        %v1333 = vld [vmem:[%s2 + $0x128] sm:$0xff]
        %v1334 = vld [vmem:[%s2 + $0x130] sm:$0xff]
        %v1335 = vld [vmem:[%s2 + $0x138] sm:$0xff]
        %v1336 = vld [vmem:[%s2 + $0x140] sm:$0xff]
        %v1337 = vld [vmem:[%s2 + $0x148] sm:$0xff]
        %v1338 = vld [vmem:[%s2 + $0x150] sm:$0xff]
        %v1339 = vld [vmem:[%s2 + $0x158] sm:$0xff]
        %v1340 = vld [vmem:[%s2 + $0x160] sm:$0xff]
        %v1341 = vld [vmem:[%s2 + $0x168] sm:$0xff]
        %v1342 = vld [vmem:[%s2 + $0x170] sm:$0xff]
        %v1343 = vld [vmem:[%s2 + $0x178] sm:$0xff]
        %v1344 = vld [vmem:[%s2 + $0x180] sm:$0xff]
        %v1345 = vld [vmem:[%s2 + $0x188] sm:$0xff]
        %v1346 = vld [vmem:[%s2 + $0x190] sm:$0xff]
        %v1347 = vld [vmem:[%s2 + $0x198] sm:$0xff]
        %v1348 = vld [vmem:[%s2 + $0x1a0] sm:$0xff]
        %v1349 = vld [vmem:[%s2 + $0x1a8] sm:$0xff]
        %v1350 = vld [vmem:[%s2 + $0x1b0] sm:$0xff]
        %v1351 = vld [vmem:[%s2 + $0x1b8] sm:$0xff]
        %v1352 = vld [vmem:[%s2 + $0x1c0] sm:$0xff]
        %v1353 = vld [vmem:[%s2 + $0x1c8] sm:$0xff]
        %v1354 = vld [vmem:[%s2 + $0x1d0] sm:$0xff]
        %v1355 = vld [vmem:[%s2 + $0x1d8] sm:$0xff]
        %v1356 = vld [vmem:[%s2 + $0x1e0] sm:$0xff]
        %v1357 = vld [vmem:[%s2 + $0x1e8] sm:$0xff]
        %v1358 = vld [vmem:[%s2 + $0x1f0] sm:$0xff]
        %v1359 = vld [vmem:[%s2 + $0x1f8] sm:$0xff]
        %1360 = vmatprep.subr.mxu0 %v1357
        %1361 = vmatpush1.msra.mxu0 %v1356
        %1362 = vmatprep.subr.mxu0 %v1353
        %1363 = vmatpush1.msra.mxu0 %v1352
        %1364 = vmatprep.subr.mxu0 %v1349
        %1365 = vmatpush1.msra.mxu0 %v1348
        %1366 = vmatprep.subr.mxu0 %v1345
        %1367 = vmatpush1.msra.mxu0 %v1344
        %1368 = vmatprep.subr.mxu0 %v1341
        %1369 = vmatpush1.msra.mxu0 %v1340
        %1370 = vmatprep.subr.mxu0 %v1337
        %1371 = vmatpush1.msra.mxu0 %v1336
        %1372 = vmatprep.subr.mxu0 %v1333
        %1373 = vmatpush1.msra.mxu0 %v1332
        %1374 = vmatprep.subr.mxu0 %v1329
        %1375 = vmatpush1.msra.mxu0 %v1328
        %1376 = vmatprep.subr.mxu0 %v1325
        %1377 = vmatpush1.msra.mxu0 %v1324
        %1378 = vmatprep.subr.mxu0 %v1321
        %1379 = vmatpush1.msra.mxu0 %v1320
        %1380 = vmatprep.subr.mxu0 %v1317
        %1381 = vmatpush1.msra.mxu0 %v1316
        %1382 = vmatprep.subr.mxu0 %v1313
        %1383 = vmatpush1.msra.mxu0 %v1312
        %1384 = vmatprep.subr.mxu0 %v1309
        %1385 = vmatpush1.msra.mxu0 %v1308
        %1386 = vmatprep.subr.mxu0 %v1305
        %1387 = vmatpush1.msra.mxu0 %v1304
        %1388 = vmatprep.subr.mxu0 %v1301
        %1389 = vmatpush1.msra.mxu0 %v1300
        %1390 = vmatprep.subr.mxu0 %v1297
        %1391 = vmatpush1.msra.mxu0 %v1296
        %1392 = vmatprep.subr.mxu0 0.0
        %1393 = vmatpush2.msra.mxu0 0.0
        %1394 = vmatprep.subr.mxu0 0.0
        %1395 = vmatpush2.msra.mxu0 0.0
        %1396 = vmatprep.subr.mxu0 0.0
        %1397 = vmatpush2.msra.mxu0 0.0
        %1398 = vmatprep.subr.mxu0 0.0
        %1399 = vmatpush2.msra.mxu0 0.0
        %1400 = vmatprep.subr.mxu0 0.0
        %1401 = vmatpush2.msra.mxu0 0.0
        %1402 = vmatprep.subr.mxu0 0.0
        %1403 = vmatpush2.msra.mxu0 0.0
        %1404 = vmatprep.subr.mxu0 0.0
        %1405 = vmatpush2.msra.mxu0 0.0
        %1406 = vmatprep.subr.mxu0 0.0
        %1407 = vmatpush2.msra.mxu0 0.0
        %1408 = vmatprep.subr.mxu0 0.0
        %1409 = vmatpush2.msra.mxu0 0.0
        %1410 = vmatprep.subr.mxu0 0.0
        %1411 = vmatpush2.msra.mxu0 0.0
        %1412 = vmatprep.subr.mxu0 0.0
        %1413 = vmatpush2.msra.mxu0 0.0
        %1414 = vmatprep.subr.mxu0 0.0
        %1415 = vmatpush2.msra.mxu0 0.0
        %1416 = vmatprep.subr.mxu0 0.0
        %1417 = vmatpush2.msra.mxu0 0.0
        %1418 = vmatprep.subr.mxu0 0.0
        %1419 = vmatpush2.msra.mxu0 0.0
        %1420 = vmatprep.subr.mxu0 0.0
        %1421 = vmatpush2.msra.mxu0 0.0
        %1422 = vmatprep.subr.mxu0 0.0
        %1423 = vmatpush2.msra.mxu0 0.0
        %1424 = vmatprep.mubr.f32.mxu0 0.0
        %1425 = vmatmul.mubr.f32.gmra.mxu0 %v1294
        %v1426 = vpop.f32.mrf.mxu0
        %v1427 = vadd.f32 0.0, %v1426
        %v1428 = vpop.f32.mrf.mxu0
        %v1429 = vadd.f32 0.0, %v1428
        %1430 = vdwg.mxu0
        %1431 = vmatprep.subr.mxu0 %v1359
        %1432 = vmatpush1.msra.mxu0 %v1358
        %1433 = vmatprep.subr.mxu0 %v1355
        %1434 = vmatpush1.msra.mxu0 %v1354
        %1435 = vmatprep.subr.mxu0 %v1351
        %1436 = vmatpush1.msra.mxu0 %v1350
        %1437 = vmatprep.subr.mxu0 %v1347
        %1438 = vmatpush1.msra.mxu0 %v1346
        %1439 = vmatprep.subr.mxu0 %v1343
        %1440 = vmatpush1.msra.mxu0 %v1342
        %1441 = vmatprep.subr.mxu0 %v1339
        %1442 = vmatpush1.msra.mxu0 %v1338
        %1443 = vmatprep.subr.mxu0 %v1335
        %1444 = vmatpush1.msra.mxu0 %v1334
        %1445 = vmatprep.subr.mxu0 %v1331
        %1446 = vmatpush1.msra.mxu0 %v1330
        %1447 = vmatprep.subr.mxu0 %v1327
        %1448 = vmatpush1.msra.mxu0 %v1326
        %1449 = vmatprep.subr.mxu0 %v1323
        %1450 = vmatpush1.msra.mxu0 %v1322
        %1451 = vmatprep.subr.mxu0 %v1319
        %1452 = vmatpush1.msra.mxu0 %v1318
        %1453 = vmatprep.subr.mxu0 %v1315
        %1454 = vmatpush1.msra.mxu0 %v1314
        %1455 = vmatprep.subr.mxu0 %v1311
        %1456 = vmatpush1.msra.mxu0 %v1310
        %1457 = vmatprep.subr.mxu0 %v1307
        %1458 = vmatpush1.msra.mxu0 %v1306
        %1459 = vmatprep.subr.mxu0 %v1303
        %1460 = vmatpush1.msra.mxu0 %v1302
        %1461 = vmatprep.subr.mxu0 %v1299
        %1462 = vmatpush1.msra.mxu0 %v1298
        %1463 = vmatprep.subr.mxu0 0.0
        %1464 = vmatpush2.msra.mxu0 0.0
        %1465 = vmatprep.subr.mxu0 0.0
        %1466 = vmatpush2.msra.mxu0 0.0
        %1467 = vmatprep.subr.mxu0 0.0
        %1468 = vmatpush2.msra.mxu0 0.0
        %1469 = vmatprep.subr.mxu0 0.0
        %1470 = vmatpush2.msra.mxu0 0.0
        %1471 = vmatprep.subr.mxu0 0.0
        %1472 = vmatpush2.msra.mxu0 0.0
        %1473 = vmatprep.subr.mxu0 0.0
        %1474 = vmatpush2.msra.mxu0 0.0
        %1475 = vmatprep.subr.mxu0 0.0
        %1476 = vmatpush2.msra.mxu0 0.0
        %1477 = vmatprep.subr.mxu0 0.0
        %1478 = vmatpush2.msra.mxu0 0.0
        %1479 = vmatprep.subr.mxu0 0.0
        %1480 = vmatpush2.msra.mxu0 0.0
        %1481 = vmatprep.subr.mxu0 0.0
        %1482 = vmatpush2.msra.mxu0 0.0
        %1483 = vmatprep.subr.mxu0 0.0
        %1484 = vmatpush2.msra.mxu0 0.0
        %1485 = vmatprep.subr.mxu0 0.0
        %1486 = vmatpush2.msra.mxu0 0.0
        %1487 = vmatprep.subr.mxu0 0.0
        %1488 = vmatpush2.msra.mxu0 0.0
        %1489 = vmatprep.subr.mxu0 0.0
        %1490 = vmatpush2.msra.mxu0 0.0
        %1491 = vmatprep.subr.mxu0 0.0
        %1492 = vmatpush2.msra.mxu0 0.0
        %1493 = vmatprep.subr.mxu0 0.0
        %1494 = vmatpush2.msra.mxu0 0.0
        %1495 = vmatprep.mubr.f32.mxu0 0.0
        %1496 = vmatmul.mubr.f32.gmra.mxu0 %v1294
        %v1497 = vpop.f32.mrf.mxu0
        %v1498 = vadd.f32 0.0, %v1497
        %v1499 = vpop.f32.mrf.mxu0
        %v1500 = vadd.f32 0.0, %v1499
        %1501 = vdwg.mxu0
        %v1502 = vadd.f32 %v434, %v1427
        %v1503 = vadd.f32 %v436, %v1429
        %v1504 = vadd.f32 %v547, %v1498
        %v1505 = vadd.f32 %v549, %v1500
        %v1506 = vxor.u32 %v1502, 2147483648
        %v1507 = vmul.f32 %v1506, 1.442695
        %v1508 = vpow.pop %v1507
        %v1509 = vadd.f32 %v1508, 1.0
        %v1510 = vrcp.pop %v1509
        %v1511 = vmul.f32 1.0, %v1510
        %v1512 = vxor.u32 %v1503, 2147483648
        %v1513 = vmul.f32 %v1512, 1.442695
        %v1514 = vpow.pop %v1513
        %v1515 = vadd.f32 %v1514, 1.0
        %v1516 = vrcp.pop %v1515
        %v1517 = vmul.f32 1.0, %v1516
        %v1518 = vtanh.pop %v1504
        %v1519 = vxor.u32 %v1505, 2147483648
        %v1520 = vmul.f32 %v1519, 1.442695
        %v1521 = vpow.pop %v1520
        %v1522 = vadd.f32 %v1521, 1.0
        %v1523 = vrcp.pop %v1522
        %v1524 = vmul.f32 1.0, %v1523
        %v1525 = vmul.f32 %v1517, %v1295
        %v1526 = vmul.f32 %v1511, %v1518
        %v1527 = vadd.f32 %v1525, %v1526
        %v1528 = vtanh.pop %v1527
        %v1529 = vmul.f32 %v1524, %v1528
        %1530 = vst [vmem:[#allocation3] sm:$0xff] %v1527
        %1531 = vst [vmem:[#allocation2] sm:$0xff] %v1529
        %s1532 = scalar_lea.vmem %s277, 24 [#allocation5]
        %1533 = vst [vmem:[%s1532] sm:$0xff] %v1529
        %v1534 = vld [vmem:[#allocation2] sm:$0xff]
        %v1535 = vld [vmem:[#allocation3] sm:$0xff]
        %v1536 = vld [vmem:[%s2] sm:$0xff]
        %v1537 = vld [vmem:[%s2 + $0x8] sm:$0xff]
        %v1538 = vld [vmem:[%s2 + $0x10] sm:$0xff]
        %v1539 = vld [vmem:[%s2 + $0x18] sm:$0xff]
        %v1540 = vld [vmem:[%s2 + $0x20] sm:$0xff]
        %v1541 = vld [vmem:[%s2 + $0x28] sm:$0xff]
        %v1542 = vld [vmem:[%s2 + $0x30] sm:$0xff]
        %v1543 = vld [vmem:[%s2 + $0x38] sm:$0xff]
        %v1544 = vld [vmem:[%s2 + $0x40] sm:$0xff]
        %v1545 = vld [vmem:[%s2 + $0x48] sm:$0xff]
        %v1546 = vld [vmem:[%s2 + $0x50] sm:$0xff]
        %v1547 = vld [vmem:[%s2 + $0x58] sm:$0xff]
        %v1548 = vld [vmem:[%s2 + $0x60] sm:$0xff]
        %v1549 = vld [vmem:[%s2 + $0x68] sm:$0xff]
        %v1550 = vld [vmem:[%s2 + $0x70] sm:$0xff]
        %v1551 = vld [vmem:[%s2 + $0x78] sm:$0xff]
        %v1552 = vld [vmem:[%s2 + $0x80] sm:$0xff]
        %v1553 = vld [vmem:[%s2 + $0x88] sm:$0xff]
        %v1554 = vld [vmem:[%s2 + $0x90] sm:$0xff]
        %v1555 = vld [vmem:[%s2 + $0x98] sm:$0xff]
        %v1556 = vld [vmem:[%s2 + $0xa0] sm:$0xff]
        %v1557 = vld [vmem:[%s2 + $0xa8] sm:$0xff]
        %v1558 = vld [vmem:[%s2 + $0xb0] sm:$0xff]
        %v1559 = vld [vmem:[%s2 + $0xb8] sm:$0xff]
        %v1560 = vld [vmem:[%s2 + $0xc0] sm:$0xff]
        %v1561 = vld [vmem:[%s2 + $0xc8] sm:$0xff]
        %v1562 = vld [vmem:[%s2 + $0xd0] sm:$0xff]
        %v1563 = vld [vmem:[%s2 + $0xd8] sm:$0xff]
        %v1564 = vld [vmem:[%s2 + $0xe0] sm:$0xff]
        %v1565 = vld [vmem:[%s2 + $0xe8] sm:$0xff]
        %v1566 = vld [vmem:[%s2 + $0xf0] sm:$0xff]
        %v1567 = vld [vmem:[%s2 + $0xf8] sm:$0xff]
        %v1568 = vld [vmem:[%s2 + $0x100] sm:$0xff]
        %v1569 = vld [vmem:[%s2 + $0x108] sm:$0xff]
        %v1570 = vld [vmem:[%s2 + $0x110] sm:$0xff]
        %v1571 = vld [vmem:[%s2 + $0x118] sm:$0xff]
        %v1572 = vld [vmem:[%s2 + $0x120] sm:$0xff]
        %v1573 = vld [vmem:[%s2 + $0x128] sm:$0xff]
        %v1574 = vld [vmem:[%s2 + $0x130] sm:$0xff]
        %v1575 = vld [vmem:[%s2 + $0x138] sm:$0xff]
        %v1576 = vld [vmem:[%s2 + $0x140] sm:$0xff]
        %v1577 = vld [vmem:[%s2 + $0x148] sm:$0xff]
        %v1578 = vld [vmem:[%s2 + $0x150] sm:$0xff]
        %v1579 = vld [vmem:[%s2 + $0x158] sm:$0xff]
        %v1580 = vld [vmem:[%s2 + $0x160] sm:$0xff]
        %v1581 = vld [vmem:[%s2 + $0x168] sm:$0xff]
        %v1582 = vld [vmem:[%s2 + $0x170] sm:$0xff]
        %v1583 = vld [vmem:[%s2 + $0x178] sm:$0xff]
        %v1584 = vld [vmem:[%s2 + $0x180] sm:$0xff]
        %v1585 = vld [vmem:[%s2 + $0x188] sm:$0xff]
        %v1586 = vld [vmem:[%s2 + $0x190] sm:$0xff]
        %v1587 = vld [vmem:[%s2 + $0x198] sm:$0xff]
        %v1588 = vld [vmem:[%s2 + $0x1a0] sm:$0xff]
        %v1589 = vld [vmem:[%s2 + $0x1a8] sm:$0xff]
        %v1590 = vld [vmem:[%s2 + $0x1b0] sm:$0xff]
        %v1591 = vld [vmem:[%s2 + $0x1b8] sm:$0xff]
        %v1592 = vld [vmem:[%s2 + $0x1c0] sm:$0xff]
        %v1593 = vld [vmem:[%s2 + $0x1c8] sm:$0xff]
        %v1594 = vld [vmem:[%s2 + $0x1d0] sm:$0xff]
        %v1595 = vld [vmem:[%s2 + $0x1d8] sm:$0xff]
        %v1596 = vld [vmem:[%s2 + $0x1e0] sm:$0xff]
        %v1597 = vld [vmem:[%s2 + $0x1e8] sm:$0xff]
        %v1598 = vld [vmem:[%s2 + $0x1f0] sm:$0xff]
        %v1599 = vld [vmem:[%s2 + $0x1f8] sm:$0xff]
        %1600 = vmatprep.subr.mxu0 %v1597
        %1601 = vmatpush1.msra.mxu0 %v1596
        %1602 = vmatprep.subr.mxu0 %v1593
        %1603 = vmatpush1.msra.mxu0 %v1592
        %1604 = vmatprep.subr.mxu0 %v1589
        %1605 = vmatpush1.msra.mxu0 %v1588
        %1606 = vmatprep.subr.mxu0 %v1585
        %1607 = vmatpush1.msra.mxu0 %v1584
        %1608 = vmatprep.subr.mxu0 %v1581
        %1609 = vmatpush1.msra.mxu0 %v1580
        %1610 = vmatprep.subr.mxu0 %v1577
        %1611 = vmatpush1.msra.mxu0 %v1576
        %1612 = vmatprep.subr.mxu0 %v1573
        %1613 = vmatpush1.msra.mxu0 %v1572
        %1614 = vmatprep.subr.mxu0 %v1569
        %1615 = vmatpush1.msra.mxu0 %v1568
        %1616 = vmatprep.subr.mxu0 %v1565
        %1617 = vmatpush1.msra.mxu0 %v1564
        %1618 = vmatprep.subr.mxu0 %v1561
        %1619 = vmatpush1.msra.mxu0 %v1560
        %1620 = vmatprep.subr.mxu0 %v1557
        %1621 = vmatpush1.msra.mxu0 %v1556
        %1622 = vmatprep.subr.mxu0 %v1553
        %1623 = vmatpush1.msra.mxu0 %v1552
        %1624 = vmatprep.subr.mxu0 %v1549
        %1625 = vmatpush1.msra.mxu0 %v1548
        %1626 = vmatprep.subr.mxu0 %v1545
        %1627 = vmatpush1.msra.mxu0 %v1544
        %1628 = vmatprep.subr.mxu0 %v1541
        %1629 = vmatpush1.msra.mxu0 %v1540
        %1630 = vmatprep.subr.mxu0 %v1537
        %1631 = vmatpush1.msra.mxu0 %v1536
        %1632 = vmatprep.subr.mxu0 0.0
        %1633 = vmatpush2.msra.mxu0 0.0
        %1634 = vmatprep.subr.mxu0 0.0
        %1635 = vmatpush2.msra.mxu0 0.0
        %1636 = vmatprep.subr.mxu0 0.0
        %1637 = vmatpush2.msra.mxu0 0.0
        %1638 = vmatprep.subr.mxu0 0.0
        %1639 = vmatpush2.msra.mxu0 0.0
        %1640 = vmatprep.subr.mxu0 0.0
        %1641 = vmatpush2.msra.mxu0 0.0
        %1642 = vmatprep.subr.mxu0 0.0
        %1643 = vmatpush2.msra.mxu0 0.0
        %1644 = vmatprep.subr.mxu0 0.0
        %1645 = vmatpush2.msra.mxu0 0.0
        %1646 = vmatprep.subr.mxu0 0.0
        %1647 = vmatpush2.msra.mxu0 0.0
        %1648 = vmatprep.subr.mxu0 0.0
        %1649 = vmatpush2.msra.mxu0 0.0
        %1650 = vmatprep.subr.mxu0 0.0
        %1651 = vmatpush2.msra.mxu0 0.0
        %1652 = vmatprep.subr.mxu0 0.0
        %1653 = vmatpush2.msra.mxu0 0.0
        %1654 = vmatprep.subr.mxu0 0.0
        %1655 = vmatpush2.msra.mxu0 0.0
        %1656 = vmatprep.subr.mxu0 0.0
        %1657 = vmatpush2.msra.mxu0 0.0
        %1658 = vmatprep.subr.mxu0 0.0
        %1659 = vmatpush2.msra.mxu0 0.0
        %1660 = vmatprep.subr.mxu0 0.0
        %1661 = vmatpush2.msra.mxu0 0.0
        %1662 = vmatprep.subr.mxu0 0.0
        %1663 = vmatpush2.msra.mxu0 0.0
        %1664 = vmatprep.mubr.f32.mxu0 0.0
        %1665 = vmatmul.mubr.f32.gmra.mxu0 %v1534
        %v1666 = vpop.f32.mrf.mxu0
        %v1667 = vadd.f32 0.0, %v1666
        %v1668 = vpop.f32.mrf.mxu0
        %v1669 = vadd.f32 0.0, %v1668
        %1670 = vdwg.mxu0
        %1671 = vmatprep.subr.mxu0 %v1599
        %1672 = vmatpush1.msra.mxu0 %v1598
        %1673 = vmatprep.subr.mxu0 %v1595
        %1674 = vmatpush1.msra.mxu0 %v1594
        %1675 = vmatprep.subr.mxu0 %v1591
        %1676 = vmatpush1.msra.mxu0 %v1590
        %1677 = vmatprep.subr.mxu0 %v1587
        %1678 = vmatpush1.msra.mxu0 %v1586
        %1679 = vmatprep.subr.mxu0 %v1583
        %1680 = vmatpush1.msra.mxu0 %v1582
        %1681 = vmatprep.subr.mxu0 %v1579
        %1682 = vmatpush1.msra.mxu0 %v1578
        %1683 = vmatprep.subr.mxu0 %v1575
        %1684 = vmatpush1.msra.mxu0 %v1574
        %1685 = vmatprep.subr.mxu0 %v1571
        %1686 = vmatpush1.msra.mxu0 %v1570
        %1687 = vmatprep.subr.mxu0 %v1567
        %1688 = vmatpush1.msra.mxu0 %v1566
        %1689 = vmatprep.subr.mxu0 %v1563
        %1690 = vmatpush1.msra.mxu0 %v1562
        %1691 = vmatprep.subr.mxu0 %v1559
        %1692 = vmatpush1.msra.mxu0 %v1558
        %1693 = vmatprep.subr.mxu0 %v1555
        %1694 = vmatpush1.msra.mxu0 %v1554
        %1695 = vmatprep.subr.mxu0 %v1551
        %1696 = vmatpush1.msra.mxu0 %v1550
        %1697 = vmatprep.subr.mxu0 %v1547
        %1698 = vmatpush1.msra.mxu0 %v1546
        %1699 = vmatprep.subr.mxu0 %v1543
        %1700 = vmatpush1.msra.mxu0 %v1542
        %1701 = vmatprep.subr.mxu0 %v1539
        %1702 = vmatpush1.msra.mxu0 %v1538
        %1703 = vmatprep.subr.mxu0 0.0
        %1704 = vmatpush2.msra.mxu0 0.0
        %1705 = vmatprep.subr.mxu0 0.0
        %1706 = vmatpush2.msra.mxu0 0.0
        %1707 = vmatprep.subr.mxu0 0.0
        %1708 = vmatpush2.msra.mxu0 0.0
        %1709 = vmatprep.subr.mxu0 0.0
        %1710 = vmatpush2.msra.mxu0 0.0
        %1711 = vmatprep.subr.mxu0 0.0
        %1712 = vmatpush2.msra.mxu0 0.0
        %1713 = vmatprep.subr.mxu0 0.0
        %1714 = vmatpush2.msra.mxu0 0.0
        %1715 = vmatprep.subr.mxu0 0.0
        %1716 = vmatpush2.msra.mxu0 0.0
        %1717 = vmatprep.subr.mxu0 0.0
        %1718 = vmatpush2.msra.mxu0 0.0
        %1719 = vmatprep.subr.mxu0 0.0
        %1720 = vmatpush2.msra.mxu0 0.0
        %1721 = vmatprep.subr.mxu0 0.0
        %1722 = vmatpush2.msra.mxu0 0.0
        %1723 = vmatprep.subr.mxu0 0.0
        %1724 = vmatpush2.msra.mxu0 0.0
        %1725 = vmatprep.subr.mxu0 0.0
        %1726 = vmatpush2.msra.mxu0 0.0
        %1727 = vmatprep.subr.mxu0 0.0
        %1728 = vmatpush2.msra.mxu0 0.0
        %1729 = vmatprep.subr.mxu0 0.0
        %1730 = vmatpush2.msra.mxu0 0.0
        %1731 = vmatprep.subr.mxu0 0.0
        %1732 = vmatpush2.msra.mxu0 0.0
        %1733 = vmatprep.subr.mxu0 0.0
        %1734 = vmatpush2.msra.mxu0 0.0
        %1735 = vmatprep.mubr.f32.mxu0 0.0
        %1736 = vmatmul.mubr.f32.gmra.mxu0 %v1534
        %v1737 = vpop.f32.mrf.mxu0
        %v1738 = vadd.f32 0.0, %v1737
        %v1739 = vpop.f32.mrf.mxu0
        %v1740 = vadd.f32 0.0, %v1739
        %1741 = vdwg.mxu0
        %v1742 = vadd.f32 %v440, %v1667
        %v1743 = vadd.f32 %v442, %v1669
        %v1744 = vadd.f32 %v553, %v1738
        %v1745 = vadd.f32 %v555, %v1740
        %v1746 = vxor.u32 %v1742, 2147483648
        %v1747 = vmul.f32 %v1746, 1.442695
        %v1748 = vpow.pop %v1747
        %v1749 = vadd.f32 %v1748, 1.0
        %v1750 = vrcp.pop %v1749
        %v1751 = vmul.f32 1.0, %v1750
        %v1752 = vxor.u32 %v1743, 2147483648
        %v1753 = vmul.f32 %v1752, 1.442695
        %v1754 = vpow.pop %v1753
        %v1755 = vadd.f32 %v1754, 1.0
        %v1756 = vrcp.pop %v1755
        %v1757 = vmul.f32 1.0, %v1756
        %v1758 = vtanh.pop %v1744
        %v1759 = vxor.u32 %v1745, 2147483648
        %v1760 = vmul.f32 %v1759, 1.442695
        %v1761 = vpow.pop %v1760
        %v1762 = vadd.f32 %v1761, 1.0
        %v1763 = vrcp.pop %v1762
        %v1764 = vmul.f32 1.0, %v1763
        %v1765 = vmul.f32 %v1757, %v1535
        %v1766 = vmul.f32 %v1751, %v1758
        %v1767 = vadd.f32 %v1765, %v1766
        %v1768 = vtanh.pop %v1767
        %v1769 = vmul.f32 %v1764, %v1768
        %1770 = vst [vmem:[#allocation3] sm:$0xff] %v1767
        %1771 = vst [vmem:[#allocation2] sm:$0xff] %v1769
        %s1772 = scalar_lea.vmem %s277, 32 [#allocation5]
        %1773 = vst [vmem:[%s1772] sm:$0xff] %v1769
        %v1774 = vld [vmem:[#allocation2] sm:$0xff]
        %v1775 = vld [vmem:[#allocation3] sm:$0xff]
        %v1776 = vld [vmem:[%s2] sm:$0xff]
        %v1777 = vld [vmem:[%s2 + $0x8] sm:$0xff]
        %v1778 = vld [vmem:[%s2 + $0x10] sm:$0xff]
        %v1779 = vld [vmem:[%s2 + $0x18] sm:$0xff]
        %v1780 = vld [vmem:[%s2 + $0x20] sm:$0xff]
        %v1781 = vld [vmem:[%s2 + $0x28] sm:$0xff]
        %v1782 = vld [vmem:[%s2 + $0x30] sm:$0xff]
        %v1783 = vld [vmem:[%s2 + $0x38] sm:$0xff]
        %v1784 = vld [vmem:[%s2 + $0x40] sm:$0xff]
        %v1785 = vld [vmem:[%s2 + $0x48] sm:$0xff]
        %v1786 = vld [vmem:[%s2 + $0x50] sm:$0xff]
        %v1787 = vld [vmem:[%s2 + $0x58] sm:$0xff]
        %v1788 = vld [vmem:[%s2 + $0x60] sm:$0xff]
        %v1789 = vld [vmem:[%s2 + $0x68] sm:$0xff]
        %v1790 = vld [vmem:[%s2 + $0x70] sm:$0xff]
        %v1791 = vld [vmem:[%s2 + $0x78] sm:$0xff]
        %v1792 = vld [vmem:[%s2 + $0x80] sm:$0xff]
        %v1793 = vld [vmem:[%s2 + $0x88] sm:$0xff]
        %v1794 = vld [vmem:[%s2 + $0x90] sm:$0xff]
        %v1795 = vld [vmem:[%s2 + $0x98] sm:$0xff]
        %v1796 = vld [vmem:[%s2 + $0xa0] sm:$0xff]
        %v1797 = vld [vmem:[%s2 + $0xa8] sm:$0xff]
        %v1798 = vld [vmem:[%s2 + $0xb0] sm:$0xff]
        %v1799 = vld [vmem:[%s2 + $0xb8] sm:$0xff]
        %v1800 = vld [vmem:[%s2 + $0xc0] sm:$0xff]
        %v1801 = vld [vmem:[%s2 + $0xc8] sm:$0xff]
        %v1802 = vld [vmem:[%s2 + $0xd0] sm:$0xff]
        %v1803 = vld [vmem:[%s2 + $0xd8] sm:$0xff]
        %v1804 = vld [vmem:[%s2 + $0xe0] sm:$0xff]
        %v1805 = vld [vmem:[%s2 + $0xe8] sm:$0xff]
        %v1806 = vld [vmem:[%s2 + $0xf0] sm:$0xff]
        %v1807 = vld [vmem:[%s2 + $0xf8] sm:$0xff]
        %v1808 = vld [vmem:[%s2 + $0x100] sm:$0xff]
        %v1809 = vld [vmem:[%s2 + $0x108] sm:$0xff]
        %v1810 = vld [vmem:[%s2 + $0x110] sm:$0xff]
        %v1811 = vld [vmem:[%s2 + $0x118] sm:$0xff]
        %v1812 = vld [vmem:[%s2 + $0x120] sm:$0xff]
        %v1813 = vld [vmem:[%s2 + $0x128] sm:$0xff]
        %v1814 = vld [vmem:[%s2 + $0x130] sm:$0xff]
        %v1815 = vld [vmem:[%s2 + $0x138] sm:$0xff]
        %v1816 = vld [vmem:[%s2 + $0x140] sm:$0xff]
        %v1817 = vld [vmem:[%s2 + $0x148] sm:$0xff]
        %v1818 = vld [vmem:[%s2 + $0x150] sm:$0xff]
        %v1819 = vld [vmem:[%s2 + $0x158] sm:$0xff]
        %v1820 = vld [vmem:[%s2 + $0x160] sm:$0xff]
        %v1821 = vld [vmem:[%s2 + $0x168] sm:$0xff]
        %v1822 = vld [vmem:[%s2 + $0x170] sm:$0xff]
        %v1823 = vld [vmem:[%s2 + $0x178] sm:$0xff]
        %v1824 = vld [vmem:[%s2 + $0x180] sm:$0xff]
        %v1825 = vld [vmem:[%s2 + $0x188] sm:$0xff]
        %v1826 = vld [vmem:[%s2 + $0x190] sm:$0xff]
        %v1827 = vld [vmem:[%s2 + $0x198] sm:$0xff]
        %v1828 = vld [vmem:[%s2 + $0x1a0] sm:$0xff]
        %v1829 = vld [vmem:[%s2 + $0x1a8] sm:$0xff]
        %v1830 = vld [vmem:[%s2 + $0x1b0] sm:$0xff]
        %v1831 = vld [vmem:[%s2 + $0x1b8] sm:$0xff]
        %v1832 = vld [vmem:[%s2 + $0x1c0] sm:$0xff]
        %v1833 = vld [vmem:[%s2 + $0x1c8] sm:$0xff]
        %v1834 = vld [vmem:[%s2 + $0x1d0] sm:$0xff]
        %v1835 = vld [vmem:[%s2 + $0x1d8] sm:$0xff]
        %v1836 = vld [vmem:[%s2 + $0x1e0] sm:$0xff]
        %v1837 = vld [vmem:[%s2 + $0x1e8] sm:$0xff]
        %v1838 = vld [vmem:[%s2 + $0x1f0] sm:$0xff]
        %v1839 = vld [vmem:[%s2 + $0x1f8] sm:$0xff]
        %1840 = vmatprep.subr.mxu0 %v1837
        %1841 = vmatpush1.msra.mxu0 %v1836
        %1842 = vmatprep.subr.mxu0 %v1833
        %1843 = vmatpush1.msra.mxu0 %v1832
        %1844 = vmatprep.subr.mxu0 %v1829
        %1845 = vmatpush1.msra.mxu0 %v1828
        %1846 = vmatprep.subr.mxu0 %v1825
        %1847 = vmatpush1.msra.mxu0 %v1824
        %1848 = vmatprep.subr.mxu0 %v1821
        %1849 = vmatpush1.msra.mxu0 %v1820
        %1850 = vmatprep.subr.mxu0 %v1817
        %1851 = vmatpush1.msra.mxu0 %v1816
        %1852 = vmatprep.subr.mxu0 %v1813
        %1853 = vmatpush1.msra.mxu0 %v1812
        %1854 = vmatprep.subr.mxu0 %v1809
        %1855 = vmatpush1.msra.mxu0 %v1808
        %1856 = vmatprep.subr.mxu0 %v1805
        %1857 = vmatpush1.msra.mxu0 %v1804
        %1858 = vmatprep.subr.mxu0 %v1801
        %1859 = vmatpush1.msra.mxu0 %v1800
        %1860 = vmatprep.subr.mxu0 %v1797
        %1861 = vmatpush1.msra.mxu0 %v1796
        %1862 = vmatprep.subr.mxu0 %v1793
        %1863 = vmatpush1.msra.mxu0 %v1792
        %1864 = vmatprep.subr.mxu0 %v1789
        %1865 = vmatpush1.msra.mxu0 %v1788
        %1866 = vmatprep.subr.mxu0 %v1785
        %1867 = vmatpush1.msra.mxu0 %v1784
        %1868 = vmatprep.subr.mxu0 %v1781
        %1869 = vmatpush1.msra.mxu0 %v1780
        %1870 = vmatprep.subr.mxu0 %v1777
        %1871 = vmatpush1.msra.mxu0 %v1776
        %1872 = vmatprep.subr.mxu0 0.0
        %1873 = vmatpush2.msra.mxu0 0.0
        %1874 = vmatprep.subr.mxu0 0.0
        %1875 = vmatpush2.msra.mxu0 0.0
        %1876 = vmatprep.subr.mxu0 0.0
        %1877 = vmatpush2.msra.mxu0 0.0
        %1878 = vmatprep.subr.mxu0 0.0
        %1879 = vmatpush2.msra.mxu0 0.0
        %1880 = vmatprep.subr.mxu0 0.0
        %1881 = vmatpush2.msra.mxu0 0.0
        %1882 = vmatprep.subr.mxu0 0.0
        %1883 = vmatpush2.msra.mxu0 0.0
        %1884 = vmatprep.subr.mxu0 0.0
        %1885 = vmatpush2.msra.mxu0 0.0
        %1886 = vmatprep.subr.mxu0 0.0
        %1887 = vmatpush2.msra.mxu0 0.0
        %1888 = vmatprep.subr.mxu0 0.0
        %1889 = vmatpush2.msra.mxu0 0.0
        %1890 = vmatprep.subr.mxu0 0.0
        %1891 = vmatpush2.msra.mxu0 0.0
        %1892 = vmatprep.subr.mxu0 0.0
        %1893 = vmatpush2.msra.mxu0 0.0
        %1894 = vmatprep.subr.mxu0 0.0
        %1895 = vmatpush2.msra.mxu0 0.0
        %1896 = vmatprep.subr.mxu0 0.0
        %1897 = vmatpush2.msra.mxu0 0.0
        %1898 = vmatprep.subr.mxu0 0.0
        %1899 = vmatpush2.msra.mxu0 0.0
        %1900 = vmatprep.subr.mxu0 0.0
        %1901 = vmatpush2.msra.mxu0 0.0
        %1902 = vmatprep.subr.mxu0 0.0
        %1903 = vmatpush2.msra.mxu0 0.0
        %1904 = vmatprep.mubr.f32.mxu0 0.0
        %1905 = vmatmul.mubr.f32.gmra.mxu0 %v1774
        %v1906 = vpop.f32.mrf.mxu0
        %v1907 = vadd.f32 0.0, %v1906
        %v1908 = vpop.f32.mrf.mxu0
        %v1909 = vadd.f32 0.0, %v1908
        %1910 = vdwg.mxu0
        %1911 = vmatprep.subr.mxu0 %v1839
        %1912 = vmatpush1.msra.mxu0 %v1838
        %1913 = vmatprep.subr.mxu0 %v1835
        %1914 = vmatpush1.msra.mxu0 %v1834
        %1915 = vmatprep.subr.mxu0 %v1831
        %1916 = vmatpush1.msra.mxu0 %v1830
        %1917 = vmatprep.subr.mxu0 %v1827
        %1918 = vmatpush1.msra.mxu0 %v1826
        %1919 = vmatprep.subr.mxu0 %v1823
        %1920 = vmatpush1.msra.mxu0 %v1822
        %1921 = vmatprep.subr.mxu0 %v1819
        %1922 = vmatpush1.msra.mxu0 %v1818
        %1923 = vmatprep.subr.mxu0 %v1815
        %1924 = vmatpush1.msra.mxu0 %v1814
        %1925 = vmatprep.subr.mxu0 %v1811
        %1926 = vmatpush1.msra.mxu0 %v1810
        %1927 = vmatprep.subr.mxu0 %v1807
        %1928 = vmatpush1.msra.mxu0 %v1806
        %1929 = vmatprep.subr.mxu0 %v1803
        %1930 = vmatpush1.msra.mxu0 %v1802
        %1931 = vmatprep.subr.mxu0 %v1799
        %1932 = vmatpush1.msra.mxu0 %v1798
        %1933 = vmatprep.subr.mxu0 %v1795
        %1934 = vmatpush1.msra.mxu0 %v1794
        %1935 = vmatprep.subr.mxu0 %v1791
        %1936 = vmatpush1.msra.mxu0 %v1790
        %1937 = vmatprep.subr.mxu0 %v1787
        %1938 = vmatpush1.msra.mxu0 %v1786
        %1939 = vmatprep.subr.mxu0 %v1783
        %1940 = vmatpush1.msra.mxu0 %v1782
        %1941 = vmatprep.subr.mxu0 %v1779
        %1942 = vmatpush1.msra.mxu0 %v1778
        %1943 = vmatprep.subr.mxu0 0.0
        %1944 = vmatpush2.msra.mxu0 0.0
        %1945 = vmatprep.subr.mxu0 0.0
        %1946 = vmatpush2.msra.mxu0 0.0
        %1947 = vmatprep.subr.mxu0 0.0
        %1948 = vmatpush2.msra.mxu0 0.0
        %1949 = vmatprep.subr.mxu0 0.0
        %1950 = vmatpush2.msra.mxu0 0.0
        %1951 = vmatprep.subr.mxu0 0.0
        %1952 = vmatpush2.msra.mxu0 0.0
        %1953 = vmatprep.subr.mxu0 0.0
        %1954 = vmatpush2.msra.mxu0 0.0
        %1955 = vmatprep.subr.mxu0 0.0
        %1956 = vmatpush2.msra.mxu0 0.0
        %1957 = vmatprep.subr.mxu0 0.0
        %1958 = vmatpush2.msra.mxu0 0.0
        %1959 = vmatprep.subr.mxu0 0.0
        %1960 = vmatpush2.msra.mxu0 0.0
        %1961 = vmatprep.subr.mxu0 0.0
        %1962 = vmatpush2.msra.mxu0 0.0
        %1963 = vmatprep.subr.mxu0 0.0
        %1964 = vmatpush2.msra.mxu0 0.0
        %1965 = vmatprep.subr.mxu0 0.0
        %1966 = vmatpush2.msra.mxu0 0.0
        %1967 = vmatprep.subr.mxu0 0.0
        %1968 = vmatpush2.msra.mxu0 0.0
        %1969 = vmatprep.subr.mxu0 0.0
        %1970 = vmatpush2.msra.mxu0 0.0
        %1971 = vmatprep.subr.mxu0 0.0
        %1972 = vmatpush2.msra.mxu0 0.0
        %1973 = vmatprep.subr.mxu0 0.0
        %1974 = vmatpush2.msra.mxu0 0.0
        %1975 = vmatprep.mubr.f32.mxu0 0.0
        %1976 = vmatmul.mubr.f32.gmra.mxu0 %v1774
        %v1977 = vpop.f32.mrf.mxu0
        %v1978 = vadd.f32 0.0, %v1977
        %v1979 = vpop.f32.mrf.mxu0
        %v1980 = vadd.f32 0.0, %v1979
        %1981 = vdwg.mxu0
        %v1982 = vadd.f32 %v446, %v1907
        %v1983 = vadd.f32 %v448, %v1909
        %v1984 = vadd.f32 %v559, %v1978
        %v1985 = vadd.f32 %v561, %v1980
        %v1986 = vxor.u32 %v1982, 2147483648
        %v1987 = vmul.f32 %v1986, 1.442695
        %v1988 = vpow.pop %v1987
        %v1989 = vadd.f32 %v1988, 1.0
        %v1990 = vrcp.pop %v1989
        %v1991 = vmul.f32 1.0, %v1990
        %v1992 = vxor.u32 %v1983, 2147483648
        %v1993 = vmul.f32 %v1992, 1.442695
        %v1994 = vpow.pop %v1993
        %v1995 = vadd.f32 %v1994, 1.0
        %v1996 = vrcp.pop %v1995
        %v1997 = vmul.f32 1.0, %v1996
        %v1998 = vtanh.pop %v1984
        %v1999 = vxor.u32 %v1985, 2147483648
        %v2000 = vmul.f32 %v1999, 1.442695
        %v2001 = vpow.pop %v2000
        %v2002 = vadd.f32 %v2001, 1.0
        %v2003 = vrcp.pop %v2002
        %v2004 = vmul.f32 1.0, %v2003
        %v2005 = vmul.f32 %v1997, %v1775
        %v2006 = vmul.f32 %v1991, %v1998
        %v2007 = vadd.f32 %v2005, %v2006
        %v2008 = vtanh.pop %v2007
        %v2009 = vmul.f32 %v2004, %v2008
        %2010 = vst [vmem:[#allocation3] sm:$0xff] %v2007
        %2011 = vst [vmem:[#allocation2] sm:$0xff] %v2009
        %s2012 = scalar_lea.vmem %s277, 40 [#allocation5]
        %2013 = vst [vmem:[%s2012] sm:$0xff] %v2009
        %v2014 = vld [vmem:[#allocation2] sm:$0xff]
        %v2015 = vld [vmem:[#allocation3] sm:$0xff]
        %v2016 = vld [vmem:[%s2] sm:$0xff]
        %v2017 = vld [vmem:[%s2 + $0x8] sm:$0xff]
        %v2018 = vld [vmem:[%s2 + $0x10] sm:$0xff]
        %v2019 = vld [vmem:[%s2 + $0x18] sm:$0xff]
        %v2020 = vld [vmem:[%s2 + $0x20] sm:$0xff]
        %v2021 = vld [vmem:[%s2 + $0x28] sm:$0xff]
        %v2022 = vld [vmem:[%s2 + $0x30] sm:$0xff]
        %v2023 = vld [vmem:[%s2 + $0x38] sm:$0xff]
        %v2024 = vld [vmem:[%s2 + $0x40] sm:$0xff]
        %v2025 = vld [vmem:[%s2 + $0x48] sm:$0xff]
        %v2026 = vld [vmem:[%s2 + $0x50] sm:$0xff]
        %v2027 = vld [vmem:[%s2 + $0x58] sm:$0xff]
        %v2028 = vld [vmem:[%s2 + $0x60] sm:$0xff]
        %v2029 = vld [vmem:[%s2 + $0x68] sm:$0xff]
        %v2030 = vld [vmem:[%s2 + $0x70] sm:$0xff]
        %v2031 = vld [vmem:[%s2 + $0x78] sm:$0xff]
        %v2032 = vld [vmem:[%s2 + $0x80] sm:$0xff]
        %v2033 = vld [vmem:[%s2 + $0x88] sm:$0xff]
        %v2034 = vld [vmem:[%s2 + $0x90] sm:$0xff]
        %v2035 = vld [vmem:[%s2 + $0x98] sm:$0xff]
        %v2036 = vld [vmem:[%s2 + $0xa0] sm:$0xff]
        %v2037 = vld [vmem:[%s2 + $0xa8] sm:$0xff]
        %v2038 = vld [vmem:[%s2 + $0xb0] sm:$0xff]
        %v2039 = vld [vmem:[%s2 + $0xb8] sm:$0xff]
        %v2040 = vld [vmem:[%s2 + $0xc0] sm:$0xff]
        %v2041 = vld [vmem:[%s2 + $0xc8] sm:$0xff]
        %v2042 = vld [vmem:[%s2 + $0xd0] sm:$0xff]
        %v2043 = vld [vmem:[%s2 + $0xd8] sm:$0xff]
        %v2044 = vld [vmem:[%s2 + $0xe0] sm:$0xff]
        %v2045 = vld [vmem:[%s2 + $0xe8] sm:$0xff]
        %v2046 = vld [vmem:[%s2 + $0xf0] sm:$0xff]
        %v2047 = vld [vmem:[%s2 + $0xf8] sm:$0xff]
        %v2048 = vld [vmem:[%s2 + $0x100] sm:$0xff]
        %v2049 = vld [vmem:[%s2 + $0x108] sm:$0xff]
        %v2050 = vld [vmem:[%s2 + $0x110] sm:$0xff]
        %v2051 = vld [vmem:[%s2 + $0x118] sm:$0xff]
        %v2052 = vld [vmem:[%s2 + $0x120] sm:$0xff]
        %v2053 = vld [vmem:[%s2 + $0x128] sm:$0xff]
        %v2054 = vld [vmem:[%s2 + $0x130] sm:$0xff]
        %v2055 = vld [vmem:[%s2 + $0x138] sm:$0xff]
        %v2056 = vld [vmem:[%s2 + $0x140] sm:$0xff]
        %v2057 = vld [vmem:[%s2 + $0x148] sm:$0xff]
        %v2058 = vld [vmem:[%s2 + $0x150] sm:$0xff]
        %v2059 = vld [vmem:[%s2 + $0x158] sm:$0xff]
        %v2060 = vld [vmem:[%s2 + $0x160] sm:$0xff]
        %v2061 = vld [vmem:[%s2 + $0x168] sm:$0xff]
        %v2062 = vld [vmem:[%s2 + $0x170] sm:$0xff]
        %v2063 = vld [vmem:[%s2 + $0x178] sm:$0xff]
        %v2064 = vld [vmem:[%s2 + $0x180] sm:$0xff]
        %v2065 = vld [vmem:[%s2 + $0x188] sm:$0xff]
        %v2066 = vld [vmem:[%s2 + $0x190] sm:$0xff]
        %v2067 = vld [vmem:[%s2 + $0x198] sm:$0xff]
        %v2068 = vld [vmem:[%s2 + $0x1a0] sm:$0xff]
        %v2069 = vld [vmem:[%s2 + $0x1a8] sm:$0xff]
        %v2070 = vld [vmem:[%s2 + $0x1b0] sm:$0xff]
        %v2071 = vld [vmem:[%s2 + $0x1b8] sm:$0xff]
        %v2072 = vld [vmem:[%s2 + $0x1c0] sm:$0xff]
        %v2073 = vld [vmem:[%s2 + $0x1c8] sm:$0xff]
        %v2074 = vld [vmem:[%s2 + $0x1d0] sm:$0xff]
        %v2075 = vld [vmem:[%s2 + $0x1d8] sm:$0xff]
        %v2076 = vld [vmem:[%s2 + $0x1e0] sm:$0xff]
        %v2077 = vld [vmem:[%s2 + $0x1e8] sm:$0xff]
        %v2078 = vld [vmem:[%s2 + $0x1f0] sm:$0xff]
        %v2079 = vld [vmem:[%s2 + $0x1f8] sm:$0xff]
        %2080 = vmatprep.subr.mxu0 %v2077
        %2081 = vmatpush1.msra.mxu0 %v2076
        %2082 = vmatprep.subr.mxu0 %v2073
        %2083 = vmatpush1.msra.mxu0 %v2072
        %2084 = vmatprep.subr.mxu0 %v2069
        %2085 = vmatpush1.msra.mxu0 %v2068
        %2086 = vmatprep.subr.mxu0 %v2065
        %2087 = vmatpush1.msra.mxu0 %v2064
        %2088 = vmatprep.subr.mxu0 %v2061
        %2089 = vmatpush1.msra.mxu0 %v2060
        %2090 = vmatprep.subr.mxu0 %v2057
        %2091 = vmatpush1.msra.mxu0 %v2056
        %2092 = vmatprep.subr.mxu0 %v2053
        %2093 = vmatpush1.msra.mxu0 %v2052
        %2094 = vmatprep.subr.mxu0 %v2049
        %2095 = vmatpush1.msra.mxu0 %v2048
        %2096 = vmatprep.subr.mxu0 %v2045
        %2097 = vmatpush1.msra.mxu0 %v2044
        %2098 = vmatprep.subr.mxu0 %v2041
        %2099 = vmatpush1.msra.mxu0 %v2040
        %2100 = vmatprep.subr.mxu0 %v2037
        %2101 = vmatpush1.msra.mxu0 %v2036
        %2102 = vmatprep.subr.mxu0 %v2033
        %2103 = vmatpush1.msra.mxu0 %v2032
        %2104 = vmatprep.subr.mxu0 %v2029
        %2105 = vmatpush1.msra.mxu0 %v2028
        %2106 = vmatprep.subr.mxu0 %v2025
        %2107 = vmatpush1.msra.mxu0 %v2024
        %2108 = vmatprep.subr.mxu0 %v2021
        %2109 = vmatpush1.msra.mxu0 %v2020
        %2110 = vmatprep.subr.mxu0 %v2017
        %2111 = vmatpush1.msra.mxu0 %v2016
        %2112 = vmatprep.subr.mxu0 0.0
        %2113 = vmatpush2.msra.mxu0 0.0
        %2114 = vmatprep.subr.mxu0 0.0
        %2115 = vmatpush2.msra.mxu0 0.0
        %2116 = vmatprep.subr.mxu0 0.0
        %2117 = vmatpush2.msra.mxu0 0.0
        %2118 = vmatprep.subr.mxu0 0.0
        %2119 = vmatpush2.msra.mxu0 0.0
        %2120 = vmatprep.subr.mxu0 0.0
        %2121 = vmatpush2.msra.mxu0 0.0
        %2122 = vmatprep.subr.mxu0 0.0
        %2123 = vmatpush2.msra.mxu0 0.0
        %2124 = vmatprep.subr.mxu0 0.0
        %2125 = vmatpush2.msra.mxu0 0.0
        %2126 = vmatprep.subr.mxu0 0.0
        %2127 = vmatpush2.msra.mxu0 0.0
        %2128 = vmatprep.subr.mxu0 0.0
        %2129 = vmatpush2.msra.mxu0 0.0
        %2130 = vmatprep.subr.mxu0 0.0
        %2131 = vmatpush2.msra.mxu0 0.0
        %2132 = vmatprep.subr.mxu0 0.0
        %2133 = vmatpush2.msra.mxu0 0.0
        %2134 = vmatprep.subr.mxu0 0.0
        %2135 = vmatpush2.msra.mxu0 0.0
        %2136 = vmatprep.subr.mxu0 0.0
        %2137 = vmatpush2.msra.mxu0 0.0
        %2138 = vmatprep.subr.mxu0 0.0
        %2139 = vmatpush2.msra.mxu0 0.0
        %2140 = vmatprep.subr.mxu0 0.0
        %2141 = vmatpush2.msra.mxu0 0.0
        %2142 = vmatprep.subr.mxu0 0.0
        %2143 = vmatpush2.msra.mxu0 0.0
        %2144 = vmatprep.mubr.f32.mxu0 0.0
        %2145 = vmatmul.mubr.f32.gmra.mxu0 %v2014
        %v2146 = vpop.f32.mrf.mxu0
        %v2147 = vadd.f32 0.0, %v2146
        %v2148 = vpop.f32.mrf.mxu0
        %v2149 = vadd.f32 0.0, %v2148
        %2150 = vdwg.mxu0
        %2151 = vmatprep.subr.mxu0 %v2079
        %2152 = vmatpush1.msra.mxu0 %v2078
        %2153 = vmatprep.subr.mxu0 %v2075
        %2154 = vmatpush1.msra.mxu0 %v2074
        %2155 = vmatprep.subr.mxu0 %v2071
        %2156 = vmatpush1.msra.mxu0 %v2070
        %2157 = vmatprep.subr.mxu0 %v2067
        %2158 = vmatpush1.msra.mxu0 %v2066
        %2159 = vmatprep.subr.mxu0 %v2063
        %2160 = vmatpush1.msra.mxu0 %v2062
        %2161 = vmatprep.subr.mxu0 %v2059
        %2162 = vmatpush1.msra.mxu0 %v2058
        %2163 = vmatprep.subr.mxu0 %v2055
        %2164 = vmatpush1.msra.mxu0 %v2054
        %2165 = vmatprep.subr.mxu0 %v2051
        %2166 = vmatpush1.msra.mxu0 %v2050
        %2167 = vmatprep.subr.mxu0 %v2047
        %2168 = vmatpush1.msra.mxu0 %v2046
        %2169 = vmatprep.subr.mxu0 %v2043
        %2170 = vmatpush1.msra.mxu0 %v2042
        %2171 = vmatprep.subr.mxu0 %v2039
        %2172 = vmatpush1.msra.mxu0 %v2038
        %2173 = vmatprep.subr.mxu0 %v2035
        %2174 = vmatpush1.msra.mxu0 %v2034
        %2175 = vmatprep.subr.mxu0 %v2031
        %2176 = vmatpush1.msra.mxu0 %v2030
        %2177 = vmatprep.subr.mxu0 %v2027
        %2178 = vmatpush1.msra.mxu0 %v2026
        %2179 = vmatprep.subr.mxu0 %v2023
        %2180 = vmatpush1.msra.mxu0 %v2022
        %2181 = vmatprep.subr.mxu0 %v2019
        %2182 = vmatpush1.msra.mxu0 %v2018
        %2183 = vmatprep.subr.mxu0 0.0
        %2184 = vmatpush2.msra.mxu0 0.0
        %2185 = vmatprep.subr.mxu0 0.0
        %2186 = vmatpush2.msra.mxu0 0.0
        %2187 = vmatprep.subr.mxu0 0.0
        %2188 = vmatpush2.msra.mxu0 0.0
        %2189 = vmatprep.subr.mxu0 0.0
        %2190 = vmatpush2.msra.mxu0 0.0
        %2191 = vmatprep.subr.mxu0 0.0
        %2192 = vmatpush2.msra.mxu0 0.0
        %2193 = vmatprep.subr.mxu0 0.0
        %2194 = vmatpush2.msra.mxu0 0.0
        %2195 = vmatprep.subr.mxu0 0.0
        %2196 = vmatpush2.msra.mxu0 0.0
        %2197 = vmatprep.subr.mxu0 0.0
        %2198 = vmatpush2.msra.mxu0 0.0
        %2199 = vmatprep.subr.mxu0 0.0
        %2200 = vmatpush2.msra.mxu0 0.0
        %2201 = vmatprep.subr.mxu0 0.0
        %2202 = vmatpush2.msra.mxu0 0.0
        %2203 = vmatprep.subr.mxu0 0.0
        %2204 = vmatpush2.msra.mxu0 0.0
        %2205 = vmatprep.subr.mxu0 0.0
        %2206 = vmatpush2.msra.mxu0 0.0
        %2207 = vmatprep.subr.mxu0 0.0
        %2208 = vmatpush2.msra.mxu0 0.0
        %2209 = vmatprep.subr.mxu0 0.0
        %2210 = vmatpush2.msra.mxu0 0.0
        %2211 = vmatprep.subr.mxu0 0.0
        %2212 = vmatpush2.msra.mxu0 0.0
        %2213 = vmatprep.subr.mxu0 0.0
        %2214 = vmatpush2.msra.mxu0 0.0
        %2215 = vmatprep.mubr.f32.mxu0 0.0
        %2216 = vmatmul.mubr.f32.gmra.mxu0 %v2014
        %v2217 = vpop.f32.mrf.mxu0
        %v2218 = vadd.f32 0.0, %v2217
        %v2219 = vpop.f32.mrf.mxu0
        %v2220 = vadd.f32 0.0, %v2219
        %2221 = vdwg.mxu0
        %v2222 = vadd.f32 %v452, %v2147
        %v2223 = vadd.f32 %v454, %v2149
        %v2224 = vadd.f32 %v565, %v2218
        %v2225 = vadd.f32 %v567, %v2220
        %v2226 = vxor.u32 %v2222, 2147483648
        %v2227 = vmul.f32 %v2226, 1.442695
        %v2228 = vpow.pop %v2227
        %v2229 = vadd.f32 %v2228, 1.0
        %v2230 = vrcp.pop %v2229
        %v2231 = vmul.f32 1.0, %v2230
        %v2232 = vxor.u32 %v2223, 2147483648
        %v2233 = vmul.f32 %v2232, 1.442695
        %v2234 = vpow.pop %v2233
        %v2235 = vadd.f32 %v2234, 1.0
        %v2236 = vrcp.pop %v2235
        %v2237 = vmul.f32 1.0, %v2236
        %v2238 = vtanh.pop %v2224
        %v2239 = vxor.u32 %v2225, 2147483648
        %v2240 = vmul.f32 %v2239, 1.442695
        %v2241 = vpow.pop %v2240
        %v2242 = vadd.f32 %v2241, 1.0
        %v2243 = vrcp.pop %v2242
        %v2244 = vmul.f32 1.0, %v2243
        %v2245 = vmul.f32 %v2237, %v2015
        %v2246 = vmul.f32 %v2231, %v2238
        %v2247 = vadd.f32 %v2245, %v2246
        %v2248 = vtanh.pop %v2247
        %v2249 = vmul.f32 %v2244, %v2248
        %2250 = vst [vmem:[#allocation3] sm:$0xff] %v2247
        %2251 = vst [vmem:[#allocation2] sm:$0xff] %v2249
        %s2252 = scalar_lea.vmem %s277, 48 [#allocation5]
        %2253 = vst [vmem:[%s2252] sm:$0xff] %v2249
        %v2254 = vld [vmem:[#allocation2] sm:$0xff]
        %v2255 = vld [vmem:[#allocation3] sm:$0xff]
        %v2256 = vld [vmem:[%s2] sm:$0xff]
        %v2257 = vld [vmem:[%s2 + $0x8] sm:$0xff]
        %v2258 = vld [vmem:[%s2 + $0x10] sm:$0xff]
        %v2259 = vld [vmem:[%s2 + $0x18] sm:$0xff]
        %v2260 = vld [vmem:[%s2 + $0x20] sm:$0xff]
        %v2261 = vld [vmem:[%s2 + $0x28] sm:$0xff]
        %v2262 = vld [vmem:[%s2 + $0x30] sm:$0xff]
        %v2263 = vld [vmem:[%s2 + $0x38] sm:$0xff]
        %v2264 = vld [vmem:[%s2 + $0x40] sm:$0xff]
        %v2265 = vld [vmem:[%s2 + $0x48] sm:$0xff]
        %v2266 = vld [vmem:[%s2 + $0x50] sm:$0xff]
        %v2267 = vld [vmem:[%s2 + $0x58] sm:$0xff]
        %v2268 = vld [vmem:[%s2 + $0x60] sm:$0xff]
        %v2269 = vld [vmem:[%s2 + $0x68] sm:$0xff]
        %v2270 = vld [vmem:[%s2 + $0x70] sm:$0xff]
        %v2271 = vld [vmem:[%s2 + $0x78] sm:$0xff]
        %v2272 = vld [vmem:[%s2 + $0x80] sm:$0xff]
        %v2273 = vld [vmem:[%s2 + $0x88] sm:$0xff]
        %v2274 = vld [vmem:[%s2 + $0x90] sm:$0xff]
        %v2275 = vld [vmem:[%s2 + $0x98] sm:$0xff]
        %v2276 = vld [vmem:[%s2 + $0xa0] sm:$0xff]
        %v2277 = vld [vmem:[%s2 + $0xa8] sm:$0xff]
        %v2278 = vld [vmem:[%s2 + $0xb0] sm:$0xff]
        %v2279 = vld [vmem:[%s2 + $0xb8] sm:$0xff]
        %v2280 = vld [vmem:[%s2 + $0xc0] sm:$0xff]
        %v2281 = vld [vmem:[%s2 + $0xc8] sm:$0xff]
        %v2282 = vld [vmem:[%s2 + $0xd0] sm:$0xff]
        %v2283 = vld [vmem:[%s2 + $0xd8] sm:$0xff]
        %v2284 = vld [vmem:[%s2 + $0xe0] sm:$0xff]
        %v2285 = vld [vmem:[%s2 + $0xe8] sm:$0xff]
        %v2286 = vld [vmem:[%s2 + $0xf0] sm:$0xff]
        %v2287 = vld [vmem:[%s2 + $0xf8] sm:$0xff]
        %v2288 = vld [vmem:[%s2 + $0x100] sm:$0xff]
        %v2289 = vld [vmem:[%s2 + $0x108] sm:$0xff]
        %v2290 = vld [vmem:[%s2 + $0x110] sm:$0xff]
        %v2291 = vld [vmem:[%s2 + $0x118] sm:$0xff]
        %v2292 = vld [vmem:[%s2 + $0x120] sm:$0xff]
        %v2293 = vld [vmem:[%s2 + $0x128] sm:$0xff]
        %v2294 = vld [vmem:[%s2 + $0x130] sm:$0xff]
        %v2295 = vld [vmem:[%s2 + $0x138] sm:$0xff]
        %v2296 = vld [vmem:[%s2 + $0x140] sm:$0xff]
        %v2297 = vld [vmem:[%s2 + $0x148] sm:$0xff]
        %v2298 = vld [vmem:[%s2 + $0x150] sm:$0xff]
        %v2299 = vld [vmem:[%s2 + $0x158] sm:$0xff]
        %v2300 = vld [vmem:[%s2 + $0x160] sm:$0xff]
        %v2301 = vld [vmem:[%s2 + $0x168] sm:$0xff]
        %v2302 = vld [vmem:[%s2 + $0x170] sm:$0xff]
        %v2303 = vld [vmem:[%s2 + $0x178] sm:$0xff]
        %v2304 = vld [vmem:[%s2 + $0x180] sm:$0xff]
        %v2305 = vld [vmem:[%s2 + $0x188] sm:$0xff]
        %v2306 = vld [vmem:[%s2 + $0x190] sm:$0xff]
        %v2307 = vld [vmem:[%s2 + $0x198] sm:$0xff]
        %v2308 = vld [vmem:[%s2 + $0x1a0] sm:$0xff]
        %v2309 = vld [vmem:[%s2 + $0x1a8] sm:$0xff]
        %v2310 = vld [vmem:[%s2 + $0x1b0] sm:$0xff]
        %v2311 = vld [vmem:[%s2 + $0x1b8] sm:$0xff]
        %v2312 = vld [vmem:[%s2 + $0x1c0] sm:$0xff]
        %v2313 = vld [vmem:[%s2 + $0x1c8] sm:$0xff]
        %v2314 = vld [vmem:[%s2 + $0x1d0] sm:$0xff]
        %v2315 = vld [vmem:[%s2 + $0x1d8] sm:$0xff]
        %v2316 = vld [vmem:[%s2 + $0x1e0] sm:$0xff]
        %v2317 = vld [vmem:[%s2 + $0x1e8] sm:$0xff]
        %v2318 = vld [vmem:[%s2 + $0x1f0] sm:$0xff]
        %v2319 = vld [vmem:[%s2 + $0x1f8] sm:$0xff]
        %2320 = vmatprep.subr.mxu0 %v2317
        %2321 = vmatpush1.msra.mxu0 %v2316
        %2322 = vmatprep.subr.mxu0 %v2313
        %2323 = vmatpush1.msra.mxu0 %v2312
        %2324 = vmatprep.subr.mxu0 %v2309
        %2325 = vmatpush1.msra.mxu0 %v2308
        %2326 = vmatprep.subr.mxu0 %v2305
        %2327 = vmatpush1.msra.mxu0 %v2304
        %2328 = vmatprep.subr.mxu0 %v2301
        %2329 = vmatpush1.msra.mxu0 %v2300
        %2330 = vmatprep.subr.mxu0 %v2297
        %2331 = vmatpush1.msra.mxu0 %v2296
        %2332 = vmatprep.subr.mxu0 %v2293
        %2333 = vmatpush1.msra.mxu0 %v2292
        %2334 = vmatprep.subr.mxu0 %v2289
        %2335 = vmatpush1.msra.mxu0 %v2288
        %2336 = vmatprep.subr.mxu0 %v2285
        %2337 = vmatpush1.msra.mxu0 %v2284
        %2338 = vmatprep.subr.mxu0 %v2281
        %2339 = vmatpush1.msra.mxu0 %v2280
        %2340 = vmatprep.subr.mxu0 %v2277
        %2341 = vmatpush1.msra.mxu0 %v2276
        %2342 = vmatprep.subr.mxu0 %v2273
        %2343 = vmatpush1.msra.mxu0 %v2272
        %2344 = vmatprep.subr.mxu0 %v2269
        %2345 = vmatpush1.msra.mxu0 %v2268
        %2346 = vmatprep.subr.mxu0 %v2265
        %2347 = vmatpush1.msra.mxu0 %v2264
        %2348 = vmatprep.subr.mxu0 %v2261
        %2349 = vmatpush1.msra.mxu0 %v2260
        %2350 = vmatprep.subr.mxu0 %v2257
        %2351 = vmatpush1.msra.mxu0 %v2256
        %2352 = vmatprep.subr.mxu0 0.0
        %2353 = vmatpush2.msra.mxu0 0.0
        %2354 = vmatprep.subr.mxu0 0.0
        %2355 = vmatpush2.msra.mxu0 0.0
        %2356 = vmatprep.subr.mxu0 0.0
        %2357 = vmatpush2.msra.mxu0 0.0
        %2358 = vmatprep.subr.mxu0 0.0
        %2359 = vmatpush2.msra.mxu0 0.0
        %2360 = vmatprep.subr.mxu0 0.0
        %2361 = vmatpush2.msra.mxu0 0.0
        %2362 = vmatprep.subr.mxu0 0.0
        %2363 = vmatpush2.msra.mxu0 0.0
        %2364 = vmatprep.subr.mxu0 0.0
        %2365 = vmatpush2.msra.mxu0 0.0
        %2366 = vmatprep.subr.mxu0 0.0
        %2367 = vmatpush2.msra.mxu0 0.0
        %2368 = vmatprep.subr.mxu0 0.0
        %2369 = vmatpush2.msra.mxu0 0.0
        %2370 = vmatprep.subr.mxu0 0.0
        %2371 = vmatpush2.msra.mxu0 0.0
        %2372 = vmatprep.subr.mxu0 0.0
        %2373 = vmatpush2.msra.mxu0 0.0
        %2374 = vmatprep.subr.mxu0 0.0
        %2375 = vmatpush2.msra.mxu0 0.0
        %2376 = vmatprep.subr.mxu0 0.0
        %2377 = vmatpush2.msra.mxu0 0.0
        %2378 = vmatprep.subr.mxu0 0.0
        %2379 = vmatpush2.msra.mxu0 0.0
        %2380 = vmatprep.subr.mxu0 0.0
        %2381 = vmatpush2.msra.mxu0 0.0
        %2382 = vmatprep.subr.mxu0 0.0
        %2383 = vmatpush2.msra.mxu0 0.0
        %2384 = vmatprep.mubr.f32.mxu0 0.0
        %2385 = vmatmul.mubr.f32.gmra.mxu0 %v2254
        %v2386 = vpop.f32.mrf.mxu0
        %v2387 = vadd.f32 0.0, %v2386
        %v2388 = vpop.f32.mrf.mxu0
        %v2389 = vadd.f32 0.0, %v2388
        %2390 = vdwg.mxu0
        %2391 = vmatprep.subr.mxu0 %v2319
        %2392 = vmatpush1.msra.mxu0 %v2318
        %2393 = vmatprep.subr.mxu0 %v2315
        %2394 = vmatpush1.msra.mxu0 %v2314
        %2395 = vmatprep.subr.mxu0 %v2311
        %2396 = vmatpush1.msra.mxu0 %v2310
        %2397 = vmatprep.subr.mxu0 %v2307
        %2398 = vmatpush1.msra.mxu0 %v2306
        %2399 = vmatprep.subr.mxu0 %v2303
        %2400 = vmatpush1.msra.mxu0 %v2302
        %2401 = vmatprep.subr.mxu0 %v2299
        %2402 = vmatpush1.msra.mxu0 %v2298
        %2403 = vmatprep.subr.mxu0 %v2295
        %2404 = vmatpush1.msra.mxu0 %v2294
        %2405 = vmatprep.subr.mxu0 %v2291
        %2406 = vmatpush1.msra.mxu0 %v2290
        %2407 = vmatprep.subr.mxu0 %v2287
        %2408 = vmatpush1.msra.mxu0 %v2286
        %2409 = vmatprep.subr.mxu0 %v2283
        %2410 = vmatpush1.msra.mxu0 %v2282
        %2411 = vmatprep.subr.mxu0 %v2279
        %2412 = vmatpush1.msra.mxu0 %v2278
        %2413 = vmatprep.subr.mxu0 %v2275
        %2414 = vmatpush1.msra.mxu0 %v2274
        %2415 = vmatprep.subr.mxu0 %v2271
        %2416 = vmatpush1.msra.mxu0 %v2270
        %2417 = vmatprep.subr.mxu0 %v2267
        %2418 = vmatpush1.msra.mxu0 %v2266
        %2419 = vmatprep.subr.mxu0 %v2263
        %2420 = vmatpush1.msra.mxu0 %v2262
        %2421 = vmatprep.subr.mxu0 %v2259
        %2422 = vmatpush1.msra.mxu0 %v2258
        %2423 = vmatprep.subr.mxu0 0.0
        %2424 = vmatpush2.msra.mxu0 0.0
        %2425 = vmatprep.subr.mxu0 0.0
        %2426 = vmatpush2.msra.mxu0 0.0
        %2427 = vmatprep.subr.mxu0 0.0
        %2428 = vmatpush2.msra.mxu0 0.0
        %2429 = vmatprep.subr.mxu0 0.0
        %2430 = vmatpush2.msra.mxu0 0.0
        %2431 = vmatprep.subr.mxu0 0.0
        %2432 = vmatpush2.msra.mxu0 0.0
        %2433 = vmatprep.subr.mxu0 0.0
        %2434 = vmatpush2.msra.mxu0 0.0
        %2435 = vmatprep.subr.mxu0 0.0
        %2436 = vmatpush2.msra.mxu0 0.0
        %2437 = vmatprep.subr.mxu0 0.0
        %2438 = vmatpush2.msra.mxu0 0.0
        %2439 = vmatprep.subr.mxu0 0.0
        %2440 = vmatpush2.msra.mxu0 0.0
        %2441 = vmatprep.subr.mxu0 0.0
        %2442 = vmatpush2.msra.mxu0 0.0
        %2443 = vmatprep.subr.mxu0 0.0
        %2444 = vmatpush2.msra.mxu0 0.0
        %2445 = vmatprep.subr.mxu0 0.0
        %2446 = vmatpush2.msra.mxu0 0.0
        %2447 = vmatprep.subr.mxu0 0.0
        %2448 = vmatpush2.msra.mxu0 0.0
        %2449 = vmatprep.subr.mxu0 0.0
        %2450 = vmatpush2.msra.mxu0 0.0
        %2451 = vmatprep.subr.mxu0 0.0
        %2452 = vmatpush2.msra.mxu0 0.0
        %2453 = vmatprep.subr.mxu0 0.0
        %2454 = vmatpush2.msra.mxu0 0.0
        %2455 = vmatprep.mubr.f32.mxu0 0.0
        %2456 = vmatmul.mubr.f32.gmra.mxu0 %v2254
        %v2457 = vpop.f32.mrf.mxu0
        %v2458 = vadd.f32 0.0, %v2457
        %v2459 = vpop.f32.mrf.mxu0
        %v2460 = vadd.f32 0.0, %v2459
        %2461 = vdwg.mxu0
        %v2462 = vadd.f32 %v458, %v2387
        %v2463 = vadd.f32 %v460, %v2389
        %v2464 = vadd.f32 %v571, %v2458
        %v2465 = vadd.f32 %v573, %v2460
        %v2466 = vxor.u32 %v2462, 2147483648
        %v2467 = vmul.f32 %v2466, 1.442695
        %v2468 = vpow.pop %v2467
        %v2469 = vadd.f32 %v2468, 1.0
        %v2470 = vrcp.pop %v2469
        %v2471 = vmul.f32 1.0, %v2470
        %v2472 = vxor.u32 %v2463, 2147483648
        %v2473 = vmul.f32 %v2472, 1.442695
        %v2474 = vpow.pop %v2473
        %v2475 = vadd.f32 %v2474, 1.0
        %v2476 = vrcp.pop %v2475
        %v2477 = vmul.f32 1.0, %v2476
        %v2478 = vtanh.pop %v2464
        %v2479 = vxor.u32 %v2465, 2147483648
        %v2480 = vmul.f32 %v2479, 1.442695
        %v2481 = vpow.pop %v2480
        %v2482 = vadd.f32 %v2481, 1.0
        %v2483 = vrcp.pop %v2482
        %v2484 = vmul.f32 1.0, %v2483
        %v2485 = vmul.f32 %v2477, %v2255
        %v2486 = vmul.f32 %v2471, %v2478
        %v2487 = vadd.f32 %v2485, %v2486
        %v2488 = vtanh.pop %v2487
        %v2489 = vmul.f32 %v2484, %v2488
        %2490 = vst [vmem:[#allocation3] sm:$0xff] %v2487
        %2491 = vst [vmem:[#allocation2] sm:$0xff] %v2489
        %s2492 = scalar_lea.vmem %s277, 56 [#allocation5]
        %2493 = vst [vmem:[%s2492] sm:$0xff] %v2489
        %s2494 = sand.u32 %s131, 1
        %s2495 = scalar_lea.sflag [#allocation6], %s2494
        %s2496 = sand.u32 %s131, 1
        %s2497 = smul.addr %s2496, 64
        %s2498 = scalar_lea.vmem [#allocation5], %s2497
        // Predicated region
        $region79: #{bonito_lstm.1} parent=69 // pred_check
          %p2499 = pneg %p141
        $region80: #{bonito_lstm.1} parent=69 // pred_check_branch
          %2501 = sbr.rel (%p2499) target = $region82
        $region81: #{bonito_lstm.1} parent=69 // pred_region
          %s2502 = smul.u32 8, %s23
          %s2504 = ssub.s32 1024, 1024
          %2505 = vsyncadd %s2495, %s2504
          %s2506 = smul.addr %s2502, 2
          %s2507 = sadd.s32 %s22, %s2506
          %s2508 = smul.addr %s2507, 128
          %s2509 = scalar_lea.hbm %s4, %s2508
          %s2510 = sshll.u32 %s2498, 4
          %s2511 = int_to_ptr.vmem [resolvable:$true] %s2510
          %2516 = dma.vmem_to_hbm [thread:$0]  %s2511, 1024, %s2509, %s2495, 128, 256, 8
        $region82: #{bonito_lstm.1} parent=69 // pred_fallthru
          _
      $region70: #{bonito_lstm.1} parent=5 // pred_fallthru
        _
      %p2517 = scmp.le.s32.totalorder 2, %s13
      // Predicated region
      $region83: #{bonito_lstm.1} parent=5 // pred_check
        %p2518 = pneg %p2517
      $region84: #{bonito_lstm.1} parent=5 // pred_check_branch
        %2520 = sbr.rel (%p2518) target = $region86
      $region85: #{bonito_lstm.1} parent=5 // pred_region
        %s2521 = ssub.s32 %s13, 2
        // Predicated region
        $region87: #{bonito_lstm.1} parent=85 // pred_check
          %p2522 = pneg %p147
        $region88: #{bonito_lstm.1} parent=85 // pred_check_branch
          %2524 = sbr.rel (%p2522) target = $region90
        $region89: #{bonito_lstm.1} parent=85 // pred_region
          %s2525 = sand.u32 %s132, 1
          %s2526 = scalar_lea.sflag [#allocation6], %s2525
          %s2527 = sand.u32 %s132, 1
          %s2528 = smul.addr %s2527, 64
          %s2529 = scalar_lea.vmem [#allocation5], %s2528
          %2530 = dma.done %s2526, 1024
        $region90: #{bonito_lstm.1} parent=85 // pred_fallthru
          _
      $region86: #{bonito_lstm.1} parent=5 // pred_fallthru
        _
    $region6: #{bonito_lstm.1} parent=1 // loop_footer
      %s17 = sadd.s32 1, %s13
    $region7: #{bonito_lstm.1} parent=1 // loop_footer_branch
      %12 = sbr.rel target = $region3
    $region8: #{bonito_lstm.1} parent=1 // loop_exit
      _
    %2531 = vsyncpa [#allocation6], 1
    %s2532 = scalar_lea.sflag [#allocation6], 1
    %2533 = vsyncpa %s2532, 1

</llo_original>
